<compile_context>
chip_gen: v5e
topology: v5e:2x2
jax: 0.10.0
libtpu: 0.0.40
codegen_flags: <defaults>
</compile_context>

<pallas_src>
import jax
import jax.numpy as jnp
from jax.experimental import pallas as pl
from jax.experimental.pallas import tpu as pltpu


def _round_up(x, m):
    return (x + m - 1) // m * m


# ----------------------------------------------------------------------------
# Fused EncoderBlock kernel (one image per grid step)
# ----------------------------------------------------------------------------
def _make_encoder_block_kernel(H, W, cin_p, cout, cout_p, mask_ch):
    def _conv3x3_tapsum(src, w_ref, kc):
        # src: (H+2, W+2, kc) halo-padded activation VALUE (any float dtype).
        # w_ref: (9, kc, cout_p) bf16 weight ref (tap-major).
        # 9-tap accumulate: no (H*W, 9*kc) im2col temp is materialized; the
        # MXU streams the same K in tap-sized chunks, accumulating in f32.
        acc = None
        for tap in range(9):
            dh, dw = divmod(tap, 3)
            lhs = (src[dh:dh + H, dw:dw + W, :]
                   .reshape(H * W, kc)
                   .astype(jnp.bfloat16))
            part = jnp.dot(lhs, w_ref[tap], preferred_element_type=jnp.float32)
            acc = part if acc is None else acc + part
        return acc  # (H*W, cout_p) f32

    def _epilogue(y, a_ref):
        # a_ref rows: 0 = conv bias, 1 = folded BN scale, 2 = folded BN shift.
        # Order matches the PyTorch block: conv(+bias) -> LeakyReLU(0.2) -> BN.
        # Entire epilogue stays f32 (v5e VPU has no bf16 path).
        y = y + a_ref[0:1, :]
        y = jnp.where(y >= 0.0, y, 0.2 * y)
        return y * a_ref[1:2, :] + a_ref[2:3, :]

    def kernel(x_ref, w1_ref, a1_ref, w2_ref, a2_ref, o_ref, y1_ref):
        x = x_ref[0]                                   # (H+2, W+2, cin_p) bf16

        # ---- stage 1: conv1 + bias + LeakyReLU + BN, then mask multiply ----
        y = _conv3x3_tapsum(x, w1_ref, cin_p)          # (H*W, cout_p) f32
        y = _epilogue(y, a1_ref)
        # Mask (or ones when no mask was given) rides in pad channel `mask_ch`
        # of x; its w1 rows are zero so it never contributes to the conv.
        xi = x[1:H + 1, 1:W + 1, :].reshape(H * W, cin_p)
        m = xi[:, mask_ch:mask_ch + 1].astype(jnp.float32)     # (H*W, 1)
        y = y * m

        # ---- stage the real Cout channels in a halo scratch ----
        # Zero only the 1-pixel halo ring (interior is fully overwritten each
        # step; safe per-step under megacore "parallel" sharding).
        y1_ref[0:1, :, :] = jnp.zeros((1, W + 2, cout), jnp.float32)
        y1_ref[H + 1:H + 2, :, :] = jnp.zeros((1, W + 2, cout), jnp.float32)
        y1_ref[:, 0:1, :] = jnp.zeros((H + 2, 1, cout), jnp.float32)
        y1_ref[:, W + 1:W + 2, :] = jnp.zeros((H + 2, 1, cout), jnp.float32)
        y1_ref[1:H + 1, 1:W + 1, :] = y[:, :cout].reshape(H, W, cout)

        # ---- stage 2: conv2 + bias + LeakyReLU + BN ----
        y1 = y1_ref[...]                               # (H+2, W+2, cout) f32
        z = _conv3x3_tapsum(y1, w2_ref, cout)          # K = 9*cout, not 9*128
        z = _epilogue(z, a2_ref)
        o_ref[0] = z.reshape(H, W, cout_p)

    return kernel


# ----------------------------------------------------------------------------
# Wrapper: pack operands, call the kernel, strip the channel pad
# ----------------------------------------------------------------------------
def encoder_block_forward(x, params, mask=None):
    """x: (N, H, W, Cin) f32; mask: None or (N, H, W, 1) f32 -> (N, H, W, Cout)."""
    N, H, W, cin = x.shape
    w1, w2 = params["w1"], params["w2"]
    cout = w1.shape[-1]
    cin_p = _round_up(cin + 1, 8)        # +1 reserves a pad channel for the mask
    cout_p = _round_up(cout, 128)        # lane-dense matmul N / output store
    mask_ch = cin

    # Stash the mask (or ones) in pad channel `mask_ch` so it rides the
    # activation DMA (no separate lane-width-1 mask stream), halo-pad
    # spatially, and DMA as bf16 (MXU operands are bf16 anyway).
    if mask is None:
        m = jnp.ones((N, H, W), x.dtype)
    else:
        m = mask.reshape(N, H, W).astype(x.dtype)
    xp = jnp.zeros((N, H, W, cin_p), jnp.float32)
    xp = xp.at[..., :cin].set(x)
    xp = xp.at[..., mask_ch].set(m)
    xp = jnp.pad(xp, ((0, 0), (1, 1), (1, 1), (0, 0))).astype(jnp.bfloat16)

    def pack_w(w, kc_pad):
        kh, kw, ci, co = w.shape
        wp = jnp.zeros((kh * kw, kc_pad, cout_p), jnp.float32)
        wp = wp.at[:, :ci, :co].set(w.reshape(kh * kw, ci, co))
        return wp.astype(jnp.bfloat16)   # pad K rows (incl. mask channel) are 0

    def pack_affine(b, scale, shift):
        # Pad columns stay exactly zero (only affects discarded pad outputs;
        # stage 2 never reads intermediate pad channels anymore).
        a = jnp.zeros((3, cout_p), jnp.float32)
        a = a.at[0, :cout].set(b)
        a = a.at[1, :cout].set(scale)
        a = a.at[2, :cout].set(shift)
        return a

    w1m = pack_w(w1, cin_p)              # (9, cin_p, cout_p)   ~18 KiB bf16
    w2m = pack_w(w2, cout)               # (9, cout,  cout_p)   ~72 KiB bf16
    a1 = pack_affine(params["b1"], params["scale1"], params["shift1"])
    a2 = pack_affine(params["b2"], params["scale2"], params["shift2"])

    kernel = _make_encoder_block_kernel(H, W, cin_p, cout, cout_p, mask_ch)

    out_padded = pl.pallas_call(
        kernel,
        out_shape=jax.ShapeDtypeStruct((N, H, W, cout_p), jnp.float32),
        grid=(N,),
        in_specs=[
            pl.BlockSpec((1, H + 2, W + 2, cin_p), lambda n: (n, 0, 0, 0)),
            pl.BlockSpec((9, cin_p, cout_p), lambda n: (0, 0, 0)),
            pl.BlockSpec((3, cout_p), lambda n: (0, 0)),
            pl.BlockSpec((9, cout, cout_p), lambda n: (0, 0, 0)),
            pl.BlockSpec((3, cout_p), lambda n: (0, 0)),
        ],
        out_specs=pl.BlockSpec((1, H, W, cout_p), lambda n: (n, 0, 0, 0)),
        scratch_shapes=[pltpu.VMEM((H + 2, W + 2, cout), jnp.float32)],
        compiler_params=pltpu.CompilerParams(
            dimension_semantics=("parallel",)),
    )(xp, w1m, a1, w2m, a2)
    return out_padded[..., :cout]


# ----------------------------------------------------------------------------
# Parameters (deterministic) and pure-JAX reference
# ----------------------------------------------------------------------------
def init_encoder_params(key, cin, cout):
    ks = jax.random.split(key, 4)

    def conv(k, ci, co):
        k1, k2 = jax.random.split(k)
        return (0.05 * jax.random.normal(k1, (3, 3, ci, co), jnp.float32),
                0.05 * jax.random.normal(k2, (co,), jnp.float32))

    def bn(k, c):
        k1, k2 = jax.random.split(k)
        gamma = 1.0 + 0.1 * jax.random.normal(k1, (c,), jnp.float32)
        beta = 0.1 * jax.random.normal(k2, (c,), jnp.float32)
        running_mean = jnp.zeros((c,), jnp.float32)
        running_var = jnp.ones((c,), jnp.float32)
        eps = 1e-5
        scale = gamma / jnp.sqrt(running_var + eps)
        shift = beta - running_mean * scale
        return scale, shift

    w1, b1 = conv(ks[0], cin, cout)
    s1, t1 = bn(ks[1], cout)
    w2, b2 = conv(ks[2], cout, cout)
    s2, t2 = bn(ks[3], cout)
    return {"w1": w1, "b1": b1, "scale1": s1, "shift1": t1,
            "w2": w2, "b2": b2, "scale2": s2, "shift2": t2}


def encoder_block_reference(x, params, mask=None):
    def stage(x, w, b, scale, shift):
        y = jax.lax.conv_general_dilated(
            x, w, window_strides=(1, 1), padding="SAME",
            dimension_numbers=("NHWC", "HWIO", "NHWC"))
        y = y + b
        y = jnp.where(y >= 0.0, y, 0.2 * y)
        return y * scale + shift

    y = stage(x, params["w1"], params["b1"], params["scale1"], params["shift1"])
    if mask is not None:
        y = y * mask
    return stage(y, params["w2"], params["b2"], params["scale2"], params["shift2"])


if __name__ == "__main__":
    key = jax.random.PRNGKey(0)
    pkey, xkey, mkey = jax.random.split(key, 3)

    # PyTorch-equivalent input would be (2, 4, 16, 16) NCHW; we use NHWC.
    N, H, W, CIN, COUT = 2, 16, 16, 4, 32
    params = init_encoder_params(pkey, CIN, COUT)
    x = jax.random.uniform(xkey, (N, H, W, CIN), jnp.float32)
    mask = jax.random.uniform(mkey, (N, H, W, 1), jnp.float32)

    fwd = jax.jit(encoder_block_forward)
    out = jax.block_until_ready(fwd(x, params, None))        # mask=None path
    out_m = jax.block_until_ready(fwd(x, params, mask))      # masked path

    assert out.shape == (N, H, W, COUT) and out.dtype == jnp.float32
    assert out_m.shape == (N, H, W, COUT)

    ref = encoder_block_reference(x, params, None)
    ref_m = encoder_block_reference(x, params, mask)
    assert jnp.allclose(out, ref, atol=2e-2, rtol=2e-2)
    assert jnp.allclose(out_m, ref_m, atol=2e-2, rtol=2e-2)

    print("KERNEL_OK")
</pallas_src>

<mosaic_0001>
module attributes {stable_mosaic.version = 11 : i64} {
  func.func @kernel(%arg0: i32, %arg1: memref<1x18x18x8xbf16, #tpu.memory_space<vmem>>, %arg2: memref<9x8x128xbf16, #tpu.memory_space<vmem>>, %arg3: memref<3x128xf32, #tpu.memory_space<vmem>>, %arg4: memref<9x32x128xbf16, #tpu.memory_space<vmem>>, %arg5: memref<3x128xf32, #tpu.memory_space<vmem>>, %arg6: memref<1x16x16x128xf32, #tpu.memory_space<vmem>>, %arg7: memref<18x18x32xf32, #tpu.memory_space<vmem>>) attributes {dimension_semantics = [#tpu.dimension_semantics<parallel>], iteration_bounds = array<i64: 2>, scalar_prefetch = 0 : i64, scratch_operands = 1 : i64, tpu.core_type = #tpu.core_type<tc>, window_params = [{transform_indices = @transform_0, window_bounds = array<i64: 1, 18, 18, 8>}, {pipeline_mode = #tpu.pipeline_mode<synchronous>, transform_indices = @transform_1, window_bounds = array<i64: 9, 8, 128>}, {pipeline_mode = #tpu.pipeline_mode<synchronous>, transform_indices = @transform_2, window_bounds = array<i64: 3, 128>}, {pipeline_mode = #tpu.pipeline_mode<synchronous>, transform_indices = @transform_3, window_bounds = array<i64: 9, 32, 128>}, {pipeline_mode = #tpu.pipeline_mode<synchronous>, transform_indices = @transform_4, window_bounds = array<i64: 3, 128>}, {transform_indices = @transform_5, window_bounds = array<i64: 1, 16, 16, 128>}]} {
    %c0 = arith.constant 0 : index
    %c0_0 = arith.constant 0 : index
    %c0_1 = arith.constant 0 : index
    %c0_2 = arith.constant 0 : index
    %0 = vector.load %arg1[%c0, %c0_0, %c0_1, %c0_2] : memref<1x18x18x8xbf16, #tpu.memory_space<vmem>>, vector<1x18x18x8xbf16>
    %1 = vector.shape_cast %0 : vector<1x18x18x8xbf16> to vector<18x18x8xbf16>
    %2 = vector.extract_strided_slice %1 {offsets = [0, 0, 0], sizes = [16, 16, 8], strides = [1, 1, 1]} : vector<18x18x8xbf16> to vector<16x16x8xbf16>
    %3 = vector.shape_cast %2 : vector<16x16x8xbf16> to vector<256x8xbf16>
    %c0_3 = arith.constant 0 : index
    %c0_4 = arith.constant 0 : index
    %c0_5 = arith.constant 0 : index
    %4 = vector.load %arg2[%c0_3, %c0_4, %c0_5] : memref<9x8x128xbf16, #tpu.memory_space<vmem>>, vector<1x8x128xbf16>
    %5 = vector.shape_cast %4 : vector<1x8x128xbf16> to vector<8x128xbf16>
    %cst = arith.constant dense<0.000000e+00> : vector<256x128xf32>
    %6 = tpu.matmul %3, %5, %cst {dimension_numbers = #tpu.dot_dimension_numbers<[1], [0], [0], [1], [0, 0, 1, 1], [], []>} : vector<256x8xbf16>, vector<8x128xbf16>, vector<256x128xf32> -> vector<256x128xf32>
    %7 = vector.extract_strided_slice %1 {offsets = [0, 1, 0], sizes = [16, 16, 8], strides = [1, 1, 1]} : vector<18x18x8xbf16> to vector<16x16x8xbf16>
    %8 = vector.shape_cast %7 : vector<16x16x8xbf16> to vector<256x8xbf16>
    %c1 = arith.constant 1 : index
    %c0_6 = arith.constant 0 : index
    %c0_7 = arith.constant 0 : index
    %9 = vector.load %arg2[%c1, %c0_6, %c0_7] : memref<9x8x128xbf16, #tpu.memory_space<vmem>>, vector<1x8x128xbf16>
    %10 = vector.shape_cast %9 : vector<1x8x128xbf16> to vector<8x128xbf16>
    %cst_8 = arith.constant dense<0.000000e+00> : vector<256x128xf32>
    %11 = tpu.matmul %8, %10, %cst_8 {dimension_numbers = #tpu.dot_dimension_numbers<[1], [0], [0], [1], [0, 0, 1, 1], [], []>} : vector<256x8xbf16>, vector<8x128xbf16>, vector<256x128xf32> -> vector<256x128xf32>
    %12 = arith.addf %6, %11 : vector<256x128xf32>
    %13 = vector.extract_strided_slice %1 {offsets = [0, 2, 0], sizes = [16, 16, 8], strides = [1, 1, 1]} : vector<18x18x8xbf16> to vector<16x16x8xbf16>
    %14 = vector.shape_cast %13 : vector<16x16x8xbf16> to vector<256x8xbf16>
    %c2 = arith.constant 2 : index
    %c0_9 = arith.constant 0 : index
    %c0_10 = arith.constant 0 : index
    %15 = vector.load %arg2[%c2, %c0_9, %c0_10] : memref<9x8x128xbf16, #tpu.memory_space<vmem>>, vector<1x8x128xbf16>
    %16 = vector.shape_cast %15 : vector<1x8x128xbf16> to vector<8x128xbf16>
    %cst_11 = arith.constant dense<0.000000e+00> : vector<256x128xf32>
    %17 = tpu.matmul %14, %16, %cst_11 {dimension_numbers = #tpu.dot_dimension_numbers<[1], [0], [0], [1], [0, 0, 1, 1], [], []>} : vector<256x8xbf16>, vector<8x128xbf16>, vector<256x128xf32> -> vector<256x128xf32>
    %18 = arith.addf %12, %17 : vector<256x128xf32>
    %19 = vector.extract_strided_slice %1 {offsets = [1, 0, 0], sizes = [16, 16, 8], strides = [1, 1, 1]} : vector<18x18x8xbf16> to vector<16x16x8xbf16>
    %20 = vector.shape_cast %19 : vector<16x16x8xbf16> to vector<256x8xbf16>
    %c3 = arith.constant 3 : index
    %c0_12 = arith.constant 0 : index
    %c0_13 = arith.constant 0 : index
    %21 = vector.load %arg2[%c3, %c0_12, %c0_13] : memref<9x8x128xbf16, #tpu.memory_space<vmem>>, vector<1x8x128xbf16>
    %22 = vector.shape_cast %21 : vector<1x8x128xbf16> to vector<8x128xbf16>
    %cst_14 = arith.constant dense<0.000000e+00> : vector<256x128xf32>
    %23 = tpu.matmul %20, %22, %cst_14 {dimension_numbers = #tpu.dot_dimension_numbers<[1], [0], [0], [1], [0, 0, 1, 1], [], []>} : vector<256x8xbf16>, vector<8x128xbf16>, vector<256x128xf32> -> vector<256x128xf32>
    %24 = arith.addf %18, %23 : vector<256x128xf32>
    %25 = vector.extract_strided_slice %1 {offsets = [1, 1, 0], sizes = [16, 16, 8], strides = [1, 1, 1]} : vector<18x18x8xbf16> to vector<16x16x8xbf16>
    %26 = vector.shape_cast %25 : vector<16x16x8xbf16> to vector<256x8xbf16>
    %c4 = arith.constant 4 : index
    %c0_15 = arith.constant 0 : index
    %c0_16 = arith.constant 0 : index
    %27 = vector.load %arg2[%c4, %c0_15, %c0_16] : memref<9x8x128xbf16, #tpu.memory_space<vmem>>, vector<1x8x128xbf16>
    %28 = vector.shape_cast %27 : vector<1x8x128xbf16> to vector<8x128xbf16>
    %cst_17 = arith.constant dense<0.000000e+00> : vector<256x128xf32>
    %29 = tpu.matmul %26, %28, %cst_17 {dimension_numbers = #tpu.dot_dimension_numbers<[1], [0], [0], [1], [0, 0, 1, 1], [], []>} : vector<256x8xbf16>, vector<8x128xbf16>, vector<256x128xf32> -> vector<256x128xf32>
    %30 = arith.addf %24, %29 : vector<256x128xf32>
    %31 = vector.extract_strided_slice %1 {offsets = [1, 2, 0], sizes = [16, 16, 8], strides = [1, 1, 1]} : vector<18x18x8xbf16> to vector<16x16x8xbf16>
    %32 = vector.shape_cast %31 : vector<16x16x8xbf16> to vector<256x8xbf16>
    %c5 = arith.constant 5 : index
    %c0_18 = arith.constant 0 : index
    %c0_19 = arith.constant 0 : index
    %33 = vector.load %arg2[%c5, %c0_18, %c0_19] : memref<9x8x128xbf16, #tpu.memory_space<vmem>>, vector<1x8x128xbf16>
    %34 = vector.shape_cast %33 : vector<1x8x128xbf16> to vector<8x128xbf16>
    %cst_20 = arith.constant dense<0.000000e+00> : vector<256x128xf32>
    %35 = tpu.matmul %32, %34, %cst_20 {dimension_numbers = #tpu.dot_dimension_numbers<[1], [0], [0], [1], [0, 0, 1, 1], [], []>} : vector<256x8xbf16>, vector<8x128xbf16>, vector<256x128xf32> -> vector<256x128xf32>
    %36 = arith.addf %30, %35 : vector<256x128xf32>
    %37 = vector.extract_strided_slice %1 {offsets = [2, 0, 0], sizes = [16, 16, 8], strides = [1, 1, 1]} : vector<18x18x8xbf16> to vector<16x16x8xbf16>
    %38 = vector.shape_cast %37 : vector<16x16x8xbf16> to vector<256x8xbf16>
    %c6 = arith.constant 6 : index
    %c0_21 = arith.constant 0 : index
    %c0_22 = arith.constant 0 : index
    %39 = vector.load %arg2[%c6, %c0_21, %c0_22] : memref<9x8x128xbf16, #tpu.memory_space<vmem>>, vector<1x8x128xbf16>
    %40 = vector.shape_cast %39 : vector<1x8x128xbf16> to vector<8x128xbf16>
    %cst_23 = arith.constant dense<0.000000e+00> : vector<256x128xf32>
    %41 = tpu.matmul %38, %40, %cst_23 {dimension_numbers = #tpu.dot_dimension_numbers<[1], [0], [0], [1], [0, 0, 1, 1], [], []>} : vector<256x8xbf16>, vector<8x128xbf16>, vector<256x128xf32> -> vector<256x128xf32>
    %42 = arith.addf %36, %41 : vector<256x128xf32>
    %43 = vector.extract_strided_slice %1 {offsets = [2, 1, 0], sizes = [16, 16, 8], strides = [1, 1, 1]} : vector<18x18x8xbf16> to vector<16x16x8xbf16>
    %44 = vector.shape_cast %43 : vector<16x16x8xbf16> to vector<256x8xbf16>
    %c7 = arith.constant 7 : index
    %c0_24 = arith.constant 0 : index
    %c0_25 = arith.constant 0 : index
    %45 = vector.load %arg2[%c7, %c0_24, %c0_25] : memref<9x8x128xbf16, #tpu.memory_space<vmem>>, vector<1x8x128xbf16>
    %46 = vector.shape_cast %45 : vector<1x8x128xbf16> to vector<8x128xbf16>
    %cst_26 = arith.constant dense<0.000000e+00> : vector<256x128xf32>
    %47 = tpu.matmul %44, %46, %cst_26 {dimension_numbers = #tpu.dot_dimension_numbers<[1], [0], [0], [1], [0, 0, 1, 1], [], []>} : vector<256x8xbf16>, vector<8x128xbf16>, vector<256x128xf32> -> vector<256x128xf32>
    %48 = arith.addf %42, %47 : vector<256x128xf32>
    %49 = vector.extract_strided_slice %1 {offsets = [2, 2, 0], sizes = [16, 16, 8], strides = [1, 1, 1]} : vector<18x18x8xbf16> to vector<16x16x8xbf16>
    %50 = vector.shape_cast %49 : vector<16x16x8xbf16> to vector<256x8xbf16>
    %c8 = arith.constant 8 : index
    %c0_27 = arith.constant 0 : index
    %c0_28 = arith.constant 0 : index
    %51 = vector.load %arg2[%c8, %c0_27, %c0_28] : memref<9x8x128xbf16, #tpu.memory_space<vmem>>, vector<1x8x128xbf16>
    %52 = vector.shape_cast %51 : vector<1x8x128xbf16> to vector<8x128xbf16>
    %cst_29 = arith.constant dense<0.000000e+00> : vector<256x128xf32>
    %53 = tpu.matmul %50, %52, %cst_29 {dimension_numbers = #tpu.dot_dimension_numbers<[1], [0], [0], [1], [0, 0, 1, 1], [], []>} : vector<256x8xbf16>, vector<8x128xbf16>, vector<256x128xf32> -> vector<256x128xf32>
    %54 = arith.addf %48, %53 : vector<256x128xf32>
    %c0_30 = arith.constant 0 : index
    %c0_31 = arith.constant 0 : index
    %55 = vector.load %arg3[%c0_30, %c0_31] : memref<3x128xf32, #tpu.memory_space<vmem>>, vector<1x128xf32>
    %56 = vector.broadcast %55 : vector<1x128xf32> to vector<256x128xf32>
    %57 = arith.addf %54, %56 : vector<256x128xf32>
    %cst_32 = arith.constant 0.000000e+00 : f32
    %58 = vector.broadcast %cst_32 : f32 to vector<256x128xf32>
    %59 = arith.cmpf oge, %57, %58 : vector<256x128xf32>
    %cst_33 = arith.constant 2.000000e-01 : f32
    %60 = vector.broadcast %cst_33 : f32 to vector<256x128xf32>
    %61 = arith.mulf %60, %57 : vector<256x128xf32>
    %62 = arith.select %59, %57, %61 : vector<256x128xi1>, vector<256x128xf32>
    %c1_34 = arith.constant 1 : index
    %c0_35 = arith.constant 0 : index
    %63 = vector.load %arg3[%c1_34, %c0_35] : memref<3x128xf32, #tpu.memory_space<vmem>>, vector<1x128xf32>
    %64 = vector.broadcast %63 : vector<1x128xf32> to vector<256x128xf32>
    %65 = arith.mulf %62, %64 : vector<256x128xf32>
    %c2_36 = arith.constant 2 : index
    %c0_37 = arith.constant 0 : index
    %66 = vector.load %arg3[%c2_36, %c0_37] : memref<3x128xf32, #tpu.memory_space<vmem>>, vector<1x128xf32>
    %67 = vector.broadcast %66 : vector<1x128xf32> to vector<256x128xf32>
    %68 = arith.addf %65, %67 : vector<256x128xf32>
    %69 = vector.extract_strided_slice %1 {offsets = [1, 1, 0], sizes = [16, 16, 8], strides = [1, 1, 1]} : vector<18x18x8xbf16> to vector<16x16x8xbf16>
    %70 = vector.shape_cast %69 : vector<16x16x8xbf16> to vector<256x8xbf16>
    %71 = vector.extract_strided_slice %70 {offsets = [0, 4], sizes = [256, 1], strides = [1, 1]} : vector<256x8xbf16> to vector<256x1xbf16>
    %72 = arith.extf %71 : vector<256x1xbf16> to vector<256x1xf32>
    %73 = vector.broadcast %72 : vector<256x1xf32> to vector<256x128xf32>
    %74 = arith.mulf %68, %73 : vector<256x128xf32>
    %cst_38 = arith.constant 0.000000e+00 : f32
    %75 = vector.broadcast %cst_38 : f32 to vector<1x18x32xf32>
    %c0_39 = arith.constant 0 : index
    %c0_40 = arith.constant 0 : index
    %c0_41 = arith.constant 0 : index
    %76 = vector.load %arg7[%c0_39, %c0_40, %c0_41] : memref<18x18x32xf32, #tpu.memory_space<vmem>>, vector<1x18x32xf32>
    tpu.vector_store %arg7[%c0_39, %c0_40, %c0_41], %75 {strides = array<i32>} : memref<18x18x32xf32, #tpu.memory_space<vmem>>, vector<1x18x32xf32>,
    %cst_42 = arith.constant 0.000000e+00 : f32
    %77 = vector.broadcast %cst_42 : f32 to vector<1x18x32xf32>
    %c17 = arith.constant 17 : index
    %c0_43 = arith.constant 0 : index
    %c0_44 = arith.constant 0 : index
    %78 = vector.load %arg7[%c17, %c0_43, %c0_44] : memref<18x18x32xf32, #tpu.memory_space<vmem>>, vector<1x18x32xf32>
    tpu.vector_store %arg7[%c17, %c0_43, %c0_44], %77 {strides = array<i32>} : memref<18x18x32xf32, #tpu.memory_space<vmem>>, vector<1x18x32xf32>,
    %cst_45 = arith.constant 0.000000e+00 : f32
    %79 = vector.broadcast %cst_45 : f32 to vector<18x1x32xf32>
    %c0_46 = arith.constant 0 : index
    %c0_47 = arith.constant 0 : index
    %c0_48 = arith.constant 0 : index
    %80 = vector.load %arg7[%c0_46, %c0_47, %c0_48] : memref<18x18x32xf32, #tpu.memory_space<vmem>>, vector<18x1x32xf32>
    tpu.vector_store %arg7[%c0_46, %c0_47, %c0_48], %79 {strides = array<i32>} : memref<18x18x32xf32, #tpu.memory_space<vmem>>, vector<18x1x32xf32>,
    %cst_49 = arith.constant 0.000000e+00 : f32
    %81 = vector.broadcast %cst_49 : f32 to vector<18x1x32xf32>
    %c0_50 = arith.constant 0 : index
    %c17_51 = arith.constant 17 : index
    %c0_52 = arith.constant 0 : index
    %82 = vector.load %arg7[%c0_50, %c17_51, %c0_52] : memref<18x18x32xf32, #tpu.memory_space<vmem>>, vector<18x1x32xf32>
    tpu.vector_store %arg7[%c0_50, %c17_51, %c0_52], %81 {strides = array<i32>} : memref<18x18x32xf32, #tpu.memory_space<vmem>>, vector<18x1x32xf32>,
    %83 = vector.extract_strided_slice %74 {offsets = [0, 0], sizes = [256, 32], strides = [1, 1]} : vector<256x128xf32> to vector<256x32xf32>
    %84 = vector.shape_cast %83 : vector<256x32xf32> to vector<16x16x32xf32>
    %c1_53 = arith.constant 1 : index
    %c1_54 = arith.constant 1 : index
    %c0_55 = arith.constant 0 : index
    %85 = vector.load %arg7[%c1_53, %c1_54, %c0_55] : memref<18x18x32xf32, #tpu.memory_space<vmem>>, vector<16x16x32xf32>
    tpu.vector_store %arg7[%c1_53, %c1_54, %c0_55], %84 {strides = array<i32>} : memref<18x18x32xf32, #tpu.memory_space<vmem>>, vector<16x16x32xf32>,
    %c0_56 = arith.constant 0 : index
    %c0_57 = arith.constant 0 : index
    %c0_58 = arith.constant 0 : index
    %86 = vector.load %arg7[%c0_56, %c0_57, %c0_58] : memref<18x18x32xf32, #tpu.memory_space<vmem>>, vector<18x18x32xf32>
    %87 = vector.extract_strided_slice %86 {offsets = [0, 0, 0], sizes = [16, 16, 32], strides = [1, 1, 1]} : vector<18x18x32xf32> to vector<16x16x32xf32>
    %88 = vector.shape_cast %87 : vector<16x16x32xf32> to vector<256x32xf32>
    %89 = arith.truncf %88 : vector<256x32xf32> to vector<256x32xbf16>
    %c0_59 = arith.constant 0 : index
    %c0_60 = arith.constant 0 : index
    %c0_61 = arith.constant 0 : index
    %90 = vector.load %arg4[%c0_59, %c0_60, %c0_61] : memref<9x32x128xbf16, #tpu.memory_space<vmem>>, vector<1x32x128xbf16>
    %91 = vector.shape_cast %90 : vector<1x32x128xbf16> to vector<32x128xbf16>
    %cst_62 = arith.constant dense<0.000000e+00> : vector<256x128xf32>
    %92 = tpu.matmul %89, %91, %cst_62 {dimension_numbers = #tpu.dot_dimension_numbers<[1], [0], [0], [1], [0, 0, 1, 1], [], []>} : vector<256x32xbf16>, vector<32x128xbf16>, vector<256x128xf32> -> vector<256x128xf32>
    %93 = vector.extract_strided_slice %86 {offsets = [0, 1, 0], sizes = [16, 16, 32], strides = [1, 1, 1]} : vector<18x18x32xf32> to vector<16x16x32xf32>
    %94 = vector.shape_cast %93 : vector<16x16x32xf32> to vector<256x32xf32>
    %95 = arith.truncf %94 : vector<256x32xf32> to vector<256x32xbf16>
    %c1_63 = arith.constant 1 : index
    %c0_64 = arith.constant 0 : index
    %c0_65 = arith.constant 0 : index
    %96 = vector.load %arg4[%c1_63, %c0_64, %c0_65] : memref<9x32x128xbf16, #tpu.memory_space<vmem>>, vector<1x32x128xbf16>
    %97 = vector.shape_cast %96 : vector<1x32x128xbf16> to vector<32x128xbf16>
    %cst_66 = arith.constant dense<0.000000e+00> : vector<256x128xf32>
    %98 = tpu.matmul %95, %97, %cst_66 {dimension_numbers = #tpu.dot_dimension_numbers<[1], [0], [0], [1], [0, 0, 1, 1], [], []>} : vector<256x32xbf16>, vector<32x128xbf16>, vector<256x128xf32> -> vector<256x128xf32>
    %99 = arith.addf %92, %98 : vector<256x128xf32>
    %100 = vector.extract_strided_slice %86 {offsets = [0, 2, 0], sizes = [16, 16, 32], strides = [1, 1, 1]} : vector<18x18x32xf32> to vector<16x16x32xf32>
    %101 = vector.shape_cast %100 : vector<16x16x32xf32> to vector<256x32xf32>
    %102 = arith.truncf %101 : vector<256x32xf32> to vector<256x32xbf16>
    %c2_67 = arith.constant 2 : index
    %c0_68 = arith.constant 0 : index
    %c0_69 = arith.constant 0 : index
    %103 = vector.load %arg4[%c2_67, %c0_68, %c0_69] : memref<9x32x128xbf16, #tpu.memory_space<vmem>>, vector<1x32x128xbf16>
    %104 = vector.shape_cast %103 : vector<1x32x128xbf16> to vector<32x128xbf16>
    %cst_70 = arith.constant dense<0.000000e+00> : vector<256x128xf32>
    %105 = tpu.matmul %102, %104, %cst_70 {dimension_numbers = #tpu.dot_dimension_numbers<[1], [0], [0], [1], [0, 0, 1, 1], [], []>} : vector<256x32xbf16>, vector<32x128xbf16>, vector<256x128xf32> -> vector<256x128xf32>
    %106 = arith.addf %99, %105 : vector<256x128xf32>
    %107 = vector.extract_strided_slice %86 {offsets = [1, 0, 0], sizes = [16, 16, 32], strides = [1, 1, 1]} : vector<18x18x32xf32> to vector<16x16x32xf32>
    %108 = vector.shape_cast %107 : vector<16x16x32xf32> to vector<256x32xf32>
    %109 = arith.truncf %108 : vector<256x32xf32> to vector<256x32xbf16>
    %c3_71 = arith.constant 3 : index
    %c0_72 = arith.constant 0 : index
    %c0_73 = arith.constant 0 : index
    %110 = vector.load %arg4[%c3_71, %c0_72, %c0_73] : memref<9x32x128xbf16, #tpu.memory_space<vmem>>, vector<1x32x128xbf16>
    %111 = vector.shape_cast %110 : vector<1x32x128xbf16> to vector<32x128xbf16>
    %cst_74 = arith.constant dense<0.000000e+00> : vector<256x128xf32>
    %112 = tpu.matmul %109, %111, %cst_74 {dimension_numbers = #tpu.dot_dimension_numbers<[1], [0], [0], [1], [0, 0, 1, 1], [], []>} : vector<256x32xbf16>, vector<32x128xbf16>, vector<256x128xf32> -> vector<256x128xf32>
    %113 = arith.addf %106, %112 : vector<256x128xf32>
    %114 = vector.extract_strided_slice %86 {offsets = [1, 1, 0], sizes = [16, 16, 32], strides = [1, 1, 1]} : vector<18x18x32xf32> to vector<16x16x32xf32>
    %115 = vector.shape_cast %114 : vector<16x16x32xf32> to vector<256x32xf32>
    %116 = arith.truncf %115 : vector<256x32xf32> to vector<256x32xbf16>
    %c4_75 = arith.constant 4 : index
    %c0_76 = arith.constant 0 : index
    %c0_77 = arith.constant 0 : index
    %117 = vector.load %arg4[%c4_75, %c0_76, %c0_77] : memref<9x32x128xbf16, #tpu.memory_space<vmem>>, vector<1x32x128xbf16>
    %118 = vector.shape_cast %117 : vector<1x32x128xbf16> to vector<32x128xbf16>
    %cst_78 = arith.constant dense<0.000000e+00> : vector<256x128xf32>
    %119 = tpu.matmul %116, %118, %cst_78 {dimension_numbers = #tpu.dot_dimension_numbers<[1], [0], [0], [1], [0, 0, 1, 1], [], []>} : vector<256x32xbf16>, vector<32x128xbf16>, vector<256x128xf32> -> vector<256x128xf32>
    %120 = arith.addf %113, %119 : vector<256x128xf32>
    %121 = vector.extract_strided_slice %86 {offsets = [1, 2, 0], sizes = [16, 16, 32], strides = [1, 1, 1]} : vector<18x18x32xf32> to vector<16x16x32xf32>
    %122 = vector.shape_cast %121 : vector<16x16x32xf32> to vector<256x32xf32>
    %123 = arith.truncf %122 : vector<256x32xf32> to vector<256x32xbf16>
    %c5_79 = arith.constant 5 : index
    %c0_80 = arith.constant 0 : index
    %c0_81 = arith.constant 0 : index
    %124 = vector.load %arg4[%c5_79, %c0_80, %c0_81] : memref<9x32x128xbf16, #tpu.memory_space<vmem>>, vector<1x32x128xbf16>
    %125 = vector.shape_cast %124 : vector<1x32x128xbf16> to vector<32x128xbf16>
    %cst_82 = arith.constant dense<0.000000e+00> : vector<256x128xf32>
    %126 = tpu.matmul %123, %125, %cst_82 {dimension_numbers = #tpu.dot_dimension_numbers<[1], [0], [0], [1], [0, 0, 1, 1], [], []>} : vector<256x32xbf16>, vector<32x128xbf16>, vector<256x128xf32> -> vector<256x128xf32>
    %127 = arith.addf %120, %126 : vector<256x128xf32>
    %128 = vector.extract_strided_slice %86 {offsets = [2, 0, 0], sizes = [16, 16, 32], strides = [1, 1, 1]} : vector<18x18x32xf32> to vector<16x16x32xf32>
    %129 = vector.shape_cast %128 : vector<16x16x32xf32> to vector<256x32xf32>
    %130 = arith.truncf %129 : vector<256x32xf32> to vector<256x32xbf16>
    %c6_83 = arith.constant 6 : index
    %c0_84 = arith.constant 0 : index
    %c0_85 = arith.constant 0 : index
    %131 = vector.load %arg4[%c6_83, %c0_84, %c0_85] : memref<9x32x128xbf16, #tpu.memory_space<vmem>>, vector<1x32x128xbf16>
    %132 = vector.shape_cast %131 : vector<1x32x128xbf16> to vector<32x128xbf16>
    %cst_86 = arith.constant dense<0.000000e+00> : vector<256x128xf32>
    %133 = tpu.matmul %130, %132, %cst_86 {dimension_numbers = #tpu.dot_dimension_numbers<[1], [0], [0], [1], [0, 0, 1, 1], [], []>} : vector<256x32xbf16>, vector<32x128xbf16>, vector<256x128xf32> -> vector<256x128xf32>
    %134 = arith.addf %127, %133 : vector<256x128xf32>
    %135 = vector.extract_strided_slice %86 {offsets = [2, 1, 0], sizes = [16, 16, 32], strides = [1, 1, 1]} : vector<18x18x32xf32> to vector<16x16x32xf32>
    %136 = vector.shape_cast %135 : vector<16x16x32xf32> to vector<256x32xf32>
    %137 = arith.truncf %136 : vector<256x32xf32> to vector<256x32xbf16>
    %c7_87 = arith.constant 7 : index
    %c0_88 = arith.constant 0 : index
    %c0_89 = arith.constant 0 : index
    %138 = vector.load %arg4[%c7_87, %c0_88, %c0_89] : memref<9x32x128xbf16, #tpu.memory_space<vmem>>, vector<1x32x128xbf16>
    %139 = vector.shape_cast %138 : vector<1x32x128xbf16> to vector<32x128xbf16>
    %cst_90 = arith.constant dense<0.000000e+00> : vector<256x128xf32>
    %140 = tpu.matmul %137, %139, %cst_90 {dimension_numbers = #tpu.dot_dimension_numbers<[1], [0], [0], [1], [0, 0, 1, 1], [], []>} : vector<256x32xbf16>, vector<32x128xbf16>, vector<256x128xf32> -> vector<256x128xf32>
    %141 = arith.addf %134, %140 : vector<256x128xf32>
    %142 = vector.extract_strided_slice %86 {offsets = [2, 2, 0], sizes = [16, 16, 32], strides = [1, 1, 1]} : vector<18x18x32xf32> to vector<16x16x32xf32>
    %143 = vector.shape_cast %142 : vector<16x16x32xf32> to vector<256x32xf32>
    %144 = arith.truncf %143 : vector<256x32xf32> to vector<256x32xbf16>
    %c8_91 = arith.constant 8 : index
    %c0_92 = arith.constant 0 : index
    %c0_93 = arith.constant 0 : index
    %145 = vector.load %arg4[%c8_91, %c0_92, %c0_93] : memref<9x32x128xbf16, #tpu.memory_space<vmem>>, vector<1x32x128xbf16>
    %146 = vector.shape_cast %145 : vector<1x32x128xbf16> to vector<32x128xbf16>
    %cst_94 = arith.constant dense<0.000000e+00> : vector<256x128xf32>
    %147 = tpu.matmul %144, %146, %cst_94 {dimension_numbers = #tpu.dot_dimension_numbers<[1], [0], [0], [1], [0, 0, 1, 1], [], []>} : vector<256x32xbf16>, vector<32x128xbf16>, vector<256x128xf32> -> vector<256x128xf32>
    %148 = arith.addf %141, %147 : vector<256x128xf32>
    %c0_95 = arith.constant 0 : index
    %c0_96 = arith.constant 0 : index
    %149 = vector.load %arg5[%c0_95, %c0_96] : memref<3x128xf32, #tpu.memory_space<vmem>>, vector<1x128xf32>
    %150 = vector.broadcast %149 : vector<1x128xf32> to vector<256x128xf32>
    %151 = arith.addf %148, %150 : vector<256x128xf32>
    %cst_97 = arith.constant 0.000000e+00 : f32
    %152 = vector.broadcast %cst_97 : f32 to vector<256x128xf32>
    %153 = arith.cmpf oge, %151, %152 : vector<256x128xf32>
    %cst_98 = arith.constant 2.000000e-01 : f32
    %154 = vector.broadcast %cst_98 : f32 to vector<256x128xf32>
    %155 = arith.mulf %154, %151 : vector<256x128xf32>
    %156 = arith.select %153, %151, %155 : vector<256x128xi1>, vector<256x128xf32>
    %c1_99 = arith.constant 1 : index
    %c0_100 = arith.constant 0 : index
    %157 = vector.load %arg5[%c1_99, %c0_100] : memref<3x128xf32, #tpu.memory_space<vmem>>, vector<1x128xf32>
    %158 = vector.broadcast %157 : vector<1x128xf32> to vector<256x128xf32>
    %159 = arith.mulf %156, %158 : vector<256x128xf32>
    %c2_101 = arith.constant 2 : index
    %c0_102 = arith.constant 0 : index
    %160 = vector.load %arg5[%c2_101, %c0_102] : memref<3x128xf32, #tpu.memory_space<vmem>>, vector<1x128xf32>
    %161 = vector.broadcast %160 : vector<1x128xf32> to vector<256x128xf32>
    %162 = arith.addf %159, %161 : vector<256x128xf32>
    %163 = vector.shape_cast %162 : vector<256x128xf32> to vector<16x16x128xf32>
    %c0_103 = arith.constant 0 : index
    %c0_104 = arith.constant 0 : index
    %c0_105 = arith.constant 0 : index
    %c0_106 = arith.constant 0 : index
    %164 = vector.load %arg6[%c0_103, %c0_104, %c0_105, %c0_106] : memref<1x16x16x128xf32, #tpu.memory_space<vmem>>, vector<1x16x16x128xf32>
    %165 = vector.shape_cast %164 : vector<1x16x16x128xf32> to vector<16x16x128xf32>
    %166 = vector.shape_cast %163 : vector<16x16x128xf32> to vector<1x16x16x128xf32>
    tpu.vector_store %arg6[%c0_103, %c0_104, %c0_105, %c0_106], %166 {strides = array<i32>} : memref<1x16x16x128xf32, #tpu.memory_space<vmem>>, vector<1x16x16x128xf32>,
    return
  }
  func.func @transform_0(%arg0: i32) -> (i32, i32, i32, i32) {
    %c0_i32 = arith.constant 0 : i32
    %c0_i32_0 = arith.constant 0 : i32
    %c0_i32_1 = arith.constant 0 : i32
    %c0_i32_2 = arith.constant 0 : i32
    return %arg0, %c0_i32, %c0_i32_0, %c0_i32_1 : i32, i32, i32, i32
  }
  func.func @transform_1(%arg0: i32) -> (i32, i32, i32) {
    %c0_i32 = arith.constant 0 : i32
    %c0_i32_0 = arith.constant 0 : i32
    %c0_i32_1 = arith.constant 0 : i32
    %c0_i32_2 = arith.constant 0 : i32
    return %c0_i32, %c0_i32_0, %c0_i32_1 : i32, i32, i32
  }
  func.func @transform_2(%arg0: i32) -> (i32, i32) {
    %c0_i32 = arith.constant 0 : i32
    %c0_i32_0 = arith.constant 0 : i32
    %c0_i32_1 = arith.constant 0 : i32
    return %c0_i32, %c0_i32_0 : i32, i32
  }
  func.func @transform_3(%arg0: i32) -> (i32, i32, i32) {
    %c0_i32 = arith.constant 0 : i32
    %c0_i32_0 = arith.constant 0 : i32
    %c0_i32_1 = arith.constant 0 : i32
    %c0_i32_2 = arith.constant 0 : i32
    return %c0_i32, %c0_i32_0, %c0_i32_1 : i32, i32, i32
  }
  func.func @transform_4(%arg0: i32) -> (i32, i32) {
    %c0_i32 = arith.constant 0 : i32
    %c0_i32_0 = arith.constant 0 : i32
    %c0_i32_1 = arith.constant 0 : i32
    return %c0_i32, %c0_i32_0 : i32, i32
  }
  func.func @transform_5(%arg0: i32) -> (i32, i32, i32, i32) {
    %c0_i32 = arith.constant 0 : i32
    %c0_i32_0 = arith.constant 0 : i32
    %c0_i32_1 = arith.constant 0 : i32
    %c0_i32_2 = arith.constant 0 : i32
    return %arg0, %c0_i32, %c0_i32_0, %c0_i32_1 : i32, i32, i32, i32
  }
}

</mosaic_0001>

<llo_original>
// kernel: encoder_block_forward.1
$region0: #{encoder_block_forward.1}
  #allocation0 [shape = 'u32[]', space=smem, size = 0x4, offset = 0x4, fixed_abs, tag = 'smem constant byte address 0x4 - core index']
  #allocation1 [shape = 'u32[72,128]{1,0:T(1,128)}', space=vmem, size = 0x9000, scoped, tag = 'internal scratch']
  #allocation2 [shape = 'f32[18,18,32]{2,1,0:T(8,128)}', space=vmem, size = 0x36000, scoped, tag = 'scratch operand']
  %s0 = inlined_call_operand.vmem [shape: bf16[2,18,18,8], index: 0, kind: input, shape index: {}]
  %s1 = inlined_call_operand.vmem [shape: bf16[9,8,128], index: 1, kind: input, shape index: {}]
  %s2 = inlined_call_operand.vmem [shape: f32[3,128], index: 2, kind: input, shape index: {}]
  %s3 = inlined_call_operand.vmem [shape: bf16[9,32,128], index: 3, kind: input, shape index: {}]
  %s4 = inlined_call_operand.vmem [shape: f32[3,128], index: 4, kind: input, shape index: {}]
  %s5 = inlined_call_operand.hbm [shape: f32[2,16,16,128], index: 5, kind: output, shape index: {}]
  %s6 = sld [smem:[#allocation0]]
  $region53: #{encoder_block_forward.1} parent=0
    _
  %s8 = ssub.s32 1, %s6
  %s9 = scalar_select 0, %s8, %s6
  $region1: #{encoder_block_forward.1} parent=0
    #allocation3 [shape = 'u8[262144]{0}', space=vmem, size = 0x40000, scoped, tag = 'output window, operand 0']
    #allocation4 [shape = 's32[2]{0}', space=sflag, size = 0x8, scoped, tag = 'scoped memory for encoder_block_forward.1']
    %10 = vsyncpa [#allocation4], 0
    %s11 = scalar_lea.sflag [#allocation4], 1
    %12 = vsyncpa %s11, 0
    loop: start=0, step=1, limit=4
    $region2: #{encoder_block_forward.1} parent=1 // loop_pre_header
      _
    $region3: #{encoder_block_forward.1} parent=1 // loop_header
      %s14 = sphi 0, %s18
      %p15 = scmp.ge.s32.totalorder %s14, 4
      %s24 = sphi 0, %s26
      %s27 = sphi 0, %s24
      %s28 = sphi 0, %s27
      %s44 = sphi 0, %s28
      %s48 = sphi 0, %s48
      %s50 = sphi 0, %s48
      %s51 = sphi 0, %s50
      %s65 = sphi 0, %s51
      %s69 = sphi 0, %s69
      %s71 = sphi 0, %s69
      %s72 = sphi 0, %s71
      %s86 = sphi 0, %s72
      %s90 = sphi 0, %s90
      %s92 = sphi 0, %s90
      %s93 = sphi 0, %s92
      %s107 = sphi 0, %s93
      %s111 = sphi 0, %s111
      %s113 = sphi 0, %s111
      %s114 = sphi 0, %s113
      %s128 = sphi 0, %s114
      %s134 = sphi 0, %s136
      %s137 = sphi 0, %s134
      %s138 = sphi 0, %s137
      %s154 = sphi 0, %s138
    $region4: #{encoder_block_forward.1} parent=1 // loop_header_branch
      %17 = sbr.rel (%p15) target = $region8
    $region5: #{encoder_block_forward.1} parent=1 // loop_body
      %s19 = ssub.s32 %s14, 1
      %s20 = ssub.s32 %s14, 2
      %s21 = sadd.s32 %s14, 1
      %s22 = ssub.s32 %s14, %s21
      %p23 = scmp.eq.s32.totalorder %s22, 0
      %s25 = sadd.s32 %s24, 1
      %s26 = scalar_select %p23, %s24, %s25
      %p29 = pneg %p23
      %p30 = scmp.eq.s32.totalorder %s14, 1
      %p31 = por %p29, %p30
      %p32 = scmp.ne.s32.totalorder %s24, %s27
      %p33 = scmp.eq.s32.totalorder %s14, 0
      %p34 = por %p32, %p33
      %p35 = scmp.ne.s32.totalorder %s24, %s27
      %p36 = scmp.eq.s32.totalorder %s19, 1
      %p37 = por %p35, %p36
      %p38 = scmp.ne.s32.totalorder %s27, %s28
      %p39 = scmp.eq.s32.totalorder %s19, 0
      %p40 = por %p38, %p39
      %p41 = scmp.ne.s32.totalorder %s27, %s28
      %p42 = scmp.eq.s32.totalorder %s20, 1
      %p43 = por %p41, %p42
      %p45 = scmp.ne.s32.totalorder %s28, %s44
      %p46 = scmp.eq.s32.totalorder %s20, 0
      %p47 = por %p45, %p46
      %s49 = sadd.s32 %s48, 1
      %p52 = scmp.eq.s32.totalorder %s14, 1
      %p53 = scmp.ne.s32.totalorder %s48, %s50
      %p54 = scmp.eq.s32.totalorder %s14, 0
      %p55 = por %p53, %p54
      %p56 = scmp.ne.s32.totalorder %s48, %s50
      %p57 = scmp.eq.s32.totalorder %s19, 1
      %p58 = por %p56, %p57
      %p59 = scmp.ne.s32.totalorder %s50, %s51
      %p60 = scmp.eq.s32.totalorder %s19, 0
      %p61 = por %p59, %p60
      %p62 = scmp.ne.s32.totalorder %s50, %s51
      %p63 = scmp.eq.s32.totalorder %s20, 1
      %p64 = por %p62, %p63
      %p66 = scmp.ne.s32.totalorder %s51, %s65
      %p67 = scmp.eq.s32.totalorder %s20, 0
      %p68 = por %p66, %p67
      %s70 = sadd.s32 %s69, 1
      %p73 = scmp.eq.s32.totalorder %s14, 1
      %p74 = scmp.ne.s32.totalorder %s69, %s71
      %p75 = scmp.eq.s32.totalorder %s14, 0
      %p76 = por %p74, %p75
      %p77 = scmp.ne.s32.totalorder %s69, %s71
      %p78 = scmp.eq.s32.totalorder %s19, 1
      %p79 = por %p77, %p78
      %p80 = scmp.ne.s32.totalorder %s71, %s72
      %p81 = scmp.eq.s32.totalorder %s19, 0
      %p82 = por %p80, %p81
      %p83 = scmp.ne.s32.totalorder %s71, %s72
      %p84 = scmp.eq.s32.totalorder %s20, 1
      %p85 = por %p83, %p84
      %p87 = scmp.ne.s32.totalorder %s72, %s86
      %p88 = scmp.eq.s32.totalorder %s20, 0
      %p89 = por %p87, %p88
      %s91 = sadd.s32 %s90, 1
      %p94 = scmp.eq.s32.totalorder %s14, 1
      %p95 = scmp.ne.s32.totalorder %s90, %s92
      %p96 = scmp.eq.s32.totalorder %s14, 0
      %p97 = por %p95, %p96
      %p98 = scmp.ne.s32.totalorder %s90, %s92
      %p99 = scmp.eq.s32.totalorder %s19, 1
      %p100 = por %p98, %p99
      %p101 = scmp.ne.s32.totalorder %s92, %s93
      %p102 = scmp.eq.s32.totalorder %s19, 0
      %p103 = por %p101, %p102
      %p104 = scmp.ne.s32.totalorder %s92, %s93
      %p105 = scmp.eq.s32.totalorder %s20, 1
      %p106 = por %p104, %p105
      %p108 = scmp.ne.s32.totalorder %s93, %s107
      %p109 = scmp.eq.s32.totalorder %s20, 0
      %p110 = por %p108, %p109
      %s112 = sadd.s32 %s111, 1
      %p115 = scmp.eq.s32.totalorder %s14, 1
      %p116 = scmp.ne.s32.totalorder %s111, %s113
      %p117 = scmp.eq.s32.totalorder %s14, 0
      %p118 = por %p116, %p117
      %p119 = scmp.ne.s32.totalorder %s111, %s113
      %p120 = scmp.eq.s32.totalorder %s19, 1
      %p121 = por %p119, %p120
      %p122 = scmp.ne.s32.totalorder %s113, %s114
      %p123 = scmp.eq.s32.totalorder %s19, 0
      %p124 = por %p122, %p123
      %p125 = scmp.ne.s32.totalorder %s113, %s114
      %p126 = scmp.eq.s32.totalorder %s20, 1
      %p127 = por %p125, %p126
      %p129 = scmp.ne.s32.totalorder %s114, %s128
      %p130 = scmp.eq.s32.totalorder %s20, 0
      %p131 = por %p129, %p130
      %s132 = ssub.s32 %s14, %s21
      %p133 = scmp.eq.s32.totalorder %s132, 0
      %s135 = sadd.s32 %s134, 1
      %s136 = scalar_select %p133, %s134, %s135
      %p139 = pneg %p133
      %p140 = scmp.eq.s32.totalorder %s14, 1
      %p141 = por %p139, %p140
      %p142 = scmp.ne.s32.totalorder %s134, %s137
      %p143 = scmp.eq.s32.totalorder %s14, 0
      %p144 = por %p142, %p143
      %p145 = scmp.ne.s32.totalorder %s134, %s137
      %p146 = scmp.eq.s32.totalorder %s19, 1
      %p147 = por %p145, %p146
      %p148 = scmp.ne.s32.totalorder %s137, %s138
      %p149 = scmp.eq.s32.totalorder %s19, 0
      %p150 = por %p148, %p149
      %p151 = scmp.ne.s32.totalorder %s137, %s138
      %p152 = scmp.eq.s32.totalorder %s20, 1
      %p153 = por %p151, %p152
      %p155 = scmp.ne.s32.totalorder %s138, %s154
      %p156 = scmp.eq.s32.totalorder %s20, 0
      %p157 = por %p155, %p156
      %p158 = scmp.le.s32.totalorder 1, %s14
      %p159 = scmp.lt.s32.totalorder %s14, 3
      %p160 = pnand %p158, %p159
      %p161 = pneg %p160
      // Predicated region
      $region9: #{encoder_block_forward.1} parent=5 // pred_check
        _
      $region10: #{encoder_block_forward.1} parent=5 // pred_check_branch
        %163 = sbr.rel (%p160) target = $region12
      $region11: #{encoder_block_forward.1} parent=5 // pred_region
        %s164 = ssub.s32 %s14, 1
        // Predicated region
        $region13: #{encoder_block_forward.1} parent=11 // pred_check
          %p165 = pneg %p61
        $region14: #{encoder_block_forward.1} parent=11 // pred_check_branch
          %167 = sbr.rel (%p165) target = $region16
        $region15: #{encoder_block_forward.1} parent=11 // pred_region
          _
        $region16: #{encoder_block_forward.1} parent=11 // pred_fallthru
          _
        // Predicated region
        $region17: #{encoder_block_forward.1} parent=11 // pred_check
          %p168 = pneg %p82
        $region18: #{encoder_block_forward.1} parent=11 // pred_check_branch
          %170 = sbr.rel (%p168) target = $region20
        $region19: #{encoder_block_forward.1} parent=11 // pred_region
          _
        $region20: #{encoder_block_forward.1} parent=11 // pred_fallthru
          _
        // Predicated region
        $region21: #{encoder_block_forward.1} parent=11 // pred_check
          %p171 = pneg %p103
        $region22: #{encoder_block_forward.1} parent=11 // pred_check_branch
          %173 = sbr.rel (%p171) target = $region24
        $region23: #{encoder_block_forward.1} parent=11 // pred_region
          _
        $region24: #{encoder_block_forward.1} parent=11 // pred_fallthru
          _
        // Predicated region
        $region25: #{encoder_block_forward.1} parent=11 // pred_check
          %p174 = pneg %p124
        $region26: #{encoder_block_forward.1} parent=11 // pred_check_branch
          %176 = sbr.rel (%p174) target = $region28
        $region27: #{encoder_block_forward.1} parent=11 // pred_region
          _
        $region28: #{encoder_block_forward.1} parent=11 // pred_fallthru
          _
      $region12: #{encoder_block_forward.1} parent=5 // pred_fallthru
        _
      %p177 = scmp.lt.s32.totalorder %s14, 2
      // Predicated region
      $region29: #{encoder_block_forward.1} parent=5 // pred_check
        %p178 = pneg %p177
      $region30: #{encoder_block_forward.1} parent=5 // pred_check_branch
        %180 = sbr.rel (%p178) target = $region32
      $region31: #{encoder_block_forward.1} parent=5 // pred_region
        // Predicated region
        $region33: #{encoder_block_forward.1} parent=31 // pred_check
          %p181 = pneg %p34
        $region34: #{encoder_block_forward.1} parent=31 // pred_check_branch
          %183 = sbr.rel (%p181) target = $region36
        $region35: #{encoder_block_forward.1} parent=31 // pred_region
          %p184 = scmp.lt.s32.totalorder %s14, 1
          %s185 = scalar_select %p184, %s14, 1
          %s186 = smul.addr %s185, 54
          %s187 = smul.addr %s186, 4
          %s188 = scalar_lea.vmem %s0, %s187
        $region36: #{encoder_block_forward.1} parent=31 // pred_fallthru
          _
      $region32: #{encoder_block_forward.1} parent=5 // pred_fallthru
        _
      %p189 = scmp.le.s32.totalorder 1, %s14
      %p190 = scmp.lt.s32.totalorder %s14, 3
      %p191 = pnand %p189, %p190
      %p192 = pneg %p191
      // Predicated region
      $region37: #{encoder_block_forward.1} parent=5 // pred_check
        _
      $region38: #{encoder_block_forward.1} parent=5 // pred_check_branch
        %194 = sbr.rel (%p191) target = $region40
      $region39: #{encoder_block_forward.1} parent=5 // pred_region
        %s195 = ssub.s32 %s14, 1
        %p196 = scmp.lt.s32.totalorder %s19, 1
        %s197 = scalar_select %p196, %s19, 1
        %s198 = smul.addr %s197, 54
        %s199 = smul.addr %s198, 4
        %s200 = scalar_lea.vmem %s0, %s199
        %p201 = pneg %p40
        %p202 = pneg %p37
        %p203 = pneg %p61
        %p204 = pneg %p58
        %p205 = pneg %p82
        %p206 = pneg %p79
        %p207 = pneg %p103
        %p208 = pneg %p100
        %p209 = pneg %p124
        %p210 = pneg %p121
        %p211 = pneg %p150
        %p212 = pneg %p147
        %s213 = sand.u32 %s137, 1
        %s214 = scalar_lea.sflag [#allocation4], %s213
        %s215 = sand.u32 %s137, 1
        %s216 = smul.addr %s215, 256
        %s217 = scalar_lea.vmem [#allocation3], %s216
        %p218 = scmp.lt.s32.totalorder %s19, 1
        %s219 = scalar_select %p218, %s19, 1
        %s220 = smul.addr %s219, 54
        %s221 = smul.addr %s220, 4
        %s222 = scalar_lea.vmem %s0, %s221
        %v224 = vld [vmem:[%s222] sm:$0xf]
        %v225 = vld [vmem:[%s222 + $0x4] sm:$0xf]
        %v226 = vld [vmem:[%s222 + $0x8] sm:$0x1]
        %v227 = vld [vmem:[%s222 + $0xc] sm:$0xf]
        %v228 = vld [vmem:[%s222 + $0x10] sm:$0xf]
        %v229 = vld [vmem:[%s222 + $0x14] sm:$0x1]
        %v230 = vld [vmem:[%s222 + $0x18] sm:$0xf]
        %v231 = vld [vmem:[%s222 + $0x1c] sm:$0xf]
        %v232 = vld [vmem:[%s222 + $0x20] sm:$0x1]
        %v233 = vld [vmem:[%s222 + $0x24] sm:$0xf]
        %v234 = vld [vmem:[%s222 + $0x28] sm:$0xf]
        %v235 = vld [vmem:[%s222 + $0x2c] sm:$0x1]
        %v236 = vld [vmem:[%s222 + $0x30] sm:$0xf]
        %v237 = vld [vmem:[%s222 + $0x34] sm:$0xf]
        %v238 = vld [vmem:[%s222 + $0x38] sm:$0x1]
        %v239 = vld [vmem:[%s222 + $0x3c] sm:$0xf]
        %v240 = vld [vmem:[%s222 + $0x40] sm:$0xf]
        %v241 = vld [vmem:[%s222 + $0x44] sm:$0x1]
        %v242 = vld [vmem:[%s222 + $0x48] sm:$0xf]
        %v243 = vld [vmem:[%s222 + $0x4c] sm:$0xf]
        %v244 = vld [vmem:[%s222 + $0x50] sm:$0x1]
        %v245 = vld [vmem:[%s222 + $0x54] sm:$0xf]
        %v246 = vld [vmem:[%s222 + $0x58] sm:$0xf]
        %v247 = vld [vmem:[%s222 + $0x5c] sm:$0x1]
        %v248 = vld [vmem:[%s222 + $0x60] sm:$0xf]
        %v249 = vld [vmem:[%s222 + $0x64] sm:$0xf]
        %v250 = vld [vmem:[%s222 + $0x68] sm:$0x1]
        %v251 = vld [vmem:[%s222 + $0x6c] sm:$0xf]
        %v252 = vld [vmem:[%s222 + $0x70] sm:$0xf]
        %v253 = vld [vmem:[%s222 + $0x74] sm:$0x1]
        %v254 = vld [vmem:[%s222 + $0x78] sm:$0xf]
        %v255 = vld [vmem:[%s222 + $0x7c] sm:$0xf]
        %v256 = vld [vmem:[%s222 + $0x80] sm:$0x1]
        %v257 = vld [vmem:[%s222 + $0x84] sm:$0xf]
        %v258 = vld [vmem:[%s222 + $0x88] sm:$0xf]
        %v259 = vld [vmem:[%s222 + $0x8c] sm:$0x1]
        %v260 = vld [vmem:[%s222 + $0x90] sm:$0xf]
        %v261 = vld [vmem:[%s222 + $0x94] sm:$0xf]
        %v262 = vld [vmem:[%s222 + $0x98] sm:$0x1]
        %v263 = vld [vmem:[%s222 + $0x9c] sm:$0xf]
        %v264 = vld [vmem:[%s222 + $0xa0] sm:$0xf]
        %v265 = vld [vmem:[%s222 + $0xa4] sm:$0x1]
        %v266 = vld [vmem:[%s222 + $0xa8] sm:$0xf]
        %v267 = vld [vmem:[%s222 + $0xac] sm:$0xf]
        %v268 = vld [vmem:[%s222 + $0xb0] sm:$0x1]
        %v269 = vld [vmem:[%s222 + $0xb4] sm:$0xf]
        %v270 = vld [vmem:[%s222 + $0xb8] sm:$0xf]
        %v271 = vld [vmem:[%s222 + $0xbc] sm:$0x1]
        %v272 = vld [vmem:[%s222 + $0xc0] sm:$0xf]
        %v273 = vld [vmem:[%s222 + $0xc4] sm:$0xf]
        %v274 = vld [vmem:[%s222 + $0xc8] sm:$0x1]
        %v275 = vld [vmem:[%s222 + $0xcc] sm:$0xf]
        %v276 = vld [vmem:[%s222 + $0xd0] sm:$0xf]
        %v277 = vld [vmem:[%s222 + $0xd4] sm:$0x1]
        %v278 = vld [vmem:[%s1] sm:$0xf]
        %vm279 = vsmask.f32 3328
        %vm280 = vsmask.f32 7440
        %vm281 = vmor %vm279, %vm280
        %v283 = vshrl.u32 %v224, 16
        %v285 = vrot.slane %v283, 4
        %v286 = vshll.u32 %v224, 16
        %v288 = vrot.slane %v286, 5
        %v289 = vor.u32 %v285, %v288
        %v290 = vrot.slane %v289, 4
        %v292 = vshll.u32 %v225, 16
        %v294 = vrot.slane %v292, 5
        %v295 = vsel %vm281, %v290, %v294
        %v296 = vshrl.u32 %v225, 16
        %v298 = vrot.slane %v296, 4
        %v299 = vor.u32 %v298, %v294
        %v300 = vrot.slane %v299, 4
        %v302 = vshll.u32 %v226, 16
        %v304 = vrot.slane %v302, 5
        %v305 = vsel %vm281, %v300, %v304
        %v307 = vshrl.u32 %v227, 16
        %v309 = vrot.slane %v307, 4
        %v310 = vshll.u32 %v227, 16
        %v312 = vrot.slane %v310, 5
        %v313 = vor.u32 %v309, %v312
        %v314 = vrot.slane %v313, 4
        %v316 = vshll.u32 %v228, 16
        %v318 = vrot.slane %v316, 5
        %v319 = vsel %vm281, %v314, %v318
        %v320 = vshrl.u32 %v228, 16
        %v322 = vrot.slane %v320, 4
        %v323 = vor.u32 %v322, %v318
        %v324 = vrot.slane %v323, 4
        %v326 = vshll.u32 %v229, 16
        %v328 = vrot.slane %v326, 5
        %v329 = vsel %vm281, %v324, %v328
        %v331 = vshrl.u32 %v230, 16
        %v333 = vrot.slane %v331, 4
        %v334 = vshll.u32 %v230, 16
        %v336 = vrot.slane %v334, 5
        %v337 = vor.u32 %v333, %v336
        %v338 = vrot.slane %v337, 4
        %v340 = vshll.u32 %v231, 16
        %v342 = vrot.slane %v340, 5
        %v343 = vsel %vm281, %v338, %v342
        %v344 = vshrl.u32 %v231, 16
        %v346 = vrot.slane %v344, 4
        %v347 = vor.u32 %v346, %v342
        %v348 = vrot.slane %v347, 4
        %v350 = vshll.u32 %v232, 16
        %v352 = vrot.slane %v350, 5
        %v353 = vsel %vm281, %v348, %v352
        %v355 = vshrl.u32 %v233, 16
        %v357 = vrot.slane %v355, 4
        %v358 = vshll.u32 %v233, 16
        %v360 = vrot.slane %v358, 5
        %v361 = vor.u32 %v357, %v360
        %v362 = vrot.slane %v361, 4
        %v364 = vshll.u32 %v234, 16
        %v366 = vrot.slane %v364, 5
        %v367 = vsel %vm281, %v362, %v366
        %v368 = vshrl.u32 %v234, 16
        %v370 = vrot.slane %v368, 4
        %v371 = vor.u32 %v370, %v366
        %v372 = vrot.slane %v371, 4
        %v374 = vshll.u32 %v235, 16
        %v376 = vrot.slane %v374, 5
        %v377 = vsel %vm281, %v372, %v376
        %v379 = vshrl.u32 %v236, 16
        %v381 = vrot.slane %v379, 4
        %v382 = vshll.u32 %v236, 16
        %v384 = vrot.slane %v382, 5
        %v385 = vor.u32 %v381, %v384
        %v386 = vrot.slane %v385, 4
        %v388 = vshll.u32 %v237, 16
        %v390 = vrot.slane %v388, 5
        %v391 = vsel %vm281, %v386, %v390
        %v392 = vshrl.u32 %v237, 16
        %v394 = vrot.slane %v392, 4
        %v395 = vor.u32 %v394, %v390
        %v396 = vrot.slane %v395, 4
        %v398 = vshll.u32 %v238, 16
        %v400 = vrot.slane %v398, 5
        %v401 = vsel %vm281, %v396, %v400
        %v403 = vshrl.u32 %v239, 16
        %v405 = vrot.slane %v403, 4
        %v406 = vshll.u32 %v239, 16
        %v408 = vrot.slane %v406, 5
        %v409 = vor.u32 %v405, %v408
        %v410 = vrot.slane %v409, 4
        %v412 = vshll.u32 %v240, 16
        %v414 = vrot.slane %v412, 5
        %v415 = vsel %vm281, %v410, %v414
        %v416 = vshrl.u32 %v240, 16
        %v418 = vrot.slane %v416, 4
        %v419 = vor.u32 %v418, %v414
        %v420 = vrot.slane %v419, 4
        %v422 = vshll.u32 %v241, 16
        %v424 = vrot.slane %v422, 5
        %v425 = vsel %vm281, %v420, %v424
        %v427 = vshrl.u32 %v242, 16
        %v429 = vrot.slane %v427, 4
        %v430 = vshll.u32 %v242, 16
        %v432 = vrot.slane %v430, 5
        %v433 = vor.u32 %v429, %v432
        %v434 = vrot.slane %v433, 4
        %v436 = vshll.u32 %v243, 16
        %v438 = vrot.slane %v436, 5
        %v439 = vsel %vm281, %v434, %v438
        %v440 = vshrl.u32 %v243, 16
        %v442 = vrot.slane %v440, 4
        %v443 = vor.u32 %v442, %v438
        %v444 = vrot.slane %v443, 4
        %v446 = vshll.u32 %v244, 16
        %v448 = vrot.slane %v446, 5
        %v449 = vsel %vm281, %v444, %v448
        %v451 = vshrl.u32 %v245, 16
        %v453 = vrot.slane %v451, 4
        %v454 = vshll.u32 %v245, 16
        %v456 = vrot.slane %v454, 5
        %v457 = vor.u32 %v453, %v456
        %v458 = vrot.slane %v457, 4
        %v460 = vshll.u32 %v246, 16
        %v462 = vrot.slane %v460, 5
        %v463 = vsel %vm281, %v458, %v462
        %v464 = vshrl.u32 %v246, 16
        %v466 = vrot.slane %v464, 4
        %v467 = vor.u32 %v466, %v462
        %v468 = vrot.slane %v467, 4
        %v470 = vshll.u32 %v247, 16
        %v472 = vrot.slane %v470, 5
        %v473 = vsel %vm281, %v468, %v472
        %v475 = vshrl.u32 %v248, 16
        %v477 = vrot.slane %v475, 4
        %v478 = vshll.u32 %v248, 16
        %v480 = vrot.slane %v478, 5
        %v481 = vor.u32 %v477, %v480
        %v482 = vrot.slane %v481, 4
        %v484 = vshll.u32 %v249, 16
        %v486 = vrot.slane %v484, 5
        %v487 = vsel %vm281, %v482, %v486
        %v488 = vshrl.u32 %v249, 16
        %v490 = vrot.slane %v488, 4
        %v491 = vor.u32 %v490, %v486
        %v492 = vrot.slane %v491, 4
        %v494 = vshll.u32 %v250, 16
        %v496 = vrot.slane %v494, 5
        %v497 = vsel %vm281, %v492, %v496
        %v499 = vshrl.u32 %v251, 16
        %v501 = vrot.slane %v499, 4
        %v502 = vshll.u32 %v251, 16
        %v504 = vrot.slane %v502, 5
        %v505 = vor.u32 %v501, %v504
        %v506 = vrot.slane %v505, 4
        %v508 = vshll.u32 %v252, 16
        %v510 = vrot.slane %v508, 5
        %v511 = vsel %vm281, %v506, %v510
        %v512 = vshrl.u32 %v252, 16
        %v514 = vrot.slane %v512, 4
        %v515 = vor.u32 %v514, %v510
        %v516 = vrot.slane %v515, 4
        %v518 = vshll.u32 %v253, 16
        %v520 = vrot.slane %v518, 5
        %v521 = vsel %vm281, %v516, %v520
        %v523 = vshrl.u32 %v254, 16
        %v525 = vrot.slane %v523, 4
        %v526 = vshll.u32 %v254, 16
        %v528 = vrot.slane %v526, 5
        %v529 = vor.u32 %v525, %v528
        %v530 = vrot.slane %v529, 4
        %v532 = vshll.u32 %v255, 16
        %v534 = vrot.slane %v532, 5
        %v535 = vsel %vm281, %v530, %v534
        %v536 = vshrl.u32 %v255, 16
        %v538 = vrot.slane %v536, 4
        %v539 = vor.u32 %v538, %v534
        %v540 = vrot.slane %v539, 4
        %v542 = vshll.u32 %v256, 16
        %v544 = vrot.slane %v542, 5
        %v545 = vsel %vm281, %v540, %v544
        %v547 = vshrl.u32 %v257, 16
        %v549 = vrot.slane %v547, 4
        %v550 = vshll.u32 %v257, 16
        %v552 = vrot.slane %v550, 5
        %v553 = vor.u32 %v549, %v552
        %v554 = vrot.slane %v553, 4
        %v556 = vshll.u32 %v258, 16
        %v558 = vrot.slane %v556, 5
        %v559 = vsel %vm281, %v554, %v558
        %v560 = vshrl.u32 %v258, 16
        %v562 = vrot.slane %v560, 4
        %v563 = vor.u32 %v562, %v558
        %v564 = vrot.slane %v563, 4
        %v566 = vshll.u32 %v259, 16
        %v568 = vrot.slane %v566, 5
        %v569 = vsel %vm281, %v564, %v568
        %v571 = vshrl.u32 %v260, 16
        %v573 = vrot.slane %v571, 4
        %v574 = vshll.u32 %v260, 16
        %v576 = vrot.slane %v574, 5
        %v577 = vor.u32 %v573, %v576
        %v578 = vrot.slane %v577, 4
        %v580 = vshll.u32 %v261, 16
        %v582 = vrot.slane %v580, 5
        %v583 = vsel %vm281, %v578, %v582
        %v584 = vshrl.u32 %v261, 16
        %v586 = vrot.slane %v584, 4
        %v587 = vor.u32 %v586, %v582
        %v588 = vrot.slane %v587, 4
        %v590 = vshll.u32 %v262, 16
        %v592 = vrot.slane %v590, 5
        %v593 = vsel %vm281, %v588, %v592
        %v595 = vshrl.u32 %v263, 16
        %v597 = vrot.slane %v595, 4
        %v598 = vshll.u32 %v263, 16
        %v600 = vrot.slane %v598, 5
        %v601 = vor.u32 %v597, %v600
        %v602 = vrot.slane %v601, 4
        %v604 = vshll.u32 %v264, 16
        %v606 = vrot.slane %v604, 5
        %v607 = vsel %vm281, %v602, %v606
        %v608 = vshrl.u32 %v264, 16
        %v610 = vrot.slane %v608, 4
        %v611 = vor.u32 %v610, %v606
        %v612 = vrot.slane %v611, 4
        %v614 = vshll.u32 %v265, 16
        %v616 = vrot.slane %v614, 5
        %v617 = vsel %vm281, %v612, %v616
        %v619 = vshrl.u32 %v266, 16
        %v621 = vrot.slane %v619, 4
        %v622 = vshll.u32 %v266, 16
        %v624 = vrot.slane %v622, 5
        %v625 = vor.u32 %v621, %v624
        %v626 = vrot.slane %v625, 4
        %v628 = vshll.u32 %v267, 16
        %v630 = vrot.slane %v628, 5
        %v631 = vsel %vm281, %v626, %v630
        %v632 = vshrl.u32 %v267, 16
        %v634 = vrot.slane %v632, 4
        %v635 = vor.u32 %v634, %v630
        %v636 = vrot.slane %v635, 4
        %v638 = vshll.u32 %v268, 16
        %v640 = vrot.slane %v638, 5
        %v641 = vsel %vm281, %v636, %v640
        %v643 = vshrl.u32 %v269, 16
        %v645 = vrot.slane %v643, 4
        %v646 = vshll.u32 %v269, 16
        %v648 = vrot.slane %v646, 5
        %v649 = vor.u32 %v645, %v648
        %v650 = vrot.slane %v649, 4
        %v652 = vshll.u32 %v270, 16
        %v654 = vrot.slane %v652, 5
        %v655 = vsel %vm281, %v650, %v654
        %v656 = vshrl.u32 %v270, 16
        %v658 = vrot.slane %v656, 4
        %v659 = vor.u32 %v658, %v654
        %v660 = vrot.slane %v659, 4
        %v662 = vshll.u32 %v271, 16
        %v664 = vrot.slane %v662, 5
        %v665 = vsel %vm281, %v660, %v664
        %s666 = scalar_lea.vmem %s1, 4
        %v667 = vld [vmem:[%s666] sm:$0xf]
        %v668 = vunpack.c.l.b16 %v295
        %v669 = vunpack.c.l.b16 %v305
        %v670 = vunpack.c.l.b16 %v319
        %v671 = vunpack.c.l.b16 %v329
        %v672 = vunpack.c.l.b16 %v343
        %v673 = vunpack.c.l.b16 %v353
        %v674 = vunpack.c.l.b16 %v367
        %v675 = vunpack.c.l.b16 %v377
        %v676 = vunpack.c.l.b16 %v391
        %v677 = vunpack.c.l.b16 %v401
        %v678 = vunpack.c.l.b16 %v415
        %v679 = vunpack.c.l.b16 %v425
        %v680 = vunpack.c.l.b16 %v439
        %v681 = vunpack.c.l.b16 %v449
        %v682 = vunpack.c.l.b16 %v463
        %v683 = vunpack.c.l.b16 %v473
        %v684 = vunpack.c.l.b16 %v487
        %v685 = vunpack.c.l.b16 %v497
        %v686 = vunpack.c.l.b16 %v511
        %v687 = vunpack.c.l.b16 %v521
        %v688 = vunpack.c.l.b16 %v535
        %v689 = vunpack.c.l.b16 %v545
        %v690 = vunpack.c.l.b16 %v559
        %v691 = vunpack.c.l.b16 %v569
        %v692 = vunpack.c.l.b16 %v583
        %v693 = vunpack.c.l.b16 %v593
        %v694 = vunpack.c.l.b16 %v607
        %v695 = vunpack.c.l.b16 %v617
        %v696 = vunpack.c.l.b16 %v631
        %v697 = vunpack.c.l.b16 %v641
        %v698 = vunpack.c.l.b16 %v655
        %v699 = vunpack.c.l.b16 %v665
        %v700 = vpack.c.b16 %v669, %v668
        %v701 = vpack.c.b16 %v671, %v670
        %v702 = vpack.c.b16 %v673, %v672
        %v703 = vpack.c.b16 %v675, %v674
        %v704 = vpack.c.b16 %v677, %v676
        %v705 = vpack.c.b16 %v679, %v678
        %v706 = vpack.c.b16 %v681, %v680
        %v707 = vpack.c.b16 %v683, %v682
        %v708 = vpack.c.b16 %v685, %v684
        %v709 = vpack.c.b16 %v687, %v686
        %v710 = vpack.c.b16 %v689, %v688
        %v711 = vpack.c.b16 %v691, %v690
        %v712 = vpack.c.b16 %v693, %v692
        %v713 = vpack.c.b16 %v695, %v694
        %v714 = vpack.c.b16 %v697, %v696
        %v715 = vpack.c.b16 %v699, %v698
        %vm716 = vcmask 64512
        %v718 = vsel %vm716, %v700, 0
        %v721 = vsel %vm716, %v701, 0
        %v724 = vsel %vm716, %v702, 0
        %v727 = vsel %vm716, %v703, 0
        %v730 = vsel %vm716, %v704, 0
        %v733 = vsel %vm716, %v705, 0
        %v736 = vsel %vm716, %v706, 0
        %v739 = vsel %vm716, %v707, 0
        %v742 = vsel %vm716, %v708, 0
        %v745 = vsel %vm716, %v709, 0
        %v748 = vsel %vm716, %v710, 0
        %v751 = vsel %vm716, %v711, 0
        %v754 = vsel %vm716, %v712, 0
        %v757 = vsel %vm716, %v713, 0
        %v760 = vsel %vm716, %v714, 0
        %v763 = vsel %vm716, %v715, 0
        %vm765 = vcmask 1043456
        %v767 = vsel %vm765, %v667, 0
        %769 = vmatpush.bf16.msra.mxu0 0
        %770 = vmatpush.bf16.msra.mxu0 0
        %771 = vmatpush.bf16.msra.mxu0 0
        %772 = vmatpush.bf16.msra.mxu0 0
        %773 = vmatpush.bf16.msra.mxu0 0
        %774 = vmatpush.bf16.msra.mxu0 0
        %775 = vmatpush.bf16.msra.mxu0 0
        %776 = vmatpush.bf16.msra.mxu0 %v767
        %777 = vmatmul.bf16.gmra.mxu0 %v718
        %v778 = vpop.f32.mrf.mxu0
        %v779 = vadd.f32 0.0, %v778
        %v780 = vpop.f32.mrf.mxu0
        %v781 = vadd.f32 0.0, %v780
        %782 = vmatmul.bf16.gmra.mxu0 %v721
        %v783 = vpop.f32.mrf.mxu0
        %v784 = vadd.f32 0.0, %v783
        %v785 = vpop.f32.mrf.mxu0
        %v786 = vadd.f32 0.0, %v785
        %787 = vmatmul.bf16.gmra.mxu0 %v724
        %v788 = vpop.f32.mrf.mxu0
        %v789 = vadd.f32 0.0, %v788
        %v790 = vpop.f32.mrf.mxu0
        %v791 = vadd.f32 0.0, %v790
        %792 = vmatmul.bf16.gmra.mxu0 %v727
        %v793 = vpop.f32.mrf.mxu0
        %v794 = vadd.f32 0.0, %v793
        %v795 = vpop.f32.mrf.mxu0
        %v796 = vadd.f32 0.0, %v795
        %797 = vmatmul.bf16.gmra.mxu0 %v730
        %v798 = vpop.f32.mrf.mxu0
        %v799 = vadd.f32 0.0, %v798
        %v800 = vpop.f32.mrf.mxu0
        %v801 = vadd.f32 0.0, %v800
        %802 = vmatmul.bf16.gmra.mxu0 %v733
        %v803 = vpop.f32.mrf.mxu0
        %v804 = vadd.f32 0.0, %v803
        %v805 = vpop.f32.mrf.mxu0
        %v806 = vadd.f32 0.0, %v805
        %807 = vmatmul.bf16.gmra.mxu0 %v736
        %v808 = vpop.f32.mrf.mxu0
        %v809 = vadd.f32 0.0, %v808
        %v810 = vpop.f32.mrf.mxu0
        %v811 = vadd.f32 0.0, %v810
        %812 = vmatmul.bf16.gmra.mxu0 %v739
        %v813 = vpop.f32.mrf.mxu0
        %v814 = vadd.f32 0.0, %v813
        %v815 = vpop.f32.mrf.mxu0
        %v816 = vadd.f32 0.0, %v815
        %817 = vmatmul.bf16.gmra.mxu0 %v742
        %v818 = vpop.f32.mrf.mxu0
        %v819 = vadd.f32 0.0, %v818
        %v820 = vpop.f32.mrf.mxu0
        %v821 = vadd.f32 0.0, %v820
        %822 = vmatmul.bf16.gmra.mxu0 %v745
        %v823 = vpop.f32.mrf.mxu0
        %v824 = vadd.f32 0.0, %v823
        %v825 = vpop.f32.mrf.mxu0
        %v826 = vadd.f32 0.0, %v825
        %827 = vmatmul.bf16.gmra.mxu0 %v748
        %v828 = vpop.f32.mrf.mxu0
        %v829 = vadd.f32 0.0, %v828
        %v830 = vpop.f32.mrf.mxu0
        %v831 = vadd.f32 0.0, %v830
        %832 = vmatmul.bf16.gmra.mxu0 %v751
        %v833 = vpop.f32.mrf.mxu0
        %v834 = vadd.f32 0.0, %v833
        %v835 = vpop.f32.mrf.mxu0
        %v836 = vadd.f32 0.0, %v835
        %837 = vmatmul.bf16.gmra.mxu0 %v754
        %v838 = vpop.f32.mrf.mxu0
        %v839 = vadd.f32 0.0, %v838
        %v840 = vpop.f32.mrf.mxu0
        %v841 = vadd.f32 0.0, %v840
        %842 = vmatmul.bf16.gmra.mxu0 %v757
        %v843 = vpop.f32.mrf.mxu0
        %v844 = vadd.f32 0.0, %v843
        %v845 = vpop.f32.mrf.mxu0
        %v846 = vadd.f32 0.0, %v845
        %847 = vmatmul.bf16.gmra.mxu0 %v760
        %v848 = vpop.f32.mrf.mxu0
        %v849 = vadd.f32 0.0, %v848
        %v850 = vpop.f32.mrf.mxu0
        %v851 = vadd.f32 0.0, %v850
        %852 = vmatmul.bf16.gmra.mxu0 %v763
        %v853 = vpop.f32.mrf.mxu0
        %v854 = vadd.f32 0.0, %v853
        %v855 = vpop.f32.mrf.mxu0
        %v856 = vadd.f32 0.0, %v855
        %857 = vdwg.mxu0
        %v890 = vunpack.c.l.b16 %v224
        %v891 = vunpack.c.l.b16 %v225
        %v892 = vunpack.c.l.b16 %v227
        %v893 = vunpack.c.l.b16 %v228
        %v894 = vunpack.c.l.b16 %v230
        %v895 = vunpack.c.l.b16 %v231
        %v896 = vunpack.c.l.b16 %v233
        %v897 = vunpack.c.l.b16 %v234
        %v898 = vunpack.c.l.b16 %v236
        %v899 = vunpack.c.l.b16 %v237
        %v900 = vunpack.c.l.b16 %v239
        %v901 = vunpack.c.l.b16 %v240
        %v902 = vunpack.c.l.b16 %v242
        %v903 = vunpack.c.l.b16 %v243
        %v904 = vunpack.c.l.b16 %v245
        %v905 = vunpack.c.l.b16 %v246
        %v906 = vunpack.c.l.b16 %v248
        %v907 = vunpack.c.l.b16 %v249
        %v908 = vunpack.c.l.b16 %v251
        %v909 = vunpack.c.l.b16 %v252
        %v910 = vunpack.c.l.b16 %v254
        %v911 = vunpack.c.l.b16 %v255
        %v912 = vunpack.c.l.b16 %v257
        %v913 = vunpack.c.l.b16 %v258
        %v914 = vunpack.c.l.b16 %v260
        %v915 = vunpack.c.l.b16 %v261
        %v916 = vunpack.c.l.b16 %v263
        %v917 = vunpack.c.l.b16 %v264
        %v918 = vunpack.c.l.b16 %v266
        %v919 = vunpack.c.l.b16 %v267
        %v920 = vunpack.c.l.b16 %v269
        %v921 = vunpack.c.l.b16 %v270
        %v922 = vpack.c.b16 %v891, %v890
        %v923 = vpack.c.b16 %v893, %v892
        %v924 = vpack.c.b16 %v895, %v894
        %v925 = vpack.c.b16 %v897, %v896
        %v926 = vpack.c.b16 %v899, %v898
        %v927 = vpack.c.b16 %v901, %v900
        %v928 = vpack.c.b16 %v903, %v902
        %v929 = vpack.c.b16 %v905, %v904
        %v930 = vpack.c.b16 %v907, %v906
        %v931 = vpack.c.b16 %v909, %v908
        %v932 = vpack.c.b16 %v911, %v910
        %v933 = vpack.c.b16 %v913, %v912
        %v934 = vpack.c.b16 %v915, %v914
        %v935 = vpack.c.b16 %v917, %v916
        %v936 = vpack.c.b16 %v919, %v918
        %v937 = vpack.c.b16 %v921, %v920
        %v939 = vsel %vm716, %v922, 0
        %v942 = vsel %vm716, %v923, 0
        %v945 = vsel %vm716, %v924, 0
        %v948 = vsel %vm716, %v925, 0
        %v951 = vsel %vm716, %v926, 0
        %v954 = vsel %vm716, %v927, 0
        %v957 = vsel %vm716, %v928, 0
        %v960 = vsel %vm716, %v929, 0
        %v963 = vsel %vm716, %v930, 0
        %v966 = vsel %vm716, %v931, 0
        %v969 = vsel %vm716, %v932, 0
        %v972 = vsel %vm716, %v933, 0
        %v975 = vsel %vm716, %v934, 0
        %v978 = vsel %vm716, %v935, 0
        %v981 = vsel %vm716, %v936, 0
        %v984 = vsel %vm716, %v937, 0
        %v987 = vsel %vm765, %v278, 0
        %989 = vmatpush.bf16.msra.mxu0 0
        %990 = vmatpush.bf16.msra.mxu0 0
        %991 = vmatpush.bf16.msra.mxu0 0
        %992 = vmatpush.bf16.msra.mxu0 0
        %993 = vmatpush.bf16.msra.mxu0 0
        %994 = vmatpush.bf16.msra.mxu0 0
        %995 = vmatpush.bf16.msra.mxu0 0
        %996 = vmatpush.bf16.msra.mxu0 %v987
        %997 = vmatmul.bf16.gmra.mxu0 %v939
        %v998 = vpop.f32.mrf.mxu0
        %v999 = vadd.f32 %v779, %v998
        %v1000 = vpop.f32.mrf.mxu0
        %v1001 = vadd.f32 %v781, %v1000
        %1002 = vmatmul.bf16.gmra.mxu0 %v942
        %v1003 = vpop.f32.mrf.mxu0
        %v1004 = vadd.f32 %v784, %v1003
        %v1005 = vpop.f32.mrf.mxu0
        %v1006 = vadd.f32 %v786, %v1005
        %1007 = vmatmul.bf16.gmra.mxu0 %v945
        %v1008 = vpop.f32.mrf.mxu0
        %v1009 = vadd.f32 %v789, %v1008
        %v1010 = vpop.f32.mrf.mxu0
        %v1011 = vadd.f32 %v791, %v1010
        %1012 = vmatmul.bf16.gmra.mxu0 %v948
        %v1013 = vpop.f32.mrf.mxu0
        %v1014 = vadd.f32 %v794, %v1013
        %v1015 = vpop.f32.mrf.mxu0
        %v1016 = vadd.f32 %v796, %v1015
        %1017 = vmatmul.bf16.gmra.mxu0 %v951
        %v1018 = vpop.f32.mrf.mxu0
        %v1019 = vadd.f32 %v799, %v1018
        %v1020 = vpop.f32.mrf.mxu0
        %v1021 = vadd.f32 %v801, %v1020
        %1022 = vmatmul.bf16.gmra.mxu0 %v954
        %v1023 = vpop.f32.mrf.mxu0
        %v1024 = vadd.f32 %v804, %v1023
        %v1025 = vpop.f32.mrf.mxu0
        %v1026 = vadd.f32 %v806, %v1025
        %1027 = vmatmul.bf16.gmra.mxu0 %v957
        %v1028 = vpop.f32.mrf.mxu0
        %v1029 = vadd.f32 %v809, %v1028
        %v1030 = vpop.f32.mrf.mxu0
        %v1031 = vadd.f32 %v811, %v1030
        %1032 = vmatmul.bf16.gmra.mxu0 %v960
        %v1033 = vpop.f32.mrf.mxu0
        %v1034 = vadd.f32 %v814, %v1033
        %v1035 = vpop.f32.mrf.mxu0
        %v1036 = vadd.f32 %v816, %v1035
        %1037 = vmatmul.bf16.gmra.mxu0 %v963
        %v1038 = vpop.f32.mrf.mxu0
        %v1039 = vadd.f32 %v819, %v1038
        %v1040 = vpop.f32.mrf.mxu0
        %v1041 = vadd.f32 %v821, %v1040
        %1042 = vmatmul.bf16.gmra.mxu0 %v966
        %v1043 = vpop.f32.mrf.mxu0
        %v1044 = vadd.f32 %v824, %v1043
        %v1045 = vpop.f32.mrf.mxu0
        %v1046 = vadd.f32 %v826, %v1045
        %1047 = vmatmul.bf16.gmra.mxu0 %v969
        %v1048 = vpop.f32.mrf.mxu0
        %v1049 = vadd.f32 %v829, %v1048
        %v1050 = vpop.f32.mrf.mxu0
        %v1051 = vadd.f32 %v831, %v1050
        %1052 = vmatmul.bf16.gmra.mxu0 %v972
        %v1053 = vpop.f32.mrf.mxu0
        %v1054 = vadd.f32 %v834, %v1053
        %v1055 = vpop.f32.mrf.mxu0
        %v1056 = vadd.f32 %v836, %v1055
        %1057 = vmatmul.bf16.gmra.mxu0 %v975
        %v1058 = vpop.f32.mrf.mxu0
        %v1059 = vadd.f32 %v839, %v1058
        %v1060 = vpop.f32.mrf.mxu0
        %v1061 = vadd.f32 %v841, %v1060
        %1062 = vmatmul.bf16.gmra.mxu0 %v978
        %v1063 = vpop.f32.mrf.mxu0
        %v1064 = vadd.f32 %v844, %v1063
        %v1065 = vpop.f32.mrf.mxu0
        %v1066 = vadd.f32 %v846, %v1065
        %1067 = vmatmul.bf16.gmra.mxu0 %v981
        %v1068 = vpop.f32.mrf.mxu0
        %v1069 = vadd.f32 %v849, %v1068
        %v1070 = vpop.f32.mrf.mxu0
        %v1071 = vadd.f32 %v851, %v1070
        %1072 = vmatmul.bf16.gmra.mxu0 %v984
        %v1073 = vpop.f32.mrf.mxu0
        %v1074 = vadd.f32 %v854, %v1073
        %v1075 = vpop.f32.mrf.mxu0
        %v1076 = vadd.f32 %v856, %v1075
        %1077 = vdwg.mxu0
        %vm1094 = vcmask 1042432
        %vm1095 = vcmask 1046532
        %vm1096 = vmor %vm1094, %vm1095
        %v1097 = vrot.slane %v224, 5
        %v1098 = vrot.slane %v1097, 4
        %v1099 = vrot.slane %v225, 5
        %v1100 = vsel %vm1096, %v1098, %v1099
        %v1101 = vrot.slane %v1099, 4
        %v1102 = vrot.slane %v226, 5
        %v1103 = vsel %vm1096, %v1101, %v1102
        %v1104 = vrot.slane %v227, 5
        %v1105 = vrot.slane %v1104, 4
        %v1106 = vrot.slane %v228, 5
        %v1107 = vsel %vm1096, %v1105, %v1106
        %v1108 = vrot.slane %v1106, 4
        %v1109 = vrot.slane %v229, 5
        %v1110 = vsel %vm1096, %v1108, %v1109
        %v1111 = vrot.slane %v230, 5
        %v1112 = vrot.slane %v1111, 4
        %v1113 = vrot.slane %v231, 5
        %v1114 = vsel %vm1096, %v1112, %v1113
        %v1115 = vrot.slane %v1113, 4
        %v1116 = vrot.slane %v232, 5
        %v1117 = vsel %vm1096, %v1115, %v1116
        %v1118 = vrot.slane %v233, 5
        %v1119 = vrot.slane %v1118, 4
        %v1120 = vrot.slane %v234, 5
        %v1121 = vsel %vm1096, %v1119, %v1120
        %v1122 = vrot.slane %v1120, 4
        %v1123 = vrot.slane %v235, 5
        %v1124 = vsel %vm1096, %v1122, %v1123
        %v1125 = vrot.slane %v236, 5
        %v1126 = vrot.slane %v1125, 4
        %v1127 = vrot.slane %v237, 5
        %v1128 = vsel %vm1096, %v1126, %v1127
        %v1129 = vrot.slane %v1127, 4
        %v1130 = vrot.slane %v238, 5
        %v1131 = vsel %vm1096, %v1129, %v1130
        %v1132 = vrot.slane %v239, 5
        %v1133 = vrot.slane %v1132, 4
        %v1134 = vrot.slane %v240, 5
        %v1135 = vsel %vm1096, %v1133, %v1134
        %v1136 = vrot.slane %v1134, 4
        %v1137 = vrot.slane %v241, 5
        %v1138 = vsel %vm1096, %v1136, %v1137
        %v1139 = vrot.slane %v242, 5
        %v1140 = vrot.slane %v1139, 4
        %v1141 = vrot.slane %v243, 5
        %v1142 = vsel %vm1096, %v1140, %v1141
        %v1143 = vrot.slane %v1141, 4
        %v1144 = vrot.slane %v244, 5
        %v1145 = vsel %vm1096, %v1143, %v1144
        %v1146 = vrot.slane %v245, 5
        %v1147 = vrot.slane %v1146, 4
        %v1148 = vrot.slane %v246, 5
        %v1149 = vsel %vm1096, %v1147, %v1148
        %v1150 = vrot.slane %v1148, 4
        %v1151 = vrot.slane %v247, 5
        %v1152 = vsel %vm1096, %v1150, %v1151
        %v1153 = vrot.slane %v248, 5
        %v1154 = vrot.slane %v1153, 4
        %v1155 = vrot.slane %v249, 5
        %v1156 = vsel %vm1096, %v1154, %v1155
        %v1157 = vrot.slane %v1155, 4
        %v1158 = vrot.slane %v250, 5
        %v1159 = vsel %vm1096, %v1157, %v1158
        %v1160 = vrot.slane %v251, 5
        %v1161 = vrot.slane %v1160, 4
        %v1162 = vrot.slane %v252, 5
        %v1163 = vsel %vm1096, %v1161, %v1162
        %v1164 = vrot.slane %v1162, 4
        %v1165 = vrot.slane %v253, 5
        %v1166 = vsel %vm1096, %v1164, %v1165
        %v1167 = vrot.slane %v254, 5
        %v1168 = vrot.slane %v1167, 4
        %v1169 = vrot.slane %v255, 5
        %v1170 = vsel %vm1096, %v1168, %v1169
        %v1171 = vrot.slane %v1169, 4
        %v1172 = vrot.slane %v256, 5
        %v1173 = vsel %vm1096, %v1171, %v1172
        %v1174 = vrot.slane %v257, 5
        %v1175 = vrot.slane %v1174, 4
        %v1176 = vrot.slane %v258, 5
        %v1177 = vsel %vm1096, %v1175, %v1176
        %v1178 = vrot.slane %v1176, 4
        %v1179 = vrot.slane %v259, 5
        %v1180 = vsel %vm1096, %v1178, %v1179
        %v1181 = vrot.slane %v260, 5
        %v1182 = vrot.slane %v1181, 4
        %v1183 = vrot.slane %v261, 5
        %v1184 = vsel %vm1096, %v1182, %v1183
        %v1185 = vrot.slane %v1183, 4
        %v1186 = vrot.slane %v262, 5
        %v1187 = vsel %vm1096, %v1185, %v1186
        %v1188 = vrot.slane %v263, 5
        %v1189 = vrot.slane %v1188, 4
        %v1190 = vrot.slane %v264, 5
        %v1191 = vsel %vm1096, %v1189, %v1190
        %v1192 = vrot.slane %v1190, 4
        %v1193 = vrot.slane %v265, 5
        %v1194 = vsel %vm1096, %v1192, %v1193
        %v1195 = vrot.slane %v266, 5
        %v1196 = vrot.slane %v1195, 4
        %v1197 = vrot.slane %v267, 5
        %v1198 = vsel %vm1096, %v1196, %v1197
        %v1199 = vrot.slane %v1197, 4
        %v1200 = vrot.slane %v268, 5
        %v1201 = vsel %vm1096, %v1199, %v1200
        %v1202 = vrot.slane %v269, 5
        %v1203 = vrot.slane %v1202, 4
        %v1204 = vrot.slane %v270, 5
        %v1205 = vsel %vm1096, %v1203, %v1204
        %v1206 = vrot.slane %v1204, 4
        %v1207 = vrot.slane %v271, 5
        %v1208 = vsel %vm1096, %v1206, %v1207
        %s1209 = scalar_lea.vmem %s1, 8
        %v1210 = vld [vmem:[%s1209] sm:$0xf]
        %v1211 = vunpack.c.l.b16 %v1100
        %v1212 = vunpack.c.l.b16 %v1103
        %v1213 = vunpack.c.l.b16 %v1107
        %v1214 = vunpack.c.l.b16 %v1110
        %v1215 = vunpack.c.l.b16 %v1114
        %v1216 = vunpack.c.l.b16 %v1117
        %v1217 = vunpack.c.l.b16 %v1121
        %v1218 = vunpack.c.l.b16 %v1124
        %v1219 = vunpack.c.l.b16 %v1128
        %v1220 = vunpack.c.l.b16 %v1131
        %v1221 = vunpack.c.l.b16 %v1135
        %v1222 = vunpack.c.l.b16 %v1138
        %v1223 = vunpack.c.l.b16 %v1142
        %v1224 = vunpack.c.l.b16 %v1145
        %v1225 = vunpack.c.l.b16 %v1149
        %v1226 = vunpack.c.l.b16 %v1152
        %v1227 = vunpack.c.l.b16 %v1156
        %v1228 = vunpack.c.l.b16 %v1159
        %v1229 = vunpack.c.l.b16 %v1163
        %v1230 = vunpack.c.l.b16 %v1166
        %v1231 = vunpack.c.l.b16 %v1170
        %v1232 = vunpack.c.l.b16 %v1173
        %v1233 = vunpack.c.l.b16 %v1177
        %v1234 = vunpack.c.l.b16 %v1180
        %v1235 = vunpack.c.l.b16 %v1184
        %v1236 = vunpack.c.l.b16 %v1187
        %v1237 = vunpack.c.l.b16 %v1191
        %v1238 = vunpack.c.l.b16 %v1194
        %v1239 = vunpack.c.l.b16 %v1198
        %v1240 = vunpack.c.l.b16 %v1201
        %v1241 = vunpack.c.l.b16 %v1205
        %v1242 = vunpack.c.l.b16 %v1208
        %v1243 = vpack.c.b16 %v1212, %v1211
        %v1244 = vpack.c.b16 %v1214, %v1213
        %v1245 = vpack.c.b16 %v1216, %v1215
        %v1246 = vpack.c.b16 %v1218, %v1217
        %v1247 = vpack.c.b16 %v1220, %v1219
        %v1248 = vpack.c.b16 %v1222, %v1221
        %v1249 = vpack.c.b16 %v1224, %v1223
        %v1250 = vpack.c.b16 %v1226, %v1225
        %v1251 = vpack.c.b16 %v1228, %v1227
        %v1252 = vpack.c.b16 %v1230, %v1229
        %v1253 = vpack.c.b16 %v1232, %v1231
        %v1254 = vpack.c.b16 %v1234, %v1233
        %v1255 = vpack.c.b16 %v1236, %v1235
        %v1256 = vpack.c.b16 %v1238, %v1237
        %v1257 = vpack.c.b16 %v1240, %v1239
        %v1258 = vpack.c.b16 %v1242, %v1241
        %v1260 = vsel %vm716, %v1243, 0
        %v1263 = vsel %vm716, %v1244, 0
        %v1266 = vsel %vm716, %v1245, 0
        %v1269 = vsel %vm716, %v1246, 0
        %v1272 = vsel %vm716, %v1247, 0
        %v1275 = vsel %vm716, %v1248, 0
        %v1278 = vsel %vm716, %v1249, 0
        %v1281 = vsel %vm716, %v1250, 0
        %v1284 = vsel %vm716, %v1251, 0
        %v1287 = vsel %vm716, %v1252, 0
        %v1290 = vsel %vm716, %v1253, 0
        %v1293 = vsel %vm716, %v1254, 0
        %v1296 = vsel %vm716, %v1255, 0
        %v1299 = vsel %vm716, %v1256, 0
        %v1302 = vsel %vm716, %v1257, 0
        %v1305 = vsel %vm716, %v1258, 0
        %v1308 = vsel %vm765, %v1210, 0
        %1310 = vmatpush.bf16.msra.mxu0 0
        %1311 = vmatpush.bf16.msra.mxu0 0
        %1312 = vmatpush.bf16.msra.mxu0 0
        %1313 = vmatpush.bf16.msra.mxu0 0
        %1314 = vmatpush.bf16.msra.mxu0 0
        %1315 = vmatpush.bf16.msra.mxu0 0
        %1316 = vmatpush.bf16.msra.mxu0 0
        %1317 = vmatpush.bf16.msra.mxu0 %v1308
        %1318 = vmatmul.bf16.gmra.mxu0 %v1260
        %v1319 = vpop.f32.mrf.mxu0
        %v1320 = vadd.f32 0.0, %v1319
        %v1321 = vpop.f32.mrf.mxu0
        %v1322 = vadd.f32 0.0, %v1321
        %1323 = vmatmul.bf16.gmra.mxu0 %v1263
        %v1324 = vpop.f32.mrf.mxu0
        %v1325 = vadd.f32 0.0, %v1324
        %v1326 = vpop.f32.mrf.mxu0
        %v1327 = vadd.f32 0.0, %v1326
        %1328 = vmatmul.bf16.gmra.mxu0 %v1266
        %v1329 = vpop.f32.mrf.mxu0
        %v1330 = vadd.f32 0.0, %v1329
        %v1331 = vpop.f32.mrf.mxu0
        %v1332 = vadd.f32 0.0, %v1331
        %1333 = vmatmul.bf16.gmra.mxu0 %v1269
        %v1334 = vpop.f32.mrf.mxu0
        %v1335 = vadd.f32 0.0, %v1334
        %v1336 = vpop.f32.mrf.mxu0
        %v1337 = vadd.f32 0.0, %v1336
        %1338 = vmatmul.bf16.gmra.mxu0 %v1272
        %v1339 = vpop.f32.mrf.mxu0
        %v1340 = vadd.f32 0.0, %v1339
        %v1341 = vpop.f32.mrf.mxu0
        %v1342 = vadd.f32 0.0, %v1341
        %1343 = vmatmul.bf16.gmra.mxu0 %v1275
        %v1344 = vpop.f32.mrf.mxu0
        %v1345 = vadd.f32 0.0, %v1344
        %v1346 = vpop.f32.mrf.mxu0
        %v1347 = vadd.f32 0.0, %v1346
        %1348 = vmatmul.bf16.gmra.mxu0 %v1278
        %v1349 = vpop.f32.mrf.mxu0
        %v1350 = vadd.f32 0.0, %v1349
        %v1351 = vpop.f32.mrf.mxu0
        %v1352 = vadd.f32 0.0, %v1351
        %1353 = vmatmul.bf16.gmra.mxu0 %v1281
        %v1354 = vpop.f32.mrf.mxu0
        %v1355 = vadd.f32 0.0, %v1354
        %v1356 = vpop.f32.mrf.mxu0
        %v1357 = vadd.f32 0.0, %v1356
        %1358 = vmatmul.bf16.gmra.mxu0 %v1284
        %v1359 = vpop.f32.mrf.mxu0
        %v1360 = vadd.f32 0.0, %v1359
        %v1361 = vpop.f32.mrf.mxu0
        %v1362 = vadd.f32 0.0, %v1361
        %1363 = vmatmul.bf16.gmra.mxu0 %v1287
        %v1364 = vpop.f32.mrf.mxu0
        %v1365 = vadd.f32 0.0, %v1364
        %v1366 = vpop.f32.mrf.mxu0
        %v1367 = vadd.f32 0.0, %v1366
        %1368 = vmatmul.bf16.gmra.mxu0 %v1290
        %v1369 = vpop.f32.mrf.mxu0
        %v1370 = vadd.f32 0.0, %v1369
        %v1371 = vpop.f32.mrf.mxu0
        %v1372 = vadd.f32 0.0, %v1371
        %1373 = vmatmul.bf16.gmra.mxu0 %v1293
        %v1374 = vpop.f32.mrf.mxu0
        %v1375 = vadd.f32 0.0, %v1374
        %v1376 = vpop.f32.mrf.mxu0
        %v1377 = vadd.f32 0.0, %v1376
        %1378 = vmatmul.bf16.gmra.mxu0 %v1296
        %v1379 = vpop.f32.mrf.mxu0
        %v1380 = vadd.f32 0.0, %v1379
        %v1381 = vpop.f32.mrf.mxu0
        %v1382 = vadd.f32 0.0, %v1381
        %1383 = vmatmul.bf16.gmra.mxu0 %v1299
        %v1384 = vpop.f32.mrf.mxu0
        %v1385 = vadd.f32 0.0, %v1384
        %v1386 = vpop.f32.mrf.mxu0
        %v1387 = vadd.f32 0.0, %v1386
        %1388 = vmatmul.bf16.gmra.mxu0 %v1302
        %v1389 = vpop.f32.mrf.mxu0
        %v1390 = vadd.f32 0.0, %v1389
        %v1391 = vpop.f32.mrf.mxu0
        %v1392 = vadd.f32 0.0, %v1391
        %1393 = vmatmul.bf16.gmra.mxu0 %v1305
        %v1394 = vpop.f32.mrf.mxu0
        %v1395 = vadd.f32 0.0, %v1394
        %v1396 = vpop.f32.mrf.mxu0
        %v1397 = vadd.f32 0.0, %v1396
        %1398 = vdwg.mxu0
        %v1399 = vadd.f32 %v999, %v1320
        %v1400 = vadd.f32 %v1001, %v1322
        %v1401 = vadd.f32 %v1004, %v1325
        %v1402 = vadd.f32 %v1006, %v1327
        %v1403 = vadd.f32 %v1009, %v1330
        %v1404 = vadd.f32 %v1011, %v1332
        %v1405 = vadd.f32 %v1014, %v1335
        %v1406 = vadd.f32 %v1016, %v1337
        %v1407 = vadd.f32 %v1019, %v1340
        %v1408 = vadd.f32 %v1021, %v1342
        %v1409 = vadd.f32 %v1024, %v1345
        %v1410 = vadd.f32 %v1026, %v1347
        %v1411 = vadd.f32 %v1029, %v1350
        %v1412 = vadd.f32 %v1031, %v1352
        %v1413 = vadd.f32 %v1034, %v1355
        %v1414 = vadd.f32 %v1036, %v1357
        %v1415 = vadd.f32 %v1039, %v1360
        %v1416 = vadd.f32 %v1041, %v1362
        %v1417 = vadd.f32 %v1044, %v1365
        %v1418 = vadd.f32 %v1046, %v1367
        %v1419 = vadd.f32 %v1049, %v1370
        %v1420 = vadd.f32 %v1051, %v1372
        %v1421 = vadd.f32 %v1054, %v1375
        %v1422 = vadd.f32 %v1056, %v1377
        %v1423 = vadd.f32 %v1059, %v1380
        %v1424 = vadd.f32 %v1061, %v1382
        %v1425 = vadd.f32 %v1064, %v1385
        %v1426 = vadd.f32 %v1066, %v1387
        %v1427 = vadd.f32 %v1069, %v1390
        %v1428 = vadd.f32 %v1071, %v1392
        %v1429 = vadd.f32 %v1074, %v1395
        %v1430 = vadd.f32 %v1076, %v1397
        %s1431 = scalar_lea.vmem %s1, 12
        %v1432 = vld [vmem:[%s1431] sm:$0xf]
        %v1435 = vunpack.c.l.b16 %v272
        %v1436 = vunpack.c.l.b16 %v273
        %v1437 = vpack.c.b16 %v1436, %v1435
        %v1439 = vsel %vm716, %v1437, 0
        %v1442 = vsel %vm765, %v1432, 0
        %1444 = vmatpush.bf16.msra.mxu0 0
        %1445 = vmatpush.bf16.msra.mxu0 0
        %1446 = vmatpush.bf16.msra.mxu0 0
        %1447 = vmatpush.bf16.msra.mxu0 0
        %1448 = vmatpush.bf16.msra.mxu0 0
        %1449 = vmatpush.bf16.msra.mxu0 0
        %1450 = vmatpush.bf16.msra.mxu0 0
        %1451 = vmatpush.bf16.msra.mxu0 %v1442
        %1452 = vmatmul.bf16.gmra.mxu0 %v942
        %v1453 = vpop.f32.mrf.mxu0
        %v1454 = vadd.f32 0.0, %v1453
        %v1455 = vpop.f32.mrf.mxu0
        %v1456 = vadd.f32 0.0, %v1455
        %1457 = vmatmul.bf16.gmra.mxu0 %v945
        %v1458 = vpop.f32.mrf.mxu0
        %v1459 = vadd.f32 0.0, %v1458
        %v1460 = vpop.f32.mrf.mxu0
        %v1461 = vadd.f32 0.0, %v1460
        %1462 = vmatmul.bf16.gmra.mxu0 %v948
        %v1463 = vpop.f32.mrf.mxu0
        %v1464 = vadd.f32 0.0, %v1463
        %v1465 = vpop.f32.mrf.mxu0
        %v1466 = vadd.f32 0.0, %v1465
        %1467 = vmatmul.bf16.gmra.mxu0 %v951
        %v1468 = vpop.f32.mrf.mxu0
        %v1469 = vadd.f32 0.0, %v1468
        %v1470 = vpop.f32.mrf.mxu0
        %v1471 = vadd.f32 0.0, %v1470
        %1472 = vmatmul.bf16.gmra.mxu0 %v954
        %v1473 = vpop.f32.mrf.mxu0
        %v1474 = vadd.f32 0.0, %v1473
        %v1475 = vpop.f32.mrf.mxu0
        %v1476 = vadd.f32 0.0, %v1475
        %1477 = vmatmul.bf16.gmra.mxu0 %v957
        %v1478 = vpop.f32.mrf.mxu0
        %v1479 = vadd.f32 0.0, %v1478
        %v1480 = vpop.f32.mrf.mxu0
        %v1481 = vadd.f32 0.0, %v1480
        %1482 = vmatmul.bf16.gmra.mxu0 %v960
        %v1483 = vpop.f32.mrf.mxu0
        %v1484 = vadd.f32 0.0, %v1483
        %v1485 = vpop.f32.mrf.mxu0
        %v1486 = vadd.f32 0.0, %v1485
        %1487 = vmatmul.bf16.gmra.mxu0 %v963
        %v1488 = vpop.f32.mrf.mxu0
        %v1489 = vadd.f32 0.0, %v1488
        %v1490 = vpop.f32.mrf.mxu0
        %v1491 = vadd.f32 0.0, %v1490
        %1492 = vmatmul.bf16.gmra.mxu0 %v966
        %v1493 = vpop.f32.mrf.mxu0
        %v1494 = vadd.f32 0.0, %v1493
        %v1495 = vpop.f32.mrf.mxu0
        %v1496 = vadd.f32 0.0, %v1495
        %1497 = vmatmul.bf16.gmra.mxu0 %v969
        %v1498 = vpop.f32.mrf.mxu0
        %v1499 = vadd.f32 0.0, %v1498
        %v1500 = vpop.f32.mrf.mxu0
        %v1501 = vadd.f32 0.0, %v1500
        %1502 = vmatmul.bf16.gmra.mxu0 %v972
        %v1503 = vpop.f32.mrf.mxu0
        %v1504 = vadd.f32 0.0, %v1503
        %v1505 = vpop.f32.mrf.mxu0
        %v1506 = vadd.f32 0.0, %v1505
        %1507 = vmatmul.bf16.gmra.mxu0 %v975
        %v1508 = vpop.f32.mrf.mxu0
        %v1509 = vadd.f32 0.0, %v1508
        %v1510 = vpop.f32.mrf.mxu0
        %v1511 = vadd.f32 0.0, %v1510
        %1512 = vmatmul.bf16.gmra.mxu0 %v978
        %v1513 = vpop.f32.mrf.mxu0
        %v1514 = vadd.f32 0.0, %v1513
        %v1515 = vpop.f32.mrf.mxu0
        %v1516 = vadd.f32 0.0, %v1515
        %1517 = vmatmul.bf16.gmra.mxu0 %v981
        %v1518 = vpop.f32.mrf.mxu0
        %v1519 = vadd.f32 0.0, %v1518
        %v1520 = vpop.f32.mrf.mxu0
        %v1521 = vadd.f32 0.0, %v1520
        %1522 = vmatmul.bf16.gmra.mxu0 %v984
        %v1523 = vpop.f32.mrf.mxu0
        %v1524 = vadd.f32 0.0, %v1523
        %v1525 = vpop.f32.mrf.mxu0
        %v1526 = vadd.f32 0.0, %v1525
        %1527 = vmatmul.bf16.gmra.mxu0 %v1439
        %v1528 = vpop.f32.mrf.mxu0
        %v1529 = vadd.f32 0.0, %v1528
        %v1530 = vpop.f32.mrf.mxu0
        %v1531 = vadd.f32 0.0, %v1530
        %1532 = vdwg.mxu0
        %v1533 = vadd.f32 %v1399, %v1454
        %v1534 = vadd.f32 %v1400, %v1456
        %v1535 = vadd.f32 %v1401, %v1459
        %v1536 = vadd.f32 %v1402, %v1461
        %v1537 = vadd.f32 %v1403, %v1464
        %v1538 = vadd.f32 %v1404, %v1466
        %v1539 = vadd.f32 %v1405, %v1469
        %v1540 = vadd.f32 %v1406, %v1471
        %v1541 = vadd.f32 %v1407, %v1474
        %v1542 = vadd.f32 %v1408, %v1476
        %v1543 = vadd.f32 %v1409, %v1479
        %v1544 = vadd.f32 %v1410, %v1481
        %v1545 = vadd.f32 %v1411, %v1484
        %v1546 = vadd.f32 %v1412, %v1486
        %v1547 = vadd.f32 %v1413, %v1489
        %v1548 = vadd.f32 %v1414, %v1491
        %v1549 = vadd.f32 %v1415, %v1494
        %v1550 = vadd.f32 %v1416, %v1496
        %v1551 = vadd.f32 %v1417, %v1499
        %v1552 = vadd.f32 %v1418, %v1501
        %v1553 = vadd.f32 %v1419, %v1504
        %v1554 = vadd.f32 %v1420, %v1506
        %v1555 = vadd.f32 %v1421, %v1509
        %v1556 = vadd.f32 %v1422, %v1511
        %v1557 = vadd.f32 %v1423, %v1514
        %v1558 = vadd.f32 %v1424, %v1516
        %v1559 = vadd.f32 %v1425, %v1519
        %v1560 = vadd.f32 %v1426, %v1521
        %v1561 = vadd.f32 %v1427, %v1524
        %v1562 = vadd.f32 %v1428, %v1526
        %v1563 = vadd.f32 %v1429, %v1529
        %v1564 = vadd.f32 %v1430, %v1531
        %v1566 = vshrl.u32 %v272, 16
        %v1568 = vrot.slane %v1566, 4
        %v1569 = vshll.u32 %v272, 16
        %v1571 = vrot.slane %v1569, 5
        %v1572 = vor.u32 %v1568, %v1571
        %v1573 = vrot.slane %v1572, 4
        %v1575 = vshll.u32 %v273, 16
        %v1577 = vrot.slane %v1575, 5
        %v1578 = vsel %vm281, %v1573, %v1577
        %v1579 = vshrl.u32 %v273, 16
        %v1581 = vrot.slane %v1579, 4
        %v1582 = vor.u32 %v1581, %v1577
        %v1583 = vrot.slane %v1582, 4
        %v1585 = vshll.u32 %v274, 16
        %v1587 = vrot.slane %v1585, 5
        %v1588 = vsel %vm281, %v1583, %v1587
        %s1621 = scalar_lea.vmem %s1, 16
        %v1622 = vld [vmem:[%s1621] sm:$0xf]
        %v1623 = vunpack.c.l.b16 %v1578
        %v1624 = vunpack.c.l.b16 %v1588
        %v1625 = vpack.c.b16 %v1624, %v1623
        %v1627 = vsel %vm716, %v1625, 0
        %v1630 = vsel %vm765, %v1622, 0
        %1632 = vmatpush.bf16.msra.mxu0 0
        %1633 = vmatpush.bf16.msra.mxu0 0
        %1634 = vmatpush.bf16.msra.mxu0 0
        %1635 = vmatpush.bf16.msra.mxu0 0
        %1636 = vmatpush.bf16.msra.mxu0 0
        %1637 = vmatpush.bf16.msra.mxu0 0
        %1638 = vmatpush.bf16.msra.mxu0 0
        %1639 = vmatpush.bf16.msra.mxu0 %v1630
        %1640 = vmatmul.bf16.gmra.mxu0 %v721
        %v1641 = vpop.f32.mrf.mxu0
        %v1642 = vadd.f32 0.0, %v1641
        %v1643 = vpop.f32.mrf.mxu0
        %v1644 = vadd.f32 0.0, %v1643
        %1645 = vmatmul.bf16.gmra.mxu0 %v724
        %v1646 = vpop.f32.mrf.mxu0
        %v1647 = vadd.f32 0.0, %v1646
        %v1648 = vpop.f32.mrf.mxu0
        %v1649 = vadd.f32 0.0, %v1648
        %1650 = vmatmul.bf16.gmra.mxu0 %v727
        %v1651 = vpop.f32.mrf.mxu0
        %v1652 = vadd.f32 0.0, %v1651
        %v1653 = vpop.f32.mrf.mxu0
        %v1654 = vadd.f32 0.0, %v1653
        %1655 = vmatmul.bf16.gmra.mxu0 %v730
        %v1656 = vpop.f32.mrf.mxu0
        %v1657 = vadd.f32 0.0, %v1656
        %v1658 = vpop.f32.mrf.mxu0
        %v1659 = vadd.f32 0.0, %v1658
        %1660 = vmatmul.bf16.gmra.mxu0 %v733
        %v1661 = vpop.f32.mrf.mxu0
        %v1662 = vadd.f32 0.0, %v1661
        %v1663 = vpop.f32.mrf.mxu0
        %v1664 = vadd.f32 0.0, %v1663
        %1665 = vmatmul.bf16.gmra.mxu0 %v736
        %v1666 = vpop.f32.mrf.mxu0
        %v1667 = vadd.f32 0.0, %v1666
        %v1668 = vpop.f32.mrf.mxu0
        %v1669 = vadd.f32 0.0, %v1668
        %1670 = vmatmul.bf16.gmra.mxu0 %v739
        %v1671 = vpop.f32.mrf.mxu0
        %v1672 = vadd.f32 0.0, %v1671
        %v1673 = vpop.f32.mrf.mxu0
        %v1674 = vadd.f32 0.0, %v1673
        %1675 = vmatmul.bf16.gmra.mxu0 %v742
        %v1676 = vpop.f32.mrf.mxu0
        %v1677 = vadd.f32 0.0, %v1676
        %v1678 = vpop.f32.mrf.mxu0
        %v1679 = vadd.f32 0.0, %v1678
        %1680 = vmatmul.bf16.gmra.mxu0 %v745
        %v1681 = vpop.f32.mrf.mxu0
        %v1682 = vadd.f32 0.0, %v1681
        %v1683 = vpop.f32.mrf.mxu0
        %v1684 = vadd.f32 0.0, %v1683
        %1685 = vmatmul.bf16.gmra.mxu0 %v748
        %v1686 = vpop.f32.mrf.mxu0
        %v1687 = vadd.f32 0.0, %v1686
        %v1688 = vpop.f32.mrf.mxu0
        %v1689 = vadd.f32 0.0, %v1688
        %1690 = vmatmul.bf16.gmra.mxu0 %v751
        %v1691 = vpop.f32.mrf.mxu0
        %v1692 = vadd.f32 0.0, %v1691
        %v1693 = vpop.f32.mrf.mxu0
        %v1694 = vadd.f32 0.0, %v1693
        %1695 = vmatmul.bf16.gmra.mxu0 %v754
        %v1696 = vpop.f32.mrf.mxu0
        %v1697 = vadd.f32 0.0, %v1696
        %v1698 = vpop.f32.mrf.mxu0
        %v1699 = vadd.f32 0.0, %v1698
        %1700 = vmatmul.bf16.gmra.mxu0 %v757
        %v1701 = vpop.f32.mrf.mxu0
        %v1702 = vadd.f32 0.0, %v1701
        %v1703 = vpop.f32.mrf.mxu0
        %v1704 = vadd.f32 0.0, %v1703
        %1705 = vmatmul.bf16.gmra.mxu0 %v760
        %v1706 = vpop.f32.mrf.mxu0
        %v1707 = vadd.f32 0.0, %v1706
        %v1708 = vpop.f32.mrf.mxu0
        %v1709 = vadd.f32 0.0, %v1708
        %1710 = vmatmul.bf16.gmra.mxu0 %v763
        %v1711 = vpop.f32.mrf.mxu0
        %v1712 = vadd.f32 0.0, %v1711
        %v1713 = vpop.f32.mrf.mxu0
        %v1714 = vadd.f32 0.0, %v1713
        %1715 = vmatmul.bf16.gmra.mxu0 %v1627
        %v1716 = vpop.f32.mrf.mxu0
        %v1717 = vadd.f32 0.0, %v1716
        %v1718 = vpop.f32.mrf.mxu0
        %v1719 = vadd.f32 0.0, %v1718
        %1720 = vdwg.mxu0
        %v1721 = vadd.f32 %v1533, %v1642
        %v1722 = vadd.f32 %v1534, %v1644
        %v1723 = vadd.f32 %v1535, %v1647
        %v1724 = vadd.f32 %v1536, %v1649
        %v1725 = vadd.f32 %v1537, %v1652
        %v1726 = vadd.f32 %v1538, %v1654
        %v1727 = vadd.f32 %v1539, %v1657
        %v1728 = vadd.f32 %v1540, %v1659
        %v1729 = vadd.f32 %v1541, %v1662
        %v1730 = vadd.f32 %v1542, %v1664
        %v1731 = vadd.f32 %v1543, %v1667
        %v1732 = vadd.f32 %v1544, %v1669
        %v1733 = vadd.f32 %v1545, %v1672
        %v1734 = vadd.f32 %v1546, %v1674
        %v1735 = vadd.f32 %v1547, %v1677
        %v1736 = vadd.f32 %v1548, %v1679
        %v1737 = vadd.f32 %v1549, %v1682
        %v1738 = vadd.f32 %v1550, %v1684
        %v1739 = vadd.f32 %v1551, %v1687
        %v1740 = vadd.f32 %v1552, %v1689
        %v1741 = vadd.f32 %v1553, %v1692
        %v1742 = vadd.f32 %v1554, %v1694
        %v1743 = vadd.f32 %v1555, %v1697
        %v1744 = vadd.f32 %v1556, %v1699
        %v1745 = vadd.f32 %v1557, %v1702
        %v1746 = vadd.f32 %v1558, %v1704
        %v1747 = vadd.f32 %v1559, %v1707
        %v1748 = vadd.f32 %v1560, %v1709
        %v1749 = vadd.f32 %v1561, %v1712
        %v1750 = vadd.f32 %v1562, %v1714
        %v1751 = vadd.f32 %v1563, %v1717
        %v1752 = vadd.f32 %v1564, %v1719
        %v1754 = vrot.slane %v272, 5
        %v1755 = vrot.slane %v1754, 4
        %v1756 = vrot.slane %v273, 5
        %v1757 = vsel %vm1096, %v1755, %v1756
        %v1758 = vrot.slane %v1756, 4
        %v1759 = vrot.slane %v274, 5
        %v1760 = vsel %vm1096, %v1758, %v1759
        %s1761 = scalar_lea.vmem %s1, 20
        %v1762 = vld [vmem:[%s1761] sm:$0xf]
        %v1763 = vunpack.c.l.b16 %v1757
        %v1764 = vunpack.c.l.b16 %v1760
        %v1765 = vpack.c.b16 %v1764, %v1763
        %v1767 = vsel %vm716, %v1765, 0
        %v1770 = vsel %vm765, %v1762, 0
        %1772 = vmatpush.bf16.msra.mxu0 0
        %1773 = vmatpush.bf16.msra.mxu0 0
        %1774 = vmatpush.bf16.msra.mxu0 0
        %1775 = vmatpush.bf16.msra.mxu0 0
        %1776 = vmatpush.bf16.msra.mxu0 0
        %1777 = vmatpush.bf16.msra.mxu0 0
        %1778 = vmatpush.bf16.msra.mxu0 0
        %1779 = vmatpush.bf16.msra.mxu0 %v1770
        %1780 = vmatmul.bf16.gmra.mxu0 %v1263
        %v1781 = vpop.f32.mrf.mxu0
        %v1782 = vadd.f32 0.0, %v1781
        %v1783 = vpop.f32.mrf.mxu0
        %v1784 = vadd.f32 0.0, %v1783
        %1785 = vmatmul.bf16.gmra.mxu0 %v1266
        %v1786 = vpop.f32.mrf.mxu0
        %v1787 = vadd.f32 0.0, %v1786
        %v1788 = vpop.f32.mrf.mxu0
        %v1789 = vadd.f32 0.0, %v1788
        %1790 = vmatmul.bf16.gmra.mxu0 %v1269
        %v1791 = vpop.f32.mrf.mxu0
        %v1792 = vadd.f32 0.0, %v1791
        %v1793 = vpop.f32.mrf.mxu0
        %v1794 = vadd.f32 0.0, %v1793
        %1795 = vmatmul.bf16.gmra.mxu0 %v1272
        %v1796 = vpop.f32.mrf.mxu0
        %v1797 = vadd.f32 0.0, %v1796
        %v1798 = vpop.f32.mrf.mxu0
        %v1799 = vadd.f32 0.0, %v1798
        %1800 = vmatmul.bf16.gmra.mxu0 %v1275
        %v1801 = vpop.f32.mrf.mxu0
        %v1802 = vadd.f32 0.0, %v1801
        %v1803 = vpop.f32.mrf.mxu0
        %v1804 = vadd.f32 0.0, %v1803
        %1805 = vmatmul.bf16.gmra.mxu0 %v1278
        %v1806 = vpop.f32.mrf.mxu0
        %v1807 = vadd.f32 0.0, %v1806
        %v1808 = vpop.f32.mrf.mxu0
        %v1809 = vadd.f32 0.0, %v1808
        %1810 = vmatmul.bf16.gmra.mxu0 %v1281
        %v1811 = vpop.f32.mrf.mxu0
        %v1812 = vadd.f32 0.0, %v1811
        %v1813 = vpop.f32.mrf.mxu0
        %v1814 = vadd.f32 0.0, %v1813
        %1815 = vmatmul.bf16.gmra.mxu0 %v1284
        %v1816 = vpop.f32.mrf.mxu0
        %v1817 = vadd.f32 0.0, %v1816
        %v1818 = vpop.f32.mrf.mxu0
        %v1819 = vadd.f32 0.0, %v1818
        %1820 = vmatmul.bf16.gmra.mxu0 %v1287
        %v1821 = vpop.f32.mrf.mxu0
        %v1822 = vadd.f32 0.0, %v1821
        %v1823 = vpop.f32.mrf.mxu0
        %v1824 = vadd.f32 0.0, %v1823
        %1825 = vmatmul.bf16.gmra.mxu0 %v1290
        %v1826 = vpop.f32.mrf.mxu0
        %v1827 = vadd.f32 0.0, %v1826
        %v1828 = vpop.f32.mrf.mxu0
        %v1829 = vadd.f32 0.0, %v1828
        %1830 = vmatmul.bf16.gmra.mxu0 %v1293
        %v1831 = vpop.f32.mrf.mxu0
        %v1832 = vadd.f32 0.0, %v1831
        %v1833 = vpop.f32.mrf.mxu0
        %v1834 = vadd.f32 0.0, %v1833
        %1835 = vmatmul.bf16.gmra.mxu0 %v1296
        %v1836 = vpop.f32.mrf.mxu0
        %v1837 = vadd.f32 0.0, %v1836
        %v1838 = vpop.f32.mrf.mxu0
        %v1839 = vadd.f32 0.0, %v1838
        %1840 = vmatmul.bf16.gmra.mxu0 %v1299
        %v1841 = vpop.f32.mrf.mxu0
        %v1842 = vadd.f32 0.0, %v1841
        %v1843 = vpop.f32.mrf.mxu0
        %v1844 = vadd.f32 0.0, %v1843
        %1845 = vmatmul.bf16.gmra.mxu0 %v1302
        %v1846 = vpop.f32.mrf.mxu0
        %v1847 = vadd.f32 0.0, %v1846
        %v1848 = vpop.f32.mrf.mxu0
        %v1849 = vadd.f32 0.0, %v1848
        %1850 = vmatmul.bf16.gmra.mxu0 %v1305
        %v1851 = vpop.f32.mrf.mxu0
        %v1852 = vadd.f32 0.0, %v1851
        %v1853 = vpop.f32.mrf.mxu0
        %v1854 = vadd.f32 0.0, %v1853
        %1855 = vmatmul.bf16.gmra.mxu0 %v1767
        %v1856 = vpop.f32.mrf.mxu0
        %v1857 = vadd.f32 0.0, %v1856
        %v1858 = vpop.f32.mrf.mxu0
        %v1859 = vadd.f32 0.0, %v1858
        %1860 = vdwg.mxu0
        %v1861 = vadd.f32 %v1721, %v1782
        %v1862 = vadd.f32 %v1722, %v1784
        %v1863 = vadd.f32 %v1723, %v1787
        %v1864 = vadd.f32 %v1724, %v1789
        %v1865 = vadd.f32 %v1725, %v1792
        %v1866 = vadd.f32 %v1726, %v1794
        %v1867 = vadd.f32 %v1727, %v1797
        %v1868 = vadd.f32 %v1728, %v1799
        %v1869 = vadd.f32 %v1729, %v1802
        %v1870 = vadd.f32 %v1730, %v1804
        %v1871 = vadd.f32 %v1731, %v1807
        %v1872 = vadd.f32 %v1732, %v1809
        %v1873 = vadd.f32 %v1733, %v1812
        %v1874 = vadd.f32 %v1734, %v1814
        %v1875 = vadd.f32 %v1735, %v1817
        %v1876 = vadd.f32 %v1736, %v1819
        %v1877 = vadd.f32 %v1737, %v1822
        %v1878 = vadd.f32 %v1738, %v1824
        %v1879 = vadd.f32 %v1739, %v1827
        %v1880 = vadd.f32 %v1740, %v1829
        %v1881 = vadd.f32 %v1741, %v1832
        %v1882 = vadd.f32 %v1742, %v1834
        %v1883 = vadd.f32 %v1743, %v1837
        %v1884 = vadd.f32 %v1744, %v1839
        %v1885 = vadd.f32 %v1745, %v1842
        %v1886 = vadd.f32 %v1746, %v1844
        %v1887 = vadd.f32 %v1747, %v1847
        %v1888 = vadd.f32 %v1748, %v1849
        %v1889 = vadd.f32 %v1749, %v1852
        %v1890 = vadd.f32 %v1750, %v1854
        %v1891 = vadd.f32 %v1751, %v1857
        %v1892 = vadd.f32 %v1752, %v1859
        %s1893 = scalar_lea.vmem %s1, 24
        %v1894 = vld [vmem:[%s1893] sm:$0xf]
        %v1897 = vunpack.c.l.b16 %v275
        %v1898 = vunpack.c.l.b16 %v276
        %v1899 = vpack.c.b16 %v1898, %v1897
        %v1901 = vsel %vm716, %v1899, 0
        %v1904 = vsel %vm765, %v1894, 0
        %1906 = vmatpush.bf16.msra.mxu0 0
        %1907 = vmatpush.bf16.msra.mxu0 0
        %1908 = vmatpush.bf16.msra.mxu0 0
        %1909 = vmatpush.bf16.msra.mxu0 0
        %1910 = vmatpush.bf16.msra.mxu0 0
        %1911 = vmatpush.bf16.msra.mxu0 0
        %1912 = vmatpush.bf16.msra.mxu0 0
        %1913 = vmatpush.bf16.msra.mxu0 %v1904
        %1914 = vmatmul.bf16.gmra.mxu0 %v945
        %v1915 = vpop.f32.mrf.mxu0
        %v1916 = vadd.f32 0.0, %v1915
        %v1917 = vpop.f32.mrf.mxu0
        %v1918 = vadd.f32 0.0, %v1917
        %1919 = vmatmul.bf16.gmra.mxu0 %v948
        %v1920 = vpop.f32.mrf.mxu0
        %v1921 = vadd.f32 0.0, %v1920
        %v1922 = vpop.f32.mrf.mxu0
        %v1923 = vadd.f32 0.0, %v1922
        %1924 = vmatmul.bf16.gmra.mxu0 %v951
        %v1925 = vpop.f32.mrf.mxu0
        %v1926 = vadd.f32 0.0, %v1925
        %v1927 = vpop.f32.mrf.mxu0
        %v1928 = vadd.f32 0.0, %v1927
        %1929 = vmatmul.bf16.gmra.mxu0 %v954
        %v1930 = vpop.f32.mrf.mxu0
        %v1931 = vadd.f32 0.0, %v1930
        %v1932 = vpop.f32.mrf.mxu0
        %v1933 = vadd.f32 0.0, %v1932
        %1934 = vmatmul.bf16.gmra.mxu0 %v957
        %v1935 = vpop.f32.mrf.mxu0
        %v1936 = vadd.f32 0.0, %v1935
        %v1937 = vpop.f32.mrf.mxu0
        %v1938 = vadd.f32 0.0, %v1937
        %1939 = vmatmul.bf16.gmra.mxu0 %v960
        %v1940 = vpop.f32.mrf.mxu0
        %v1941 = vadd.f32 0.0, %v1940
        %v1942 = vpop.f32.mrf.mxu0
        %v1943 = vadd.f32 0.0, %v1942
        %1944 = vmatmul.bf16.gmra.mxu0 %v963
        %v1945 = vpop.f32.mrf.mxu0
        %v1946 = vadd.f32 0.0, %v1945
        %v1947 = vpop.f32.mrf.mxu0
        %v1948 = vadd.f32 0.0, %v1947
        %1949 = vmatmul.bf16.gmra.mxu0 %v966
        %v1950 = vpop.f32.mrf.mxu0
        %v1951 = vadd.f32 0.0, %v1950
        %v1952 = vpop.f32.mrf.mxu0
        %v1953 = vadd.f32 0.0, %v1952
        %1954 = vmatmul.bf16.gmra.mxu0 %v969
        %v1955 = vpop.f32.mrf.mxu0
        %v1956 = vadd.f32 0.0, %v1955
        %v1957 = vpop.f32.mrf.mxu0
        %v1958 = vadd.f32 0.0, %v1957
        %1959 = vmatmul.bf16.gmra.mxu0 %v972
        %v1960 = vpop.f32.mrf.mxu0
        %v1961 = vadd.f32 0.0, %v1960
        %v1962 = vpop.f32.mrf.mxu0
        %v1963 = vadd.f32 0.0, %v1962
        %1964 = vmatmul.bf16.gmra.mxu0 %v975
        %v1965 = vpop.f32.mrf.mxu0
        %v1966 = vadd.f32 0.0, %v1965
        %v1967 = vpop.f32.mrf.mxu0
        %v1968 = vadd.f32 0.0, %v1967
        %1969 = vmatmul.bf16.gmra.mxu0 %v978
        %v1970 = vpop.f32.mrf.mxu0
        %v1971 = vadd.f32 0.0, %v1970
        %v1972 = vpop.f32.mrf.mxu0
        %v1973 = vadd.f32 0.0, %v1972
        %1974 = vmatmul.bf16.gmra.mxu0 %v981
        %v1975 = vpop.f32.mrf.mxu0
        %v1976 = vadd.f32 0.0, %v1975
        %v1977 = vpop.f32.mrf.mxu0
        %v1978 = vadd.f32 0.0, %v1977
        %1979 = vmatmul.bf16.gmra.mxu0 %v984
        %v1980 = vpop.f32.mrf.mxu0
        %v1981 = vadd.f32 0.0, %v1980
        %v1982 = vpop.f32.mrf.mxu0
        %v1983 = vadd.f32 0.0, %v1982
        %1984 = vmatmul.bf16.gmra.mxu0 %v1439
        %v1985 = vpop.f32.mrf.mxu0
        %v1986 = vadd.f32 0.0, %v1985
        %v1987 = vpop.f32.mrf.mxu0
        %v1988 = vadd.f32 0.0, %v1987
        %1989 = vmatmul.bf16.gmra.mxu0 %v1901
        %v1990 = vpop.f32.mrf.mxu0
        %v1991 = vadd.f32 0.0, %v1990
        %v1992 = vpop.f32.mrf.mxu0
        %v1993 = vadd.f32 0.0, %v1992
        %1994 = vdwg.mxu0
        %v1995 = vadd.f32 %v1861, %v1916
        %v1996 = vadd.f32 %v1862, %v1918
        %v1997 = vadd.f32 %v1863, %v1921
        %v1998 = vadd.f32 %v1864, %v1923
        %v1999 = vadd.f32 %v1865, %v1926
        %v2000 = vadd.f32 %v1866, %v1928
        %v2001 = vadd.f32 %v1867, %v1931
        %v2002 = vadd.f32 %v1868, %v1933
        %v2003 = vadd.f32 %v1869, %v1936
        %v2004 = vadd.f32 %v1870, %v1938
        %v2005 = vadd.f32 %v1871, %v1941
        %v2006 = vadd.f32 %v1872, %v1943
        %v2007 = vadd.f32 %v1873, %v1946
        %v2008 = vadd.f32 %v1874, %v1948
        %v2009 = vadd.f32 %v1875, %v1951
        %v2010 = vadd.f32 %v1876, %v1953
        %v2011 = vadd.f32 %v1877, %v1956
        %v2012 = vadd.f32 %v1878, %v1958
        %v2013 = vadd.f32 %v1879, %v1961
        %v2014 = vadd.f32 %v1880, %v1963
        %v2015 = vadd.f32 %v1881, %v1966
        %v2016 = vadd.f32 %v1882, %v1968
        %v2017 = vadd.f32 %v1883, %v1971
        %v2018 = vadd.f32 %v1884, %v1973
        %v2019 = vadd.f32 %v1885, %v1976
        %v2020 = vadd.f32 %v1886, %v1978
        %v2021 = vadd.f32 %v1887, %v1981
        %v2022 = vadd.f32 %v1888, %v1983
        %v2023 = vadd.f32 %v1889, %v1986
        %v2024 = vadd.f32 %v1890, %v1988
        %v2025 = vadd.f32 %v1891, %v1991
        %v2026 = vadd.f32 %v1892, %v1993
        %v2028 = vshrl.u32 %v275, 16
        %v2030 = vrot.slane %v2028, 4
        %v2031 = vshll.u32 %v275, 16
        %v2033 = vrot.slane %v2031, 5
        %v2034 = vor.u32 %v2030, %v2033
        %v2035 = vrot.slane %v2034, 4
        %v2037 = vshll.u32 %v276, 16
        %v2039 = vrot.slane %v2037, 5
        %v2040 = vsel %vm281, %v2035, %v2039
        %v2041 = vshrl.u32 %v276, 16
        %v2043 = vrot.slane %v2041, 4
        %v2044 = vor.u32 %v2043, %v2039
        %v2045 = vrot.slane %v2044, 4
        %v2047 = vshll.u32 %v277, 16
        %v2049 = vrot.slane %v2047, 5
        %v2050 = vsel %vm281, %v2045, %v2049
        %s2051 = scalar_lea.vmem %s1, 28
        %v2052 = vld [vmem:[%s2051] sm:$0xf]
        %v2053 = vunpack.c.l.b16 %v2040
        %v2054 = vunpack.c.l.b16 %v2050
        %v2055 = vpack.c.b16 %v2054, %v2053
        %v2057 = vsel %vm716, %v2055, 0
        %v2060 = vsel %vm765, %v2052, 0
        %2062 = vmatpush.bf16.msra.mxu0 0
        %2063 = vmatpush.bf16.msra.mxu0 0
        %2064 = vmatpush.bf16.msra.mxu0 0
        %2065 = vmatpush.bf16.msra.mxu0 0
        %2066 = vmatpush.bf16.msra.mxu0 0
        %2067 = vmatpush.bf16.msra.mxu0 0
        %2068 = vmatpush.bf16.msra.mxu0 0
        %2069 = vmatpush.bf16.msra.mxu0 %v2060
        %2070 = vmatmul.bf16.gmra.mxu0 %v724
        %v2071 = vpop.f32.mrf.mxu0
        %v2072 = vadd.f32 0.0, %v2071
        %v2073 = vpop.f32.mrf.mxu0
        %v2074 = vadd.f32 0.0, %v2073
        %2075 = vmatmul.bf16.gmra.mxu0 %v727
        %v2076 = vpop.f32.mrf.mxu0
        %v2077 = vadd.f32 0.0, %v2076
        %v2078 = vpop.f32.mrf.mxu0
        %v2079 = vadd.f32 0.0, %v2078
        %2080 = vmatmul.bf16.gmra.mxu0 %v730
        %v2081 = vpop.f32.mrf.mxu0
        %v2082 = vadd.f32 0.0, %v2081
        %v2083 = vpop.f32.mrf.mxu0
        %v2084 = vadd.f32 0.0, %v2083
        %2085 = vmatmul.bf16.gmra.mxu0 %v733
        %v2086 = vpop.f32.mrf.mxu0
        %v2087 = vadd.f32 0.0, %v2086
        %v2088 = vpop.f32.mrf.mxu0
        %v2089 = vadd.f32 0.0, %v2088
        %2090 = vmatmul.bf16.gmra.mxu0 %v736
        %v2091 = vpop.f32.mrf.mxu0
        %v2092 = vadd.f32 0.0, %v2091
        %v2093 = vpop.f32.mrf.mxu0
        %v2094 = vadd.f32 0.0, %v2093
        %2095 = vmatmul.bf16.gmra.mxu0 %v739
        %v2096 = vpop.f32.mrf.mxu0
        %v2097 = vadd.f32 0.0, %v2096
        %v2098 = vpop.f32.mrf.mxu0
        %v2099 = vadd.f32 0.0, %v2098
        %2100 = vmatmul.bf16.gmra.mxu0 %v742
        %v2101 = vpop.f32.mrf.mxu0
        %v2102 = vadd.f32 0.0, %v2101
        %v2103 = vpop.f32.mrf.mxu0
        %v2104 = vadd.f32 0.0, %v2103
        %2105 = vmatmul.bf16.gmra.mxu0 %v745
        %v2106 = vpop.f32.mrf.mxu0
        %v2107 = vadd.f32 0.0, %v2106
        %v2108 = vpop.f32.mrf.mxu0
        %v2109 = vadd.f32 0.0, %v2108
        %2110 = vmatmul.bf16.gmra.mxu0 %v748
        %v2111 = vpop.f32.mrf.mxu0
        %v2112 = vadd.f32 0.0, %v2111
        %v2113 = vpop.f32.mrf.mxu0
        %v2114 = vadd.f32 0.0, %v2113
        %2115 = vmatmul.bf16.gmra.mxu0 %v751
        %v2116 = vpop.f32.mrf.mxu0
        %v2117 = vadd.f32 0.0, %v2116
        %v2118 = vpop.f32.mrf.mxu0
        %v2119 = vadd.f32 0.0, %v2118
        %2120 = vmatmul.bf16.gmra.mxu0 %v754
        %v2121 = vpop.f32.mrf.mxu0
        %v2122 = vadd.f32 0.0, %v2121
        %v2123 = vpop.f32.mrf.mxu0
        %v2124 = vadd.f32 0.0, %v2123
        %2125 = vmatmul.bf16.gmra.mxu0 %v757
        %v2126 = vpop.f32.mrf.mxu0
        %v2127 = vadd.f32 0.0, %v2126
        %v2128 = vpop.f32.mrf.mxu0
        %v2129 = vadd.f32 0.0, %v2128
        %2130 = vmatmul.bf16.gmra.mxu0 %v760
        %v2131 = vpop.f32.mrf.mxu0
        %v2132 = vadd.f32 0.0, %v2131
        %v2133 = vpop.f32.mrf.mxu0
        %v2134 = vadd.f32 0.0, %v2133
        %2135 = vmatmul.bf16.gmra.mxu0 %v763
        %v2136 = vpop.f32.mrf.mxu0
        %v2137 = vadd.f32 0.0, %v2136
        %v2138 = vpop.f32.mrf.mxu0
        %v2139 = vadd.f32 0.0, %v2138
        %2140 = vmatmul.bf16.gmra.mxu0 %v1627
        %v2141 = vpop.f32.mrf.mxu0
        %v2142 = vadd.f32 0.0, %v2141
        %v2143 = vpop.f32.mrf.mxu0
        %v2144 = vadd.f32 0.0, %v2143
        %2145 = vmatmul.bf16.gmra.mxu0 %v2057
        %v2146 = vpop.f32.mrf.mxu0
        %v2147 = vadd.f32 0.0, %v2146
        %v2148 = vpop.f32.mrf.mxu0
        %v2149 = vadd.f32 0.0, %v2148
        %2150 = vdwg.mxu0
        %v2151 = vadd.f32 %v1995, %v2072
        %v2152 = vadd.f32 %v1996, %v2074
        %v2153 = vadd.f32 %v1997, %v2077
        %v2154 = vadd.f32 %v1998, %v2079
        %v2155 = vadd.f32 %v1999, %v2082
        %v2156 = vadd.f32 %v2000, %v2084
        %v2157 = vadd.f32 %v2001, %v2087
        %v2158 = vadd.f32 %v2002, %v2089
        %v2159 = vadd.f32 %v2003, %v2092
        %v2160 = vadd.f32 %v2004, %v2094
        %v2161 = vadd.f32 %v2005, %v2097
        %v2162 = vadd.f32 %v2006, %v2099
        %v2163 = vadd.f32 %v2007, %v2102
        %v2164 = vadd.f32 %v2008, %v2104
        %v2165 = vadd.f32 %v2009, %v2107
        %v2166 = vadd.f32 %v2010, %v2109
        %v2167 = vadd.f32 %v2011, %v2112
        %v2168 = vadd.f32 %v2012, %v2114
        %v2169 = vadd.f32 %v2013, %v2117
        %v2170 = vadd.f32 %v2014, %v2119
        %v2171 = vadd.f32 %v2015, %v2122
        %v2172 = vadd.f32 %v2016, %v2124
        %v2173 = vadd.f32 %v2017, %v2127
        %v2174 = vadd.f32 %v2018, %v2129
        %v2175 = vadd.f32 %v2019, %v2132
        %v2176 = vadd.f32 %v2020, %v2134
        %v2177 = vadd.f32 %v2021, %v2137
        %v2178 = vadd.f32 %v2022, %v2139
        %v2179 = vadd.f32 %v2023, %v2142
        %v2180 = vadd.f32 %v2024, %v2144
        %v2181 = vadd.f32 %v2025, %v2147
        %v2182 = vadd.f32 %v2026, %v2149
        %v2184 = vrot.slane %v275, 5
        %v2185 = vrot.slane %v2184, 4
        %v2186 = vrot.slane %v276, 5
        %v2187 = vsel %vm1096, %v2185, %v2186
        %v2188 = vrot.slane %v2186, 4
        %v2189 = vrot.slane %v277, 5
        %v2190 = vsel %vm1096, %v2188, %v2189
        %s2191 = scalar_lea.vmem %s1, 32
        %v2192 = vld [vmem:[%s2191] sm:$0xf]
        %v2193 = vunpack.c.l.b16 %v2187
        %v2194 = vunpack.c.l.b16 %v2190
        %v2195 = vpack.c.b16 %v2194, %v2193
        %v2197 = vsel %vm716, %v2195, 0
        %v2200 = vsel %vm765, %v2192, 0
        %2202 = vmatpush.bf16.msra.mxu0 0
        %2203 = vmatpush.bf16.msra.mxu0 0
        %2204 = vmatpush.bf16.msra.mxu0 0
        %2205 = vmatpush.bf16.msra.mxu0 0
        %2206 = vmatpush.bf16.msra.mxu0 0
        %2207 = vmatpush.bf16.msra.mxu0 0
        %2208 = vmatpush.bf16.msra.mxu0 0
        %2209 = vmatpush.bf16.msra.mxu0 %v2200
        %2210 = vmatmul.bf16.gmra.mxu0 %v1266
        %v2211 = vpop.f32.mrf.mxu0
        %v2212 = vadd.f32 0.0, %v2211
        %v2213 = vpop.f32.mrf.mxu0
        %v2214 = vadd.f32 0.0, %v2213
        %2215 = vmatmul.bf16.gmra.mxu0 %v1269
        %v2216 = vpop.f32.mrf.mxu0
        %v2217 = vadd.f32 0.0, %v2216
        %v2218 = vpop.f32.mrf.mxu0
        %v2219 = vadd.f32 0.0, %v2218
        %2220 = vmatmul.bf16.gmra.mxu0 %v1272
        %v2221 = vpop.f32.mrf.mxu0
        %v2222 = vadd.f32 0.0, %v2221
        %v2223 = vpop.f32.mrf.mxu0
        %v2224 = vadd.f32 0.0, %v2223
        %2225 = vmatmul.bf16.gmra.mxu0 %v1275
        %v2226 = vpop.f32.mrf.mxu0
        %v2227 = vadd.f32 0.0, %v2226
        %v2228 = vpop.f32.mrf.mxu0
        %v2229 = vadd.f32 0.0, %v2228
        %2230 = vmatmul.bf16.gmra.mxu0 %v1278
        %v2231 = vpop.f32.mrf.mxu0
        %v2232 = vadd.f32 0.0, %v2231
        %v2233 = vpop.f32.mrf.mxu0
        %v2234 = vadd.f32 0.0, %v2233
        %2235 = vmatmul.bf16.gmra.mxu0 %v1281
        %v2236 = vpop.f32.mrf.mxu0
        %v2237 = vadd.f32 0.0, %v2236
        %v2238 = vpop.f32.mrf.mxu0
        %v2239 = vadd.f32 0.0, %v2238
        %2240 = vmatmul.bf16.gmra.mxu0 %v1284
        %v2241 = vpop.f32.mrf.mxu0
        %v2242 = vadd.f32 0.0, %v2241
        %v2243 = vpop.f32.mrf.mxu0
        %v2244 = vadd.f32 0.0, %v2243
        %2245 = vmatmul.bf16.gmra.mxu0 %v1287
        %v2246 = vpop.f32.mrf.mxu0
        %v2247 = vadd.f32 0.0, %v2246
        %v2248 = vpop.f32.mrf.mxu0
        %v2249 = vadd.f32 0.0, %v2248
        %2250 = vmatmul.bf16.gmra.mxu0 %v1290
        %v2251 = vpop.f32.mrf.mxu0
        %v2252 = vadd.f32 0.0, %v2251
        %v2253 = vpop.f32.mrf.mxu0
        %v2254 = vadd.f32 0.0, %v2253
        %2255 = vmatmul.bf16.gmra.mxu0 %v1293
        %v2256 = vpop.f32.mrf.mxu0
        %v2257 = vadd.f32 0.0, %v2256
        %v2258 = vpop.f32.mrf.mxu0
        %v2259 = vadd.f32 0.0, %v2258
        %2260 = vmatmul.bf16.gmra.mxu0 %v1296
        %v2261 = vpop.f32.mrf.mxu0
        %v2262 = vadd.f32 0.0, %v2261
        %v2263 = vpop.f32.mrf.mxu0
        %v2264 = vadd.f32 0.0, %v2263
        %2265 = vmatmul.bf16.gmra.mxu0 %v1299
        %v2266 = vpop.f32.mrf.mxu0
        %v2267 = vadd.f32 0.0, %v2266
        %v2268 = vpop.f32.mrf.mxu0
        %v2269 = vadd.f32 0.0, %v2268
        %2270 = vmatmul.bf16.gmra.mxu0 %v1302
        %v2271 = vpop.f32.mrf.mxu0
        %v2272 = vadd.f32 0.0, %v2271
        %v2273 = vpop.f32.mrf.mxu0
        %v2274 = vadd.f32 0.0, %v2273
        %2275 = vmatmul.bf16.gmra.mxu0 %v1305
        %v2276 = vpop.f32.mrf.mxu0
        %v2277 = vadd.f32 0.0, %v2276
        %v2278 = vpop.f32.mrf.mxu0
        %v2279 = vadd.f32 0.0, %v2278
        %2280 = vmatmul.bf16.gmra.mxu0 %v1767
        %v2281 = vpop.f32.mrf.mxu0
        %v2282 = vadd.f32 0.0, %v2281
        %v2283 = vpop.f32.mrf.mxu0
        %v2284 = vadd.f32 0.0, %v2283
        %2285 = vmatmul.bf16.gmra.mxu0 %v2197
        %v2286 = vpop.f32.mrf.mxu0
        %v2287 = vadd.f32 0.0, %v2286
        %v2288 = vpop.f32.mrf.mxu0
        %v2289 = vadd.f32 0.0, %v2288
        %2290 = vdwg.mxu0
        %v2291 = vadd.f32 %v2151, %v2212
        %v2292 = vadd.f32 %v2152, %v2214
        %v2293 = vadd.f32 %v2153, %v2217
        %v2294 = vadd.f32 %v2154, %v2219
        %v2295 = vadd.f32 %v2155, %v2222
        %v2296 = vadd.f32 %v2156, %v2224
        %v2297 = vadd.f32 %v2157, %v2227
        %v2298 = vadd.f32 %v2158, %v2229
        %v2299 = vadd.f32 %v2159, %v2232
        %v2300 = vadd.f32 %v2160, %v2234
        %v2301 = vadd.f32 %v2161, %v2237
        %v2302 = vadd.f32 %v2162, %v2239
        %v2303 = vadd.f32 %v2163, %v2242
        %v2304 = vadd.f32 %v2164, %v2244
        %v2305 = vadd.f32 %v2165, %v2247
        %v2306 = vadd.f32 %v2166, %v2249
        %v2307 = vadd.f32 %v2167, %v2252
        %v2308 = vadd.f32 %v2168, %v2254
        %v2309 = vadd.f32 %v2169, %v2257
        %v2310 = vadd.f32 %v2170, %v2259
        %v2311 = vadd.f32 %v2171, %v2262
        %v2312 = vadd.f32 %v2172, %v2264
        %v2313 = vadd.f32 %v2173, %v2267
        %v2314 = vadd.f32 %v2174, %v2269
        %v2315 = vadd.f32 %v2175, %v2272
        %v2316 = vadd.f32 %v2176, %v2274
        %v2317 = vadd.f32 %v2177, %v2277
        %v2318 = vadd.f32 %v2178, %v2279
        %v2319 = vadd.f32 %v2179, %v2282
        %v2320 = vadd.f32 %v2180, %v2284
        %v2321 = vadd.f32 %v2181, %v2287
        %v2322 = vadd.f32 %v2182, %v2289
        %v2323 = vld [vmem:[%s2] sm:$0x1]
        %v2324 = vperm.slane %v2323, 0
        %v2325 = vadd.f32 %v2291, %v2324
        %v2326 = vadd.f32 %v2292, %v2324
        %v2327 = vadd.f32 %v2293, %v2324
        %v2328 = vadd.f32 %v2294, %v2324
        %v2329 = vadd.f32 %v2295, %v2324
        %v2330 = vadd.f32 %v2296, %v2324
        %v2331 = vadd.f32 %v2297, %v2324
        %v2332 = vadd.f32 %v2298, %v2324
        %v2333 = vadd.f32 %v2299, %v2324
        %v2334 = vadd.f32 %v2300, %v2324
        %v2335 = vadd.f32 %v2301, %v2324
        %v2336 = vadd.f32 %v2302, %v2324
        %v2337 = vadd.f32 %v2303, %v2324
        %v2338 = vadd.f32 %v2304, %v2324
        %v2339 = vadd.f32 %v2305, %v2324
        %v2340 = vadd.f32 %v2306, %v2324
        %v2341 = vadd.f32 %v2307, %v2324
        %v2342 = vadd.f32 %v2308, %v2324
        %v2343 = vadd.f32 %v2309, %v2324
        %v2344 = vadd.f32 %v2310, %v2324
        %v2345 = vadd.f32 %v2311, %v2324
        %v2346 = vadd.f32 %v2312, %v2324
        %v2347 = vadd.f32 %v2313, %v2324
        %v2348 = vadd.f32 %v2314, %v2324
        %v2349 = vadd.f32 %v2315, %v2324
        %v2350 = vadd.f32 %v2316, %v2324
        %v2351 = vadd.f32 %v2317, %v2324
        %v2352 = vadd.f32 %v2318, %v2324
        %v2353 = vadd.f32 %v2319, %v2324
        %v2354 = vadd.f32 %v2320, %v2324
        %v2355 = vadd.f32 %v2321, %v2324
        %v2356 = vadd.f32 %v2322, %v2324
        %vm2357 = vcmp.ge.f32.partialorder %v2325, 0.0
        %vm2358 = vcmp.ge.f32.partialorder %v2326, 0.0
        %vm2359 = vcmp.ge.f32.partialorder %v2327, 0.0
        %vm2360 = vcmp.ge.f32.partialorder %v2328, 0.0
        %vm2361 = vcmp.ge.f32.partialorder %v2329, 0.0
        %vm2362 = vcmp.ge.f32.partialorder %v2330, 0.0
        %vm2363 = vcmp.ge.f32.partialorder %v2331, 0.0
        %vm2364 = vcmp.ge.f32.partialorder %v2332, 0.0
        %vm2365 = vcmp.ge.f32.partialorder %v2333, 0.0
        %vm2366 = vcmp.ge.f32.partialorder %v2334, 0.0
        %vm2367 = vcmp.ge.f32.partialorder %v2335, 0.0
        %vm2368 = vcmp.ge.f32.partialorder %v2336, 0.0
        %vm2369 = vcmp.ge.f32.partialorder %v2337, 0.0
        %vm2370 = vcmp.ge.f32.partialorder %v2338, 0.0
        %vm2371 = vcmp.ge.f32.partialorder %v2339, 0.0
        %vm2372 = vcmp.ge.f32.partialorder %v2340, 0.0
        %vm2373 = vcmp.ge.f32.partialorder %v2341, 0.0
        %vm2374 = vcmp.ge.f32.partialorder %v2342, 0.0
        %vm2375 = vcmp.ge.f32.partialorder %v2343, 0.0
        %vm2376 = vcmp.ge.f32.partialorder %v2344, 0.0
        %vm2377 = vcmp.ge.f32.partialorder %v2345, 0.0
        %vm2378 = vcmp.ge.f32.partialorder %v2346, 0.0
        %vm2379 = vcmp.ge.f32.partialorder %v2347, 0.0
        %vm2380 = vcmp.ge.f32.partialorder %v2348, 0.0
        %vm2381 = vcmp.ge.f32.partialorder %v2349, 0.0
        %vm2382 = vcmp.ge.f32.partialorder %v2350, 0.0
        %vm2383 = vcmp.ge.f32.partialorder %v2351, 0.0
        %vm2384 = vcmp.ge.f32.partialorder %v2352, 0.0
        %vm2385 = vcmp.ge.f32.partialorder %v2353, 0.0
        %vm2386 = vcmp.ge.f32.partialorder %v2354, 0.0
        %vm2387 = vcmp.ge.f32.partialorder %v2355, 0.0
        %vm2388 = vcmp.ge.f32.partialorder %v2356, 0.0
        %v2389 = vmul.f32 %v2325, 0.2
        %v2390 = vmul.f32 %v2326, 0.2
        %v2391 = vmul.f32 %v2327, 0.2
        %v2392 = vmul.f32 %v2328, 0.2
        %v2393 = vmul.f32 %v2329, 0.2
        %v2394 = vmul.f32 %v2330, 0.2
        %v2395 = vmul.f32 %v2331, 0.2
        %v2396 = vmul.f32 %v2332, 0.2
        %v2397 = vmul.f32 %v2333, 0.2
        %v2398 = vmul.f32 %v2334, 0.2
        %v2399 = vmul.f32 %v2335, 0.2
        %v2400 = vmul.f32 %v2336, 0.2
        %v2401 = vmul.f32 %v2337, 0.2
        %v2402 = vmul.f32 %v2338, 0.2
        %v2403 = vmul.f32 %v2339, 0.2
        %v2404 = vmul.f32 %v2340, 0.2
        %v2405 = vmul.f32 %v2341, 0.2
        %v2406 = vmul.f32 %v2342, 0.2
        %v2407 = vmul.f32 %v2343, 0.2
        %v2408 = vmul.f32 %v2344, 0.2
        %v2409 = vmul.f32 %v2345, 0.2
        %v2410 = vmul.f32 %v2346, 0.2
        %v2411 = vmul.f32 %v2347, 0.2
        %v2412 = vmul.f32 %v2348, 0.2
        %v2413 = vmul.f32 %v2349, 0.2
        %v2414 = vmul.f32 %v2350, 0.2
        %v2415 = vmul.f32 %v2351, 0.2
        %v2416 = vmul.f32 %v2352, 0.2
        %v2417 = vmul.f32 %v2353, 0.2
        %v2418 = vmul.f32 %v2354, 0.2
        %v2419 = vmul.f32 %v2355, 0.2
        %v2420 = vmul.f32 %v2356, 0.2
        %v2421 = vsel %vm2357, %v2325, %v2389
        %v2422 = vsel %vm2358, %v2326, %v2390
        %v2423 = vsel %vm2359, %v2327, %v2391
        %v2424 = vsel %vm2360, %v2328, %v2392
        %v2425 = vsel %vm2361, %v2329, %v2393
        %v2426 = vsel %vm2362, %v2330, %v2394
        %v2427 = vsel %vm2363, %v2331, %v2395
        %v2428 = vsel %vm2364, %v2332, %v2396
        %v2429 = vsel %vm2365, %v2333, %v2397
        %v2430 = vsel %vm2366, %v2334, %v2398
        %v2431 = vsel %vm2367, %v2335, %v2399
        %v2432 = vsel %vm2368, %v2336, %v2400
        %v2433 = vsel %vm2369, %v2337, %v2401
        %v2434 = vsel %vm2370, %v2338, %v2402
        %v2435 = vsel %vm2371, %v2339, %v2403
        %v2436 = vsel %vm2372, %v2340, %v2404
        %v2437 = vsel %vm2373, %v2341, %v2405
        %v2438 = vsel %vm2374, %v2342, %v2406
        %v2439 = vsel %vm2375, %v2343, %v2407
        %v2440 = vsel %vm2376, %v2344, %v2408
        %v2441 = vsel %vm2377, %v2345, %v2409
        %v2442 = vsel %vm2378, %v2346, %v2410
        %v2443 = vsel %vm2379, %v2347, %v2411
        %v2444 = vsel %vm2380, %v2348, %v2412
        %v2445 = vsel %vm2381, %v2349, %v2413
        %v2446 = vsel %vm2382, %v2350, %v2414
        %v2447 = vsel %vm2383, %v2351, %v2415
        %v2448 = vsel %vm2384, %v2352, %v2416
        %v2449 = vsel %vm2385, %v2353, %v2417
        %v2450 = vsel %vm2386, %v2354, %v2418
        %v2451 = vsel %vm2387, %v2355, %v2419
        %v2452 = vsel %vm2388, %v2356, %v2420
        %v2453 = vld [vmem:[%s2 + $0x1] sm:$0x1]
        %v2454 = vperm.slane %v2453, 0
        %v2455 = vmul.f32 %v2421, %v2454
        %v2456 = vmul.f32 %v2422, %v2454
        %v2457 = vmul.f32 %v2423, %v2454
        %v2458 = vmul.f32 %v2424, %v2454
        %v2459 = vmul.f32 %v2425, %v2454
        %v2460 = vmul.f32 %v2426, %v2454
        %v2461 = vmul.f32 %v2427, %v2454
        %v2462 = vmul.f32 %v2428, %v2454
        %v2463 = vmul.f32 %v2429, %v2454
        %v2464 = vmul.f32 %v2430, %v2454
        %v2465 = vmul.f32 %v2431, %v2454
        %v2466 = vmul.f32 %v2432, %v2454
        %v2467 = vmul.f32 %v2433, %v2454
        %v2468 = vmul.f32 %v2434, %v2454
        %v2469 = vmul.f32 %v2435, %v2454
        %v2470 = vmul.f32 %v2436, %v2454
        %v2471 = vmul.f32 %v2437, %v2454
        %v2472 = vmul.f32 %v2438, %v2454
        %v2473 = vmul.f32 %v2439, %v2454
        %v2474 = vmul.f32 %v2440, %v2454
        %v2475 = vmul.f32 %v2441, %v2454
        %v2476 = vmul.f32 %v2442, %v2454
        %v2477 = vmul.f32 %v2443, %v2454
        %v2478 = vmul.f32 %v2444, %v2454
        %v2479 = vmul.f32 %v2445, %v2454
        %v2480 = vmul.f32 %v2446, %v2454
        %v2481 = vmul.f32 %v2447, %v2454
        %v2482 = vmul.f32 %v2448, %v2454
        %v2483 = vmul.f32 %v2449, %v2454
        %v2484 = vmul.f32 %v2450, %v2454
        %v2485 = vmul.f32 %v2451, %v2454
        %v2486 = vmul.f32 %v2452, %v2454
        %v2487 = vld [vmem:[%s2 + $0x2] sm:$0x1]
        %v2488 = vperm.slane %v2487, 0
        %v2489 = vadd.f32 %v2455, %v2488
        %v2490 = vadd.f32 %v2456, %v2488
        %v2491 = vadd.f32 %v2457, %v2488
        %v2492 = vadd.f32 %v2458, %v2488
        %v2493 = vadd.f32 %v2459, %v2488
        %v2494 = vadd.f32 %v2460, %v2488
        %v2495 = vadd.f32 %v2461, %v2488
        %v2496 = vadd.f32 %v2462, %v2488
        %v2497 = vadd.f32 %v2463, %v2488
        %v2498 = vadd.f32 %v2464, %v2488
        %v2499 = vadd.f32 %v2465, %v2488
        %v2500 = vadd.f32 %v2466, %v2488
        %v2501 = vadd.f32 %v2467, %v2488
        %v2502 = vadd.f32 %v2468, %v2488
        %v2503 = vadd.f32 %v2469, %v2488
        %v2504 = vadd.f32 %v2470, %v2488
        %v2505 = vadd.f32 %v2471, %v2488
        %v2506 = vadd.f32 %v2472, %v2488
        %v2507 = vadd.f32 %v2473, %v2488
        %v2508 = vadd.f32 %v2474, %v2488
        %v2509 = vadd.f32 %v2475, %v2488
        %v2510 = vadd.f32 %v2476, %v2488
        %v2511 = vadd.f32 %v2477, %v2488
        %v2512 = vadd.f32 %v2478, %v2488
        %v2513 = vadd.f32 %v2479, %v2488
        %v2514 = vadd.f32 %v2480, %v2488
        %v2515 = vadd.f32 %v2481, %v2488
        %v2516 = vadd.f32 %v2482, %v2488
        %v2517 = vadd.f32 %v2483, %v2488
        %v2518 = vadd.f32 %v2484, %v2488
        %v2519 = vadd.f32 %v2485, %v2488
        %v2520 = vadd.f32 %v2486, %v2488
        %v2521 = vunpack.c.l.bf16 %v319
        %v2522 = vunpack.c.l.bf16 %v329
        %v2523 = vunpack.c.l.bf16 %v343
        %v2524 = vunpack.c.l.bf16 %v353
        %v2525 = vunpack.c.l.bf16 %v367
        %v2526 = vunpack.c.l.bf16 %v377
        %v2527 = vunpack.c.l.bf16 %v391
        %v2528 = vunpack.c.l.bf16 %v401
        %v2529 = vunpack.c.l.bf16 %v415
        %v2530 = vunpack.c.l.bf16 %v425
        %v2531 = vunpack.c.l.bf16 %v439
        %v2532 = vunpack.c.l.bf16 %v449
        %v2533 = vunpack.c.l.bf16 %v463
        %v2534 = vunpack.c.l.bf16 %v473
        %v2535 = vunpack.c.l.bf16 %v487
        %v2536 = vunpack.c.l.bf16 %v497
        %v2537 = vunpack.c.l.bf16 %v511
        %v2538 = vunpack.c.l.bf16 %v521
        %v2539 = vunpack.c.l.bf16 %v535
        %v2540 = vunpack.c.l.bf16 %v545
        %v2541 = vunpack.c.l.bf16 %v559
        %v2542 = vunpack.c.l.bf16 %v569
        %v2543 = vunpack.c.l.bf16 %v583
        %v2544 = vunpack.c.l.bf16 %v593
        %v2545 = vunpack.c.l.bf16 %v607
        %v2546 = vunpack.c.l.bf16 %v617
        %v2547 = vunpack.c.l.bf16 %v631
        %v2548 = vunpack.c.l.bf16 %v641
        %v2549 = vunpack.c.l.bf16 %v655
        %v2550 = vunpack.c.l.bf16 %v665
        %v2551 = vunpack.c.l.bf16 %v1578
        %v2552 = vunpack.c.l.bf16 %v1588
        %2554 = vset.pattern.permute.xlu0 4
        %2555 = vperm.xlu0 %2554, %v2521
        %v2556 = vpop.permute.xlu0 %2555
        %2559 = vset.pattern.permute.xlu0 4
        %2560 = vperm.xlu0 %2559, %v2522
        %v2561 = vpop.permute.xlu0 %2560
        %2564 = vset.pattern.permute.xlu0 4
        %2565 = vperm.xlu0 %2564, %v2523
        %v2566 = vpop.permute.xlu0 %2565
        %2569 = vset.pattern.permute.xlu0 4
        %2570 = vperm.xlu0 %2569, %v2524
        %v2571 = vpop.permute.xlu0 %2570
        %2574 = vset.pattern.permute.xlu0 4
        %2575 = vperm.xlu0 %2574, %v2525
        %v2576 = vpop.permute.xlu0 %2575
        %2579 = vset.pattern.permute.xlu0 4
        %2580 = vperm.xlu0 %2579, %v2526
        %v2581 = vpop.permute.xlu0 %2580
        %2584 = vset.pattern.permute.xlu0 4
        %2585 = vperm.xlu0 %2584, %v2527
        %v2586 = vpop.permute.xlu0 %2585
        %2589 = vset.pattern.permute.xlu0 4
        %2590 = vperm.xlu0 %2589, %v2528
        %v2591 = vpop.permute.xlu0 %2590
        %2594 = vset.pattern.permute.xlu0 4
        %2595 = vperm.xlu0 %2594, %v2529
        %v2596 = vpop.permute.xlu0 %2595
        %2599 = vset.pattern.permute.xlu0 4
        %2600 = vperm.xlu0 %2599, %v2530
        %v2601 = vpop.permute.xlu0 %2600
        %2604 = vset.pattern.permute.xlu0 4
        %2605 = vperm.xlu0 %2604, %v2531
        %v2606 = vpop.permute.xlu0 %2605
        %2609 = vset.pattern.permute.xlu0 4
        %2610 = vperm.xlu0 %2609, %v2532
        %v2611 = vpop.permute.xlu0 %2610
        %2614 = vset.pattern.permute.xlu0 4
        %2615 = vperm.xlu0 %2614, %v2533
        %v2616 = vpop.permute.xlu0 %2615
        %2619 = vset.pattern.permute.xlu0 4
        %2620 = vperm.xlu0 %2619, %v2534
        %v2621 = vpop.permute.xlu0 %2620
        %2624 = vset.pattern.permute.xlu0 4
        %2625 = vperm.xlu0 %2624, %v2535
        %v2626 = vpop.permute.xlu0 %2625
        %2629 = vset.pattern.permute.xlu0 4
        %2630 = vperm.xlu0 %2629, %v2536
        %v2631 = vpop.permute.xlu0 %2630
        %2634 = vset.pattern.permute.xlu0 4
        %2635 = vperm.xlu0 %2634, %v2537
        %v2636 = vpop.permute.xlu0 %2635
        %2639 = vset.pattern.permute.xlu0 4
        %2640 = vperm.xlu0 %2639, %v2538
        %v2641 = vpop.permute.xlu0 %2640
        %2644 = vset.pattern.permute.xlu0 4
        %2645 = vperm.xlu0 %2644, %v2539
        %v2646 = vpop.permute.xlu0 %2645
        %2649 = vset.pattern.permute.xlu0 4
        %2650 = vperm.xlu0 %2649, %v2540
        %v2651 = vpop.permute.xlu0 %2650
        %2654 = vset.pattern.permute.xlu0 4
        %2655 = vperm.xlu0 %2654, %v2541
        %v2656 = vpop.permute.xlu0 %2655
        %2659 = vset.pattern.permute.xlu0 4
        %2660 = vperm.xlu0 %2659, %v2542
        %v2661 = vpop.permute.xlu0 %2660
        %2664 = vset.pattern.permute.xlu0 4
        %2665 = vperm.xlu0 %2664, %v2543
        %v2666 = vpop.permute.xlu0 %2665
        %2669 = vset.pattern.permute.xlu0 4
        %2670 = vperm.xlu0 %2669, %v2544
        %v2671 = vpop.permute.xlu0 %2670
        %2674 = vset.pattern.permute.xlu0 4
        %2675 = vperm.xlu0 %2674, %v2545
        %v2676 = vpop.permute.xlu0 %2675
        %2679 = vset.pattern.permute.xlu0 4
        %2680 = vperm.xlu0 %2679, %v2546
        %v2681 = vpop.permute.xlu0 %2680
        %2684 = vset.pattern.permute.xlu0 4
        %2685 = vperm.xlu0 %2684, %v2547
        %v2686 = vpop.permute.xlu0 %2685
        %2689 = vset.pattern.permute.xlu0 4
        %2690 = vperm.xlu0 %2689, %v2548
        %v2691 = vpop.permute.xlu0 %2690
        %2694 = vset.pattern.permute.xlu0 4
        %2695 = vperm.xlu0 %2694, %v2549
        %v2696 = vpop.permute.xlu0 %2695
        %2699 = vset.pattern.permute.xlu0 4
        %2700 = vperm.xlu0 %2699, %v2550
        %v2701 = vpop.permute.xlu0 %2700
        %2704 = vset.pattern.permute.xlu0 4
        %2705 = vperm.xlu0 %2704, %v2551
        %v2706 = vpop.permute.xlu0 %2705
        %2709 = vset.pattern.permute.xlu0 4
        %2710 = vperm.xlu0 %2709, %v2552
        %v2711 = vpop.permute.xlu0 %2710
        %v2713 = vmul.f32 %v2489, %v2556
        %v2714 = vmul.f32 %v2490, %v2561
        %v2715 = vmul.f32 %v2491, %v2566
        %v2716 = vmul.f32 %v2492, %v2571
        %v2717 = vmul.f32 %v2493, %v2576
        %v2718 = vmul.f32 %v2494, %v2581
        %v2719 = vmul.f32 %v2495, %v2586
        %v2720 = vmul.f32 %v2496, %v2591
        %v2721 = vmul.f32 %v2497, %v2596
        %v2722 = vmul.f32 %v2498, %v2601
        %v2723 = vmul.f32 %v2499, %v2606
        %v2724 = vmul.f32 %v2500, %v2611
        %v2725 = vmul.f32 %v2501, %v2616
        %v2726 = vmul.f32 %v2502, %v2621
        %v2727 = vmul.f32 %v2503, %v2626
        %v2728 = vmul.f32 %v2504, %v2631
        %v2729 = vmul.f32 %v2505, %v2636
        %v2730 = vmul.f32 %v2506, %v2641
        %v2731 = vmul.f32 %v2507, %v2646
        %v2732 = vmul.f32 %v2508, %v2651
        %v2733 = vmul.f32 %v2509, %v2656
        %v2734 = vmul.f32 %v2510, %v2661
        %v2735 = vmul.f32 %v2511, %v2666
        %v2736 = vmul.f32 %v2512, %v2671
        %v2737 = vmul.f32 %v2513, %v2676
        %v2738 = vmul.f32 %v2514, %v2681
        %v2739 = vmul.f32 %v2515, %v2686
        %v2740 = vmul.f32 %v2516, %v2691
        %v2741 = vmul.f32 %v2517, %v2696
        %v2742 = vmul.f32 %v2518, %v2701
        %v2743 = vmul.f32 %v2519, %v2706
        %v2744 = vmul.f32 %v2520, %v2711
        %vm2745 = vcmask 261120
        %2746 = vst.msk [vmem:[#allocation2] sm:$0xff] %vm2745, 0.0
        %2747 = vst.msk [vmem:[#allocation2 + $0x8] sm:$0xff] %vm2745, 0.0
        %vm2748 = vcmask 254976
        %2749 = vst.msk [vmem:[#allocation2 + $0x10] sm:$0x3] %vm2748, 0.0
        %s2750 = scalar_lea.vmem [#allocation2], 408
        %2751 = vst.msk [vmem:[%s2750] sm:$0xff] %vm2745, 0.0
        %2752 = vst.msk [vmem:[%s2750 + $0x8] sm:$0xff] %vm2745, 0.0
        %2753 = vst.msk [vmem:[%s2750 + $0x10] sm:$0x3] %vm2748, 0.0
        %vm2754 = vcmask 253952
        %2755 = vst.msk [vmem:[#allocation2] sm:$0x1] %vm2754, 0.0
        %2756 = vst.msk [vmem:[#allocation2 + $0x18] sm:$0x1] %vm2754, 0.0
        %2757 = vst.msk [vmem:[#allocation2 + $0x30] sm:$0x1] %vm2754, 0.0
        %2758 = vst.msk [vmem:[#allocation2 + $0x48] sm:$0x1] %vm2754, 0.0
        %2759 = vst.msk [vmem:[#allocation2 + $0x60] sm:$0x1] %vm2754, 0.0
        %2760 = vst.msk [vmem:[#allocation2 + $0x78] sm:$0x1] %vm2754, 0.0
        %2761 = vst.msk [vmem:[#allocation2 + $0x90] sm:$0x1] %vm2754, 0.0
        %2762 = vst.msk [vmem:[#allocation2 + $0xa8] sm:$0x1] %vm2754, 0.0
        %2763 = vst.msk [vmem:[#allocation2 + $0xc0] sm:$0x1] %vm2754, 0.0
        %2764 = vst.msk [vmem:[#allocation2 + $0xd8] sm:$0x1] %vm2754, 0.0
        %2765 = vst.msk [vmem:[#allocation2 + $0xf0] sm:$0x1] %vm2754, 0.0
        %2766 = vst.msk [vmem:[#allocation2 + $0x108] sm:$0x1] %vm2754, 0.0
        %2767 = vst.msk [vmem:[#allocation2 + $0x120] sm:$0x1] %vm2754, 0.0
        %2768 = vst.msk [vmem:[#allocation2 + $0x138] sm:$0x1] %vm2754, 0.0
        %2769 = vst.msk [vmem:[#allocation2 + $0x150] sm:$0x1] %vm2754, 0.0
        %2770 = vst.msk [vmem:[#allocation2 + $0x168] sm:$0x1] %vm2754, 0.0
        %2771 = vst.msk [vmem:[#allocation2 + $0x180] sm:$0x1] %vm2754, 0.0
        %2772 = vst.msk [vmem:[#allocation2 + $0x198] sm:$0x1] %vm2754, 0.0
        %2773 = vst.msk [vmem:[#allocation2 + $0x11] sm:$0x1] %vm2754, 0.0
        %2774 = vst.msk [vmem:[#allocation2 + $0x29] sm:$0x1] %vm2754, 0.0
        %2775 = vst.msk [vmem:[#allocation2 + $0x41] sm:$0x1] %vm2754, 0.0
        %2776 = vst.msk [vmem:[#allocation2 + $0x59] sm:$0x1] %vm2754, 0.0
        %2777 = vst.msk [vmem:[#allocation2 + $0x71] sm:$0x1] %vm2754, 0.0
        %2778 = vst.msk [vmem:[#allocation2 + $0x89] sm:$0x1] %vm2754, 0.0
        %2779 = vst.msk [vmem:[#allocation2 + $0xa1] sm:$0x1] %vm2754, 0.0
        %2780 = vst.msk [vmem:[#allocation2 + $0xb9] sm:$0x1] %vm2754, 0.0
        %2781 = vst.msk [vmem:[#allocation2 + $0xd1] sm:$0x1] %vm2754, 0.0
        %2782 = vst.msk [vmem:[#allocation2 + $0xe9] sm:$0x1] %vm2754, 0.0
        %2783 = vst.msk [vmem:[#allocation2 + $0x101] sm:$0x1] %vm2754, 0.0
        %2784 = vst.msk [vmem:[#allocation2 + $0x119] sm:$0x1] %vm2754, 0.0
        %2785 = vst.msk [vmem:[#allocation2 + $0x131] sm:$0x1] %vm2754, 0.0
        %2786 = vst.msk [vmem:[#allocation2 + $0x149] sm:$0x1] %vm2754, 0.0
        %2787 = vst.msk [vmem:[#allocation2 + $0x161] sm:$0x1] %vm2754, 0.0
        %2788 = vst.msk [vmem:[#allocation2 + $0x179] sm:$0x1] %vm2754, 0.0
        %2789 = vst.msk [vmem:[#allocation2 + $0x191] sm:$0x1] %vm2754, 0.0
        %2790 = vst.msk [vmem:[#allocation2 + $0x1a9] sm:$0x1] %vm2754, 0.0
        %s2791 = scalar_lea.vmem [#allocation2], 24
        %2792 = vst.msk [vmem:[%s2791 + $0x1] sm:$0xff] %vm2745, %v2713
        %2793 = vst.msk [vmem:[%s2791 + $0x9] sm:$0xff] %vm2745, %v2714
        %2794 = vst.msk [vmem:[%s2791 + $0x19] sm:$0xff] %vm2745, %v2715
        %2795 = vst.msk [vmem:[%s2791 + $0x21] sm:$0xff] %vm2745, %v2716
        %2796 = vst.msk [vmem:[%s2791 + $0x31] sm:$0xff] %vm2745, %v2717
        %2797 = vst.msk [vmem:[%s2791 + $0x39] sm:$0xff] %vm2745, %v2718
        %2798 = vst.msk [vmem:[%s2791 + $0x49] sm:$0xff] %vm2745, %v2719
        %2799 = vst.msk [vmem:[%s2791 + $0x51] sm:$0xff] %vm2745, %v2720
        %2800 = vst.msk [vmem:[%s2791 + $0x61] sm:$0xff] %vm2745, %v2721
        %2801 = vst.msk [vmem:[%s2791 + $0x69] sm:$0xff] %vm2745, %v2722
        %2802 = vst.msk [vmem:[%s2791 + $0x79] sm:$0xff] %vm2745, %v2723
        %2803 = vst.msk [vmem:[%s2791 + $0x81] sm:$0xff] %vm2745, %v2724
        %2804 = vst.msk [vmem:[%s2791 + $0x91] sm:$0xff] %vm2745, %v2725
        %2805 = vst.msk [vmem:[%s2791 + $0x99] sm:$0xff] %vm2745, %v2726
        %2806 = vst.msk [vmem:[%s2791 + $0xa9] sm:$0xff] %vm2745, %v2727
        %2807 = vst.msk [vmem:[%s2791 + $0xb1] sm:$0xff] %vm2745, %v2728
        %2808 = vst.msk [vmem:[%s2791 + $0xc1] sm:$0xff] %vm2745, %v2729
        %2809 = vst.msk [vmem:[%s2791 + $0xc9] sm:$0xff] %vm2745, %v2730
        %2810 = vst.msk [vmem:[%s2791 + $0xd9] sm:$0xff] %vm2745, %v2731
        %2811 = vst.msk [vmem:[%s2791 + $0xe1] sm:$0xff] %vm2745, %v2732
        %2812 = vst.msk [vmem:[%s2791 + $0xf1] sm:$0xff] %vm2745, %v2733
        %2813 = vst.msk [vmem:[%s2791 + $0xf9] sm:$0xff] %vm2745, %v2734
        %2814 = vst.msk [vmem:[%s2791 + $0x109] sm:$0xff] %vm2745, %v2735
        %2815 = vst.msk [vmem:[%s2791 + $0x111] sm:$0xff] %vm2745, %v2736
        %2816 = vst.msk [vmem:[%s2791 + $0x121] sm:$0xff] %vm2745, %v2737
        %2817 = vst.msk [vmem:[%s2791 + $0x129] sm:$0xff] %vm2745, %v2738
        %2818 = vst.msk [vmem:[%s2791 + $0x139] sm:$0xff] %vm2745, %v2739
        %2819 = vst.msk [vmem:[%s2791 + $0x141] sm:$0xff] %vm2745, %v2740
        %2820 = vst.msk [vmem:[%s2791 + $0x151] sm:$0xff] %vm2745, %v2741
        %2821 = vst.msk [vmem:[%s2791 + $0x159] sm:$0xff] %vm2745, %v2742
        %2822 = vst.msk [vmem:[%s2791 + $0x169] sm:$0xff] %vm2745, %v2743
        %2823 = vst.msk [vmem:[%s2791 + $0x171] sm:$0xff] %vm2745, %v2744
        %v2824 = vld [vmem:[#allocation2] sm:$0xff]
        %v2825 = vld [vmem:[#allocation2 + $0x8] sm:$0xff]
        %v2826 = vld [vmem:[#allocation2 + $0x10] sm:$0x3]
        %v2827 = vld [vmem:[#allocation2 + $0x18] sm:$0xff]
        %v2828 = vld [vmem:[#allocation2 + $0x20] sm:$0xff]
        %v2829 = vld [vmem:[#allocation2 + $0x28] sm:$0x3]
        %v2830 = vld [vmem:[#allocation2 + $0x30] sm:$0xff]
        %v2831 = vld [vmem:[#allocation2 + $0x38] sm:$0xff]
        %v2832 = vld [vmem:[#allocation2 + $0x40] sm:$0x3]
        %v2833 = vld [vmem:[#allocation2 + $0x48] sm:$0xff]
        %v2834 = vld [vmem:[#allocation2 + $0x50] sm:$0xff]
        %v2835 = vld [vmem:[#allocation2 + $0x58] sm:$0x3]
        %v2836 = vld [vmem:[#allocation2 + $0x60] sm:$0xff]
        %v2837 = vld [vmem:[#allocation2 + $0x68] sm:$0xff]
        %v2838 = vld [vmem:[#allocation2 + $0x70] sm:$0x3]
        %v2839 = vld [vmem:[#allocation2 + $0x78] sm:$0xff]
        %v2840 = vld [vmem:[#allocation2 + $0x80] sm:$0xff]
        %v2841 = vld [vmem:[#allocation2 + $0x88] sm:$0x3]
        %v2842 = vld [vmem:[#allocation2 + $0x90] sm:$0xff]
        %v2843 = vld [vmem:[#allocation2 + $0x98] sm:$0xff]
        %v2844 = vld [vmem:[#allocation2 + $0xa0] sm:$0x3]
        %v2845 = vld [vmem:[#allocation2 + $0xa8] sm:$0xff]
        %v2846 = vld [vmem:[#allocation2 + $0xb0] sm:$0xff]
        %v2847 = vld [vmem:[#allocation2 + $0xb8] sm:$0x3]
        %v2848 = vld [vmem:[#allocation2 + $0xc0] sm:$0xff]
        %v2849 = vld [vmem:[#allocation2 + $0xc8] sm:$0xff]
        %v2850 = vld [vmem:[#allocation2 + $0xd0] sm:$0x3]
        %v2851 = vld [vmem:[#allocation2 + $0xd8] sm:$0xff]
        %v2852 = vld [vmem:[#allocation2 + $0xe0] sm:$0xff]
        %v2853 = vld [vmem:[#allocation2 + $0xe8] sm:$0x3]
        %v2854 = vld [vmem:[#allocation2 + $0xf0] sm:$0xff]
        %v2855 = vld [vmem:[#allocation2 + $0xf8] sm:$0xff]
        %v2856 = vld [vmem:[#allocation2 + $0x100] sm:$0x3]
        %v2857 = vld [vmem:[#allocation2 + $0x108] sm:$0xff]
        %v2858 = vld [vmem:[#allocation2 + $0x110] sm:$0xff]
        %v2859 = vld [vmem:[#allocation2 + $0x118] sm:$0x3]
        %v2860 = vld [vmem:[#allocation2 + $0x120] sm:$0xff]
        %v2861 = vld [vmem:[#allocation2 + $0x128] sm:$0xff]
        %v2862 = vld [vmem:[#allocation2 + $0x130] sm:$0x3]
        %v2863 = vld [vmem:[#allocation2 + $0x138] sm:$0xff]
        %v2864 = vld [vmem:[#allocation2 + $0x140] sm:$0xff]
        %v2865 = vld [vmem:[#allocation2 + $0x148] sm:$0x3]
        %v2866 = vld [vmem:[#allocation2 + $0x150] sm:$0xff]
        %v2867 = vld [vmem:[#allocation2 + $0x158] sm:$0xff]
        %v2868 = vld [vmem:[#allocation2 + $0x160] sm:$0x3]
        %v2869 = vld [vmem:[#allocation2 + $0x168] sm:$0xff]
        %v2870 = vld [vmem:[#allocation2 + $0x170] sm:$0xff]
        %v2871 = vld [vmem:[#allocation2 + $0x178] sm:$0x3]
        %v2872 = vld [vmem:[#allocation2 + $0x180] sm:$0xff]
        %v2873 = vld [vmem:[#allocation2 + $0x188] sm:$0xff]
        %v2874 = vld [vmem:[#allocation2 + $0x190] sm:$0x3]
        %v2875 = vld [vmem:[#allocation2 + $0x198] sm:$0xff]
        %v2876 = vld [vmem:[#allocation2 + $0x1a0] sm:$0xff]
        %v2877 = vld [vmem:[#allocation2 + $0x1a8] sm:$0x3]
        %v2878 = vpack.c.bf16 %v2825, %v2824
        %v2879 = vpack.c.bf16 %v2828, %v2827
        %v2880 = vpack.c.bf16 %v2831, %v2830
        %v2881 = vpack.c.bf16 %v2834, %v2833
        %v2882 = vpack.c.bf16 %v2837, %v2836
        %v2883 = vpack.c.bf16 %v2840, %v2839
        %v2884 = vpack.c.bf16 %v2843, %v2842
        %v2885 = vpack.c.bf16 %v2846, %v2845
        %v2886 = vpack.c.bf16 %v2849, %v2848
        %v2887 = vpack.c.bf16 %v2852, %v2851
        %v2888 = vpack.c.bf16 %v2855, %v2854
        %v2889 = vpack.c.bf16 %v2858, %v2857
        %v2890 = vpack.c.bf16 %v2861, %v2860
        %v2891 = vpack.c.bf16 %v2864, %v2863
        %v2892 = vpack.c.bf16 %v2867, %v2866
        %v2893 = vpack.c.bf16 %v2870, %v2869
        %v2894 = vld [vmem:[%s3] sm:$0xf]
        %v2895 = vld [vmem:[%s3 + $0x4] sm:$0xf]
        %v2896 = vld [vmem:[%s3 + $0x8] sm:$0xf]
        %v2897 = vld [vmem:[%s3 + $0xc] sm:$0xf]
        %vm2946 = vcmask 1046528
        %v2947 = vrot.slane %v2824, 1
        %v2948 = vrot.slane %v2825, 1
        %v2949 = vsel %vm2946, %v2947, %v2948
        %v2950 = vrot.slane %v2826, 1
        %v2951 = vsel %vm2946, %v2948, %v2950
        %v2952 = vrot.slane %v2827, 1
        %v2953 = vrot.slane %v2828, 1
        %v2954 = vsel %vm2946, %v2952, %v2953
        %v2955 = vrot.slane %v2829, 1
        %v2956 = vsel %vm2946, %v2953, %v2955
        %v2957 = vrot.slane %v2830, 1
        %v2958 = vrot.slane %v2831, 1
        %v2959 = vsel %vm2946, %v2957, %v2958
        %v2960 = vrot.slane %v2832, 1
        %v2961 = vsel %vm2946, %v2958, %v2960
        %v2962 = vrot.slane %v2833, 1
        %v2963 = vrot.slane %v2834, 1
        %v2964 = vsel %vm2946, %v2962, %v2963
        %v2965 = vrot.slane %v2835, 1
        %v2966 = vsel %vm2946, %v2963, %v2965
        %v2967 = vrot.slane %v2836, 1
        %v2968 = vrot.slane %v2837, 1
        %v2969 = vsel %vm2946, %v2967, %v2968
        %v2970 = vrot.slane %v2838, 1
        %v2971 = vsel %vm2946, %v2968, %v2970
        %v2972 = vrot.slane %v2839, 1
        %v2973 = vrot.slane %v2840, 1
        %v2974 = vsel %vm2946, %v2972, %v2973
        %v2975 = vrot.slane %v2841, 1
        %v2976 = vsel %vm2946, %v2973, %v2975
        %v2977 = vrot.slane %v2842, 1
        %v2978 = vrot.slane %v2843, 1
        %v2979 = vsel %vm2946, %v2977, %v2978
        %v2980 = vrot.slane %v2844, 1
        %v2981 = vsel %vm2946, %v2978, %v2980
        %v2982 = vrot.slane %v2845, 1
        %v2983 = vrot.slane %v2846, 1
        %v2984 = vsel %vm2946, %v2982, %v2983
        %v2985 = vrot.slane %v2847, 1
        %v2986 = vsel %vm2946, %v2983, %v2985
        %v2987 = vrot.slane %v2848, 1
        %v2988 = vrot.slane %v2849, 1
        %v2989 = vsel %vm2946, %v2987, %v2988
        %v2990 = vrot.slane %v2850, 1
        %v2991 = vsel %vm2946, %v2988, %v2990
        %v2992 = vrot.slane %v2851, 1
        %v2993 = vrot.slane %v2852, 1
        %v2994 = vsel %vm2946, %v2992, %v2993
        %v2995 = vrot.slane %v2853, 1
        %v2996 = vsel %vm2946, %v2993, %v2995
        %v2997 = vrot.slane %v2854, 1
        %v2998 = vrot.slane %v2855, 1
        %v2999 = vsel %vm2946, %v2997, %v2998
        %v3000 = vrot.slane %v2856, 1
        %v3001 = vsel %vm2946, %v2998, %v3000
        %v3002 = vrot.slane %v2857, 1
        %v3003 = vrot.slane %v2858, 1
        %v3004 = vsel %vm2946, %v3002, %v3003
        %v3005 = vrot.slane %v2859, 1
        %v3006 = vsel %vm2946, %v3003, %v3005
        %v3007 = vrot.slane %v2860, 1
        %v3008 = vrot.slane %v2861, 1
        %v3009 = vsel %vm2946, %v3007, %v3008
        %v3010 = vrot.slane %v2862, 1
        %v3011 = vsel %vm2946, %v3008, %v3010
        %v3012 = vrot.slane %v2863, 1
        %v3013 = vrot.slane %v2864, 1
        %v3014 = vsel %vm2946, %v3012, %v3013
        %v3015 = vrot.slane %v2865, 1
        %v3016 = vsel %vm2946, %v3013, %v3015
        %v3017 = vrot.slane %v2866, 1
        %v3018 = vrot.slane %v2867, 1
        %v3019 = vsel %vm2946, %v3017, %v3018
        %v3020 = vrot.slane %v2868, 1
        %v3021 = vsel %vm2946, %v3018, %v3020
        %v3022 = vrot.slane %v2869, 1
        %v3023 = vrot.slane %v2870, 1
        %v3024 = vsel %vm2946, %v3022, %v3023
        %v3025 = vrot.slane %v2871, 1
        %v3026 = vsel %vm2946, %v3023, %v3025
        %v3059 = vpack.c.bf16 %v2951, %v2949
        %v3060 = vpack.c.bf16 %v2956, %v2954
        %v3061 = vpack.c.bf16 %v2961, %v2959
        %v3062 = vpack.c.bf16 %v2966, %v2964
        %v3063 = vpack.c.bf16 %v2971, %v2969
        %v3064 = vpack.c.bf16 %v2976, %v2974
        %v3065 = vpack.c.bf16 %v2981, %v2979
        %v3066 = vpack.c.bf16 %v2986, %v2984
        %v3067 = vpack.c.bf16 %v2991, %v2989
        %v3068 = vpack.c.bf16 %v2996, %v2994
        %v3069 = vpack.c.bf16 %v3001, %v2999
        %v3070 = vpack.c.bf16 %v3006, %v3004
        %v3071 = vpack.c.bf16 %v3011, %v3009
        %v3072 = vpack.c.bf16 %v3016, %v3014
        %v3073 = vpack.c.bf16 %v3021, %v3019
        %v3074 = vpack.c.bf16 %v3026, %v3024
        %s3075 = scalar_lea.vmem %s3, 16
        %v3076 = vld [vmem:[%s3075] sm:$0xf]
        %v3077 = vld [vmem:[%s3075 + $0x4] sm:$0xf]
        %v3078 = vld [vmem:[%s3075 + $0x8] sm:$0xf]
        %v3079 = vld [vmem:[%s3075 + $0xc] sm:$0xf]
        %v3084 = vunpack.c.l.b16 %v3076
        %v3085 = vunpack.c.l.b16 %v3077
        %v3086 = vunpack.c.l.b16 %v3078
        %v3087 = vunpack.c.l.b16 %v3079
        %v3088 = vpack.c.b16 %v3085, %v3084
        %v3089 = vpack.c.b16 %v3087, %v3086
        %v3093 = vsel %vm2745, %v3059, 0
        %v3096 = vsel %vm2745, %v3060, 0
        %v3099 = vsel %vm2745, %v3061, 0
        %v3102 = vsel %vm2745, %v3062, 0
        %v3105 = vsel %vm2745, %v3063, 0
        %v3108 = vsel %vm2745, %v3064, 0
        %v3111 = vsel %vm2745, %v3065, 0
        %v3114 = vsel %vm2745, %v3066, 0
        %v3117 = vsel %vm2745, %v3067, 0
        %v3120 = vsel %vm2745, %v3068, 0
        %v3123 = vsel %vm2745, %v3069, 0
        %v3126 = vsel %vm2745, %v3070, 0
        %v3129 = vsel %vm2745, %v3071, 0
        %v3132 = vsel %vm2745, %v3072, 0
        %v3135 = vsel %vm2745, %v3073, 0
        %v3138 = vsel %vm2745, %v3074, 0
        %3140 = vmatpush.bf16.msra.mxu0 0
        %3141 = vmatpush.bf16.msra.mxu0 0
        %3142 = vmatpush.bf16.msra.mxu0 0
        %3143 = vmatpush.bf16.msra.mxu0 0
        %3144 = vmatpush.bf16.msra.mxu0 0
        %3145 = vmatpush.bf16.msra.mxu0 0
        %3146 = vmatpush.bf16.msra.mxu0 %v3089
        %3147 = vmatpush.bf16.msra.mxu0 %v3088
        %3148 = vmatmul.bf16.gmra.mxu0 %v3093
        %v3149 = vpop.f32.mrf.mxu0
        %v3150 = vadd.f32 0.0, %v3149
        %v3151 = vpop.f32.mrf.mxu0
        %v3152 = vadd.f32 0.0, %v3151
        %3153 = vmatmul.bf16.gmra.mxu0 %v3096
        %v3154 = vpop.f32.mrf.mxu0
        %v3155 = vadd.f32 0.0, %v3154
        %v3156 = vpop.f32.mrf.mxu0
        %v3157 = vadd.f32 0.0, %v3156
        %3158 = vmatmul.bf16.gmra.mxu0 %v3099
        %v3159 = vpop.f32.mrf.mxu0
        %v3160 = vadd.f32 0.0, %v3159
        %v3161 = vpop.f32.mrf.mxu0
        %v3162 = vadd.f32 0.0, %v3161
        %3163 = vmatmul.bf16.gmra.mxu0 %v3102
        %v3164 = vpop.f32.mrf.mxu0
        %v3165 = vadd.f32 0.0, %v3164
        %v3166 = vpop.f32.mrf.mxu0
        %v3167 = vadd.f32 0.0, %v3166
        %3168 = vmatmul.bf16.gmra.mxu0 %v3105
        %v3169 = vpop.f32.mrf.mxu0
        %v3170 = vadd.f32 0.0, %v3169
        %v3171 = vpop.f32.mrf.mxu0
        %v3172 = vadd.f32 0.0, %v3171
        %3173 = vmatmul.bf16.gmra.mxu0 %v3108
        %v3174 = vpop.f32.mrf.mxu0
        %v3175 = vadd.f32 0.0, %v3174
        %v3176 = vpop.f32.mrf.mxu0
        %v3177 = vadd.f32 0.0, %v3176
        %3178 = vmatmul.bf16.gmra.mxu0 %v3111
        %v3179 = vpop.f32.mrf.mxu0
        %v3180 = vadd.f32 0.0, %v3179
        %v3181 = vpop.f32.mrf.mxu0
        %v3182 = vadd.f32 0.0, %v3181
        %3183 = vmatmul.bf16.gmra.mxu0 %v3114
        %v3184 = vpop.f32.mrf.mxu0
        %v3185 = vadd.f32 0.0, %v3184
        %v3186 = vpop.f32.mrf.mxu0
        %v3187 = vadd.f32 0.0, %v3186
        %3188 = vmatmul.bf16.gmra.mxu0 %v3117
        %v3189 = vpop.f32.mrf.mxu0
        %v3190 = vadd.f32 0.0, %v3189
        %v3191 = vpop.f32.mrf.mxu0
        %v3192 = vadd.f32 0.0, %v3191
        %3193 = vmatmul.bf16.gmra.mxu0 %v3120
        %v3194 = vpop.f32.mrf.mxu0
        %v3195 = vadd.f32 0.0, %v3194
        %v3196 = vpop.f32.mrf.mxu0
        %v3197 = vadd.f32 0.0, %v3196
        %3198 = vmatmul.bf16.gmra.mxu0 %v3123
        %v3199 = vpop.f32.mrf.mxu0
        %v3200 = vadd.f32 0.0, %v3199
        %v3201 = vpop.f32.mrf.mxu0
        %v3202 = vadd.f32 0.0, %v3201
        %3203 = vmatmul.bf16.gmra.mxu0 %v3126
        %v3204 = vpop.f32.mrf.mxu0
        %v3205 = vadd.f32 0.0, %v3204
        %v3206 = vpop.f32.mrf.mxu0
        %v3207 = vadd.f32 0.0, %v3206
        %3208 = vmatmul.bf16.gmra.mxu0 %v3129
        %v3209 = vpop.f32.mrf.mxu0
        %v3210 = vadd.f32 0.0, %v3209
        %v3211 = vpop.f32.mrf.mxu0
        %v3212 = vadd.f32 0.0, %v3211
        %3213 = vmatmul.bf16.gmra.mxu0 %v3132
        %v3214 = vpop.f32.mrf.mxu0
        %v3215 = vadd.f32 0.0, %v3214
        %v3216 = vpop.f32.mrf.mxu0
        %v3217 = vadd.f32 0.0, %v3216
        %3218 = vmatmul.bf16.gmra.mxu0 %v3135
        %v3219 = vpop.f32.mrf.mxu0
        %v3220 = vadd.f32 0.0, %v3219
        %v3221 = vpop.f32.mrf.mxu0
        %v3222 = vadd.f32 0.0, %v3221
        %3223 = vmatmul.bf16.gmra.mxu0 %v3138
        %v3224 = vpop.f32.mrf.mxu0
        %v3225 = vadd.f32 0.0, %v3224
        %v3226 = vpop.f32.mrf.mxu0
        %v3227 = vadd.f32 0.0, %v3226
        %3228 = vdwg.mxu0
        %v3233 = vunpack.c.l.b16 %v2894
        %v3234 = vunpack.c.l.b16 %v2895
        %v3235 = vunpack.c.l.b16 %v2896
        %v3236 = vunpack.c.l.b16 %v2897
        %v3237 = vpack.c.b16 %v3234, %v3233
        %v3238 = vpack.c.b16 %v3236, %v3235
        %v3242 = vsel %vm2745, %v2878, 0
        %v3245 = vsel %vm2745, %v2879, 0
        %v3248 = vsel %vm2745, %v2880, 0
        %v3251 = vsel %vm2745, %v2881, 0
        %v3254 = vsel %vm2745, %v2882, 0
        %v3257 = vsel %vm2745, %v2883, 0
        %v3260 = vsel %vm2745, %v2884, 0
        %v3263 = vsel %vm2745, %v2885, 0
        %v3266 = vsel %vm2745, %v2886, 0
        %v3269 = vsel %vm2745, %v2887, 0
        %v3272 = vsel %vm2745, %v2888, 0
        %v3275 = vsel %vm2745, %v2889, 0
        %v3278 = vsel %vm2745, %v2890, 0
        %v3281 = vsel %vm2745, %v2891, 0
        %v3284 = vsel %vm2745, %v2892, 0
        %v3287 = vsel %vm2745, %v2893, 0
        %3289 = vmatpush.bf16.msra.mxu0 0
        %3290 = vmatpush.bf16.msra.mxu0 0
        %3291 = vmatpush.bf16.msra.mxu0 0
        %3292 = vmatpush.bf16.msra.mxu0 0
        %3293 = vmatpush.bf16.msra.mxu0 0
        %3294 = vmatpush.bf16.msra.mxu0 0
        %3295 = vmatpush.bf16.msra.mxu0 %v3238
        %3296 = vmatpush.bf16.msra.mxu0 %v3237
        %3297 = vmatmul.bf16.gmra.mxu0 %v3242
        %v3298 = vpop.f32.mrf.mxu0
        %v3299 = vadd.f32 %v3150, %v3298
        %v3300 = vpop.f32.mrf.mxu0
        %v3301 = vadd.f32 %v3152, %v3300
        %3302 = vmatmul.bf16.gmra.mxu0 %v3245
        %v3303 = vpop.f32.mrf.mxu0
        %v3304 = vadd.f32 %v3155, %v3303
        %v3305 = vpop.f32.mrf.mxu0
        %v3306 = vadd.f32 %v3157, %v3305
        %3307 = vmatmul.bf16.gmra.mxu0 %v3248
        %v3308 = vpop.f32.mrf.mxu0
        %v3309 = vadd.f32 %v3160, %v3308
        %v3310 = vpop.f32.mrf.mxu0
        %v3311 = vadd.f32 %v3162, %v3310
        %3312 = vmatmul.bf16.gmra.mxu0 %v3251
        %v3313 = vpop.f32.mrf.mxu0
        %v3314 = vadd.f32 %v3165, %v3313
        %v3315 = vpop.f32.mrf.mxu0
        %v3316 = vadd.f32 %v3167, %v3315
        %3317 = vmatmul.bf16.gmra.mxu0 %v3254
        %v3318 = vpop.f32.mrf.mxu0
        %v3319 = vadd.f32 %v3170, %v3318
        %v3320 = vpop.f32.mrf.mxu0
        %v3321 = vadd.f32 %v3172, %v3320
        %3322 = vmatmul.bf16.gmra.mxu0 %v3257
        %v3323 = vpop.f32.mrf.mxu0
        %v3324 = vadd.f32 %v3175, %v3323
        %v3325 = vpop.f32.mrf.mxu0
        %v3326 = vadd.f32 %v3177, %v3325
        %3327 = vmatmul.bf16.gmra.mxu0 %v3260
        %v3328 = vpop.f32.mrf.mxu0
        %v3329 = vadd.f32 %v3180, %v3328
        %v3330 = vpop.f32.mrf.mxu0
        %v3331 = vadd.f32 %v3182, %v3330
        %3332 = vmatmul.bf16.gmra.mxu0 %v3263
        %v3333 = vpop.f32.mrf.mxu0
        %v3334 = vadd.f32 %v3185, %v3333
        %v3335 = vpop.f32.mrf.mxu0
        %v3336 = vadd.f32 %v3187, %v3335
        %3337 = vmatmul.bf16.gmra.mxu0 %v3266
        %v3338 = vpop.f32.mrf.mxu0
        %v3339 = vadd.f32 %v3190, %v3338
        %v3340 = vpop.f32.mrf.mxu0
        %v3341 = vadd.f32 %v3192, %v3340
        %3342 = vmatmul.bf16.gmra.mxu0 %v3269
        %v3343 = vpop.f32.mrf.mxu0
        %v3344 = vadd.f32 %v3195, %v3343
        %v3345 = vpop.f32.mrf.mxu0
        %v3346 = vadd.f32 %v3197, %v3345
        %3347 = vmatmul.bf16.gmra.mxu0 %v3272
        %v3348 = vpop.f32.mrf.mxu0
        %v3349 = vadd.f32 %v3200, %v3348
        %v3350 = vpop.f32.mrf.mxu0
        %v3351 = vadd.f32 %v3202, %v3350
        %3352 = vmatmul.bf16.gmra.mxu0 %v3275
        %v3353 = vpop.f32.mrf.mxu0
        %v3354 = vadd.f32 %v3205, %v3353
        %v3355 = vpop.f32.mrf.mxu0
        %v3356 = vadd.f32 %v3207, %v3355
        %3357 = vmatmul.bf16.gmra.mxu0 %v3278
        %v3358 = vpop.f32.mrf.mxu0
        %v3359 = vadd.f32 %v3210, %v3358
        %v3360 = vpop.f32.mrf.mxu0
        %v3361 = vadd.f32 %v3212, %v3360
        %3362 = vmatmul.bf16.gmra.mxu0 %v3281
        %v3363 = vpop.f32.mrf.mxu0
        %v3364 = vadd.f32 %v3215, %v3363
        %v3365 = vpop.f32.mrf.mxu0
        %v3366 = vadd.f32 %v3217, %v3365
        %3367 = vmatmul.bf16.gmra.mxu0 %v3284
        %v3368 = vpop.f32.mrf.mxu0
        %v3369 = vadd.f32 %v3220, %v3368
        %v3370 = vpop.f32.mrf.mxu0
        %v3371 = vadd.f32 %v3222, %v3370
        %3372 = vmatmul.bf16.gmra.mxu0 %v3287
        %v3373 = vpop.f32.mrf.mxu0
        %v3374 = vadd.f32 %v3225, %v3373
        %v3375 = vpop.f32.mrf.mxu0
        %v3376 = vadd.f32 %v3227, %v3375
        %3377 = vdwg.mxu0
        %vm3378 = vcmask 1045504
        %v3379 = vrot.slane %v2824, 2
        %v3380 = vrot.slane %v2825, 2
        %v3381 = vsel %vm3378, %v3379, %v3380
        %v3382 = vrot.slane %v2826, 2
        %v3383 = vsel %vm3378, %v3380, %v3382
        %v3384 = vrot.slane %v2827, 2
        %v3385 = vrot.slane %v2828, 2
        %v3386 = vsel %vm3378, %v3384, %v3385
        %v3387 = vrot.slane %v2829, 2
        %v3388 = vsel %vm3378, %v3385, %v3387
        %v3389 = vrot.slane %v2830, 2
        %v3390 = vrot.slane %v2831, 2
        %v3391 = vsel %vm3378, %v3389, %v3390
        %v3392 = vrot.slane %v2832, 2
        %v3393 = vsel %vm3378, %v3390, %v3392
        %v3394 = vrot.slane %v2833, 2
        %v3395 = vrot.slane %v2834, 2
        %v3396 = vsel %vm3378, %v3394, %v3395
        %v3397 = vrot.slane %v2835, 2
        %v3398 = vsel %vm3378, %v3395, %v3397
        %v3399 = vrot.slane %v2836, 2
        %v3400 = vrot.slane %v2837, 2
        %v3401 = vsel %vm3378, %v3399, %v3400
        %v3402 = vrot.slane %v2838, 2
        %v3403 = vsel %vm3378, %v3400, %v3402
        %v3404 = vrot.slane %v2839, 2
        %v3405 = vrot.slane %v2840, 2
        %v3406 = vsel %vm3378, %v3404, %v3405
        %v3407 = vrot.slane %v2841, 2
        %v3408 = vsel %vm3378, %v3405, %v3407
        %v3409 = vrot.slane %v2842, 2
        %v3410 = vrot.slane %v2843, 2
        %v3411 = vsel %vm3378, %v3409, %v3410
        %v3412 = vrot.slane %v2844, 2
        %v3413 = vsel %vm3378, %v3410, %v3412
        %v3414 = vrot.slane %v2845, 2
        %v3415 = vrot.slane %v2846, 2
        %v3416 = vsel %vm3378, %v3414, %v3415
        %v3417 = vrot.slane %v2847, 2
        %v3418 = vsel %vm3378, %v3415, %v3417
        %v3419 = vrot.slane %v2848, 2
        %v3420 = vrot.slane %v2849, 2
        %v3421 = vsel %vm3378, %v3419, %v3420
        %v3422 = vrot.slane %v2850, 2
        %v3423 = vsel %vm3378, %v3420, %v3422
        %v3424 = vrot.slane %v2851, 2
        %v3425 = vrot.slane %v2852, 2
        %v3426 = vsel %vm3378, %v3424, %v3425
        %v3427 = vrot.slane %v2853, 2
        %v3428 = vsel %vm3378, %v3425, %v3427
        %v3429 = vrot.slane %v2854, 2
        %v3430 = vrot.slane %v2855, 2
        %v3431 = vsel %vm3378, %v3429, %v3430
        %v3432 = vrot.slane %v2856, 2
        %v3433 = vsel %vm3378, %v3430, %v3432
        %v3434 = vrot.slane %v2857, 2
        %v3435 = vrot.slane %v2858, 2
        %v3436 = vsel %vm3378, %v3434, %v3435
        %v3437 = vrot.slane %v2859, 2
        %v3438 = vsel %vm3378, %v3435, %v3437
        %v3439 = vrot.slane %v2860, 2
        %v3440 = vrot.slane %v2861, 2
        %v3441 = vsel %vm3378, %v3439, %v3440
        %v3442 = vrot.slane %v2862, 2
        %v3443 = vsel %vm3378, %v3440, %v3442
        %v3444 = vrot.slane %v2863, 2
        %v3445 = vrot.slane %v2864, 2
        %v3446 = vsel %vm3378, %v3444, %v3445
        %v3447 = vrot.slane %v2865, 2
        %v3448 = vsel %vm3378, %v3445, %v3447
        %v3449 = vrot.slane %v2866, 2
        %v3450 = vrot.slane %v2867, 2
        %v3451 = vsel %vm3378, %v3449, %v3450
        %v3452 = vrot.slane %v2868, 2
        %v3453 = vsel %vm3378, %v3450, %v3452
        %v3454 = vrot.slane %v2869, 2
        %v3455 = vrot.slane %v2870, 2
        %v3456 = vsel %vm3378, %v3454, %v3455
        %v3457 = vrot.slane %v2871, 2
        %v3458 = vsel %vm3378, %v3455, %v3457
        %v3491 = vpack.c.bf16 %v3383, %v3381
        %v3492 = vpack.c.bf16 %v3388, %v3386
        %v3493 = vpack.c.bf16 %v3393, %v3391
        %v3494 = vpack.c.bf16 %v3398, %v3396
        %v3495 = vpack.c.bf16 %v3403, %v3401
        %v3496 = vpack.c.bf16 %v3408, %v3406
        %v3497 = vpack.c.bf16 %v3413, %v3411
        %v3498 = vpack.c.bf16 %v3418, %v3416
        %v3499 = vpack.c.bf16 %v3423, %v3421
        %v3500 = vpack.c.bf16 %v3428, %v3426
        %v3501 = vpack.c.bf16 %v3433, %v3431
        %v3502 = vpack.c.bf16 %v3438, %v3436
        %v3503 = vpack.c.bf16 %v3443, %v3441
        %v3504 = vpack.c.bf16 %v3448, %v3446
        %v3505 = vpack.c.bf16 %v3453, %v3451
        %v3506 = vpack.c.bf16 %v3458, %v3456
        %s3507 = scalar_lea.vmem %s3, 32
        %v3508 = vld [vmem:[%s3507] sm:$0xf]
        %v3509 = vld [vmem:[%s3507 + $0x4] sm:$0xf]
        %v3510 = vld [vmem:[%s3507 + $0x8] sm:$0xf]
        %v3511 = vld [vmem:[%s3507 + $0xc] sm:$0xf]
        %v3516 = vunpack.c.l.b16 %v3508
        %v3517 = vunpack.c.l.b16 %v3509
        %v3518 = vunpack.c.l.b16 %v3510
        %v3519 = vunpack.c.l.b16 %v3511
        %v3520 = vpack.c.b16 %v3517, %v3516
        %v3521 = vpack.c.b16 %v3519, %v3518
        %v3525 = vsel %vm2745, %v3491, 0
        %v3528 = vsel %vm2745, %v3492, 0
        %v3531 = vsel %vm2745, %v3493, 0
        %v3534 = vsel %vm2745, %v3494, 0
        %v3537 = vsel %vm2745, %v3495, 0
        %v3540 = vsel %vm2745, %v3496, 0
        %v3543 = vsel %vm2745, %v3497, 0
        %v3546 = vsel %vm2745, %v3498, 0
        %v3549 = vsel %vm2745, %v3499, 0
        %v3552 = vsel %vm2745, %v3500, 0
        %v3555 = vsel %vm2745, %v3501, 0
        %v3558 = vsel %vm2745, %v3502, 0
        %v3561 = vsel %vm2745, %v3503, 0
        %v3564 = vsel %vm2745, %v3504, 0
        %v3567 = vsel %vm2745, %v3505, 0
        %v3570 = vsel %vm2745, %v3506, 0
        %3572 = vmatpush.bf16.msra.mxu0 0
        %3573 = vmatpush.bf16.msra.mxu0 0
        %3574 = vmatpush.bf16.msra.mxu0 0
        %3575 = vmatpush.bf16.msra.mxu0 0
        %3576 = vmatpush.bf16.msra.mxu0 0
        %3577 = vmatpush.bf16.msra.mxu0 0
        %3578 = vmatpush.bf16.msra.mxu0 %v3521
        %3579 = vmatpush.bf16.msra.mxu0 %v3520
        %3580 = vmatmul.bf16.gmra.mxu0 %v3525
        %v3581 = vpop.f32.mrf.mxu0
        %v3582 = vadd.f32 0.0, %v3581
        %v3583 = vpop.f32.mrf.mxu0
        %v3584 = vadd.f32 0.0, %v3583
        %3585 = vmatmul.bf16.gmra.mxu0 %v3528
        %v3586 = vpop.f32.mrf.mxu0
        %v3587 = vadd.f32 0.0, %v3586
        %v3588 = vpop.f32.mrf.mxu0
        %v3589 = vadd.f32 0.0, %v3588
        %3590 = vmatmul.bf16.gmra.mxu0 %v3531
        %v3591 = vpop.f32.mrf.mxu0
        %v3592 = vadd.f32 0.0, %v3591
        %v3593 = vpop.f32.mrf.mxu0
        %v3594 = vadd.f32 0.0, %v3593
        %3595 = vmatmul.bf16.gmra.mxu0 %v3534
        %v3596 = vpop.f32.mrf.mxu0
        %v3597 = vadd.f32 0.0, %v3596
        %v3598 = vpop.f32.mrf.mxu0
        %v3599 = vadd.f32 0.0, %v3598
        %3600 = vmatmul.bf16.gmra.mxu0 %v3537
        %v3601 = vpop.f32.mrf.mxu0
        %v3602 = vadd.f32 0.0, %v3601
        %v3603 = vpop.f32.mrf.mxu0
        %v3604 = vadd.f32 0.0, %v3603
        %3605 = vmatmul.bf16.gmra.mxu0 %v3540
        %v3606 = vpop.f32.mrf.mxu0
        %v3607 = vadd.f32 0.0, %v3606
        %v3608 = vpop.f32.mrf.mxu0
        %v3609 = vadd.f32 0.0, %v3608
        %3610 = vmatmul.bf16.gmra.mxu0 %v3543
        %v3611 = vpop.f32.mrf.mxu0
        %v3612 = vadd.f32 0.0, %v3611
        %v3613 = vpop.f32.mrf.mxu0
        %v3614 = vadd.f32 0.0, %v3613
        %3615 = vmatmul.bf16.gmra.mxu0 %v3546
        %v3616 = vpop.f32.mrf.mxu0
        %v3617 = vadd.f32 0.0, %v3616
        %v3618 = vpop.f32.mrf.mxu0
        %v3619 = vadd.f32 0.0, %v3618
        %3620 = vmatmul.bf16.gmra.mxu0 %v3549
        %v3621 = vpop.f32.mrf.mxu0
        %v3622 = vadd.f32 0.0, %v3621
        %v3623 = vpop.f32.mrf.mxu0
        %v3624 = vadd.f32 0.0, %v3623
        %3625 = vmatmul.bf16.gmra.mxu0 %v3552
        %v3626 = vpop.f32.mrf.mxu0
        %v3627 = vadd.f32 0.0, %v3626
        %v3628 = vpop.f32.mrf.mxu0
        %v3629 = vadd.f32 0.0, %v3628
        %3630 = vmatmul.bf16.gmra.mxu0 %v3555
        %v3631 = vpop.f32.mrf.mxu0
        %v3632 = vadd.f32 0.0, %v3631
        %v3633 = vpop.f32.mrf.mxu0
        %v3634 = vadd.f32 0.0, %v3633
        %3635 = vmatmul.bf16.gmra.mxu0 %v3558
        %v3636 = vpop.f32.mrf.mxu0
        %v3637 = vadd.f32 0.0, %v3636
        %v3638 = vpop.f32.mrf.mxu0
        %v3639 = vadd.f32 0.0, %v3638
        %3640 = vmatmul.bf16.gmra.mxu0 %v3561
        %v3641 = vpop.f32.mrf.mxu0
        %v3642 = vadd.f32 0.0, %v3641
        %v3643 = vpop.f32.mrf.mxu0
        %v3644 = vadd.f32 0.0, %v3643
        %3645 = vmatmul.bf16.gmra.mxu0 %v3564
        %v3646 = vpop.f32.mrf.mxu0
        %v3647 = vadd.f32 0.0, %v3646
        %v3648 = vpop.f32.mrf.mxu0
        %v3649 = vadd.f32 0.0, %v3648
        %3650 = vmatmul.bf16.gmra.mxu0 %v3567
        %v3651 = vpop.f32.mrf.mxu0
        %v3652 = vadd.f32 0.0, %v3651
        %v3653 = vpop.f32.mrf.mxu0
        %v3654 = vadd.f32 0.0, %v3653
        %3655 = vmatmul.bf16.gmra.mxu0 %v3570
        %v3656 = vpop.f32.mrf.mxu0
        %v3657 = vadd.f32 0.0, %v3656
        %v3658 = vpop.f32.mrf.mxu0
        %v3659 = vadd.f32 0.0, %v3658
        %3660 = vdwg.mxu0
        %v3661 = vadd.f32 %v3299, %v3582
        %v3662 = vadd.f32 %v3301, %v3584
        %v3663 = vadd.f32 %v3304, %v3587
        %v3664 = vadd.f32 %v3306, %v3589
        %v3665 = vadd.f32 %v3309, %v3592
        %v3666 = vadd.f32 %v3311, %v3594
        %v3667 = vadd.f32 %v3314, %v3597
        %v3668 = vadd.f32 %v3316, %v3599
        %v3669 = vadd.f32 %v3319, %v3602
        %v3670 = vadd.f32 %v3321, %v3604
        %v3671 = vadd.f32 %v3324, %v3607
        %v3672 = vadd.f32 %v3326, %v3609
        %v3673 = vadd.f32 %v3329, %v3612
        %v3674 = vadd.f32 %v3331, %v3614
        %v3675 = vadd.f32 %v3334, %v3617
        %v3676 = vadd.f32 %v3336, %v3619
        %v3677 = vadd.f32 %v3339, %v3622
        %v3678 = vadd.f32 %v3341, %v3624
        %v3679 = vadd.f32 %v3344, %v3627
        %v3680 = vadd.f32 %v3346, %v3629
        %v3681 = vadd.f32 %v3349, %v3632
        %v3682 = vadd.f32 %v3351, %v3634
        %v3683 = vadd.f32 %v3354, %v3637
        %v3684 = vadd.f32 %v3356, %v3639
        %v3685 = vadd.f32 %v3359, %v3642
        %v3686 = vadd.f32 %v3361, %v3644
        %v3687 = vadd.f32 %v3364, %v3647
        %v3688 = vadd.f32 %v3366, %v3649
        %v3689 = vadd.f32 %v3369, %v3652
        %v3690 = vadd.f32 %v3371, %v3654
        %v3691 = vadd.f32 %v3374, %v3657
        %v3692 = vadd.f32 %v3376, %v3659
        %v3693 = vpack.c.bf16 %v2873, %v2872
        %s3694 = scalar_lea.vmem %s3, 48
        %v3695 = vld [vmem:[%s3694] sm:$0xf]
        %v3696 = vld [vmem:[%s3694 + $0x4] sm:$0xf]
        %v3697 = vld [vmem:[%s3694 + $0x8] sm:$0xf]
        %v3698 = vld [vmem:[%s3694 + $0xc] sm:$0xf]
        %v3703 = vunpack.c.l.b16 %v3695
        %v3704 = vunpack.c.l.b16 %v3696
        %v3705 = vunpack.c.l.b16 %v3697
        %v3706 = vunpack.c.l.b16 %v3698
        %v3707 = vpack.c.b16 %v3704, %v3703
        %v3708 = vpack.c.b16 %v3706, %v3705
        %v3712 = vsel %vm2745, %v3693, 0
        %3714 = vmatpush.bf16.msra.mxu0 0
        %3715 = vmatpush.bf16.msra.mxu0 0
        %3716 = vmatpush.bf16.msra.mxu0 0
        %3717 = vmatpush.bf16.msra.mxu0 0
        %3718 = vmatpush.bf16.msra.mxu0 0
        %3719 = vmatpush.bf16.msra.mxu0 0
        %3720 = vmatpush.bf16.msra.mxu0 %v3708
        %3721 = vmatpush.bf16.msra.mxu0 %v3707
        %3722 = vmatmul.bf16.gmra.mxu0 %v3245
        %v3723 = vpop.f32.mrf.mxu0
        %v3724 = vadd.f32 0.0, %v3723
        %v3725 = vpop.f32.mrf.mxu0
        %v3726 = vadd.f32 0.0, %v3725
        %3727 = vmatmul.bf16.gmra.mxu0 %v3248
        %v3728 = vpop.f32.mrf.mxu0
        %v3729 = vadd.f32 0.0, %v3728
        %v3730 = vpop.f32.mrf.mxu0
        %v3731 = vadd.f32 0.0, %v3730
        %3732 = vmatmul.bf16.gmra.mxu0 %v3251
        %v3733 = vpop.f32.mrf.mxu0
        %v3734 = vadd.f32 0.0, %v3733
        %v3735 = vpop.f32.mrf.mxu0
        %v3736 = vadd.f32 0.0, %v3735
        %3737 = vmatmul.bf16.gmra.mxu0 %v3254
        %v3738 = vpop.f32.mrf.mxu0
        %v3739 = vadd.f32 0.0, %v3738
        %v3740 = vpop.f32.mrf.mxu0
        %v3741 = vadd.f32 0.0, %v3740
        %3742 = vmatmul.bf16.gmra.mxu0 %v3257
        %v3743 = vpop.f32.mrf.mxu0
        %v3744 = vadd.f32 0.0, %v3743
        %v3745 = vpop.f32.mrf.mxu0
        %v3746 = vadd.f32 0.0, %v3745
        %3747 = vmatmul.bf16.gmra.mxu0 %v3260
        %v3748 = vpop.f32.mrf.mxu0
        %v3749 = vadd.f32 0.0, %v3748
        %v3750 = vpop.f32.mrf.mxu0
        %v3751 = vadd.f32 0.0, %v3750
        %3752 = vmatmul.bf16.gmra.mxu0 %v3263
        %v3753 = vpop.f32.mrf.mxu0
        %v3754 = vadd.f32 0.0, %v3753
        %v3755 = vpop.f32.mrf.mxu0
        %v3756 = vadd.f32 0.0, %v3755
        %3757 = vmatmul.bf16.gmra.mxu0 %v3266
        %v3758 = vpop.f32.mrf.mxu0
        %v3759 = vadd.f32 0.0, %v3758
        %v3760 = vpop.f32.mrf.mxu0
        %v3761 = vadd.f32 0.0, %v3760
        %3762 = vmatmul.bf16.gmra.mxu0 %v3269
        %v3763 = vpop.f32.mrf.mxu0
        %v3764 = vadd.f32 0.0, %v3763
        %v3765 = vpop.f32.mrf.mxu0
        %v3766 = vadd.f32 0.0, %v3765
        %3767 = vmatmul.bf16.gmra.mxu0 %v3272
        %v3768 = vpop.f32.mrf.mxu0
        %v3769 = vadd.f32 0.0, %v3768
        %v3770 = vpop.f32.mrf.mxu0
        %v3771 = vadd.f32 0.0, %v3770
        %3772 = vmatmul.bf16.gmra.mxu0 %v3275
        %v3773 = vpop.f32.mrf.mxu0
        %v3774 = vadd.f32 0.0, %v3773
        %v3775 = vpop.f32.mrf.mxu0
        %v3776 = vadd.f32 0.0, %v3775
        %3777 = vmatmul.bf16.gmra.mxu0 %v3278
        %v3778 = vpop.f32.mrf.mxu0
        %v3779 = vadd.f32 0.0, %v3778
        %v3780 = vpop.f32.mrf.mxu0
        %v3781 = vadd.f32 0.0, %v3780
        %3782 = vmatmul.bf16.gmra.mxu0 %v3281
        %v3783 = vpop.f32.mrf.mxu0
        %v3784 = vadd.f32 0.0, %v3783
        %v3785 = vpop.f32.mrf.mxu0
        %v3786 = vadd.f32 0.0, %v3785
        %3787 = vmatmul.bf16.gmra.mxu0 %v3284
        %v3788 = vpop.f32.mrf.mxu0
        %v3789 = vadd.f32 0.0, %v3788
        %v3790 = vpop.f32.mrf.mxu0
        %v3791 = vadd.f32 0.0, %v3790
        %3792 = vmatmul.bf16.gmra.mxu0 %v3287
        %v3793 = vpop.f32.mrf.mxu0
        %v3794 = vadd.f32 0.0, %v3793
        %v3795 = vpop.f32.mrf.mxu0
        %v3796 = vadd.f32 0.0, %v3795
        %3797 = vmatmul.bf16.gmra.mxu0 %v3712
        %v3798 = vpop.f32.mrf.mxu0
        %v3799 = vadd.f32 0.0, %v3798
        %v3800 = vpop.f32.mrf.mxu0
        %v3801 = vadd.f32 0.0, %v3800
        %3802 = vdwg.mxu0
        %v3803 = vadd.f32 %v3661, %v3724
        %v3804 = vadd.f32 %v3662, %v3726
        %v3805 = vadd.f32 %v3663, %v3729
        %v3806 = vadd.f32 %v3664, %v3731
        %v3807 = vadd.f32 %v3665, %v3734
        %v3808 = vadd.f32 %v3666, %v3736
        %v3809 = vadd.f32 %v3667, %v3739
        %v3810 = vadd.f32 %v3668, %v3741
        %v3811 = vadd.f32 %v3669, %v3744
        %v3812 = vadd.f32 %v3670, %v3746
        %v3813 = vadd.f32 %v3671, %v3749
        %v3814 = vadd.f32 %v3672, %v3751
        %v3815 = vadd.f32 %v3673, %v3754
        %v3816 = vadd.f32 %v3674, %v3756
        %v3817 = vadd.f32 %v3675, %v3759
        %v3818 = vadd.f32 %v3676, %v3761
        %v3819 = vadd.f32 %v3677, %v3764
        %v3820 = vadd.f32 %v3678, %v3766
        %v3821 = vadd.f32 %v3679, %v3769
        %v3822 = vadd.f32 %v3680, %v3771
        %v3823 = vadd.f32 %v3681, %v3774
        %v3824 = vadd.f32 %v3682, %v3776
        %v3825 = vadd.f32 %v3683, %v3779
        %v3826 = vadd.f32 %v3684, %v3781
        %v3827 = vadd.f32 %v3685, %v3784
        %v3828 = vadd.f32 %v3686, %v3786
        %v3829 = vadd.f32 %v3687, %v3789
        %v3830 = vadd.f32 %v3688, %v3791
        %v3831 = vadd.f32 %v3689, %v3794
        %v3832 = vadd.f32 %v3690, %v3796
        %v3833 = vadd.f32 %v3691, %v3799
        %v3834 = vadd.f32 %v3692, %v3801
        %v3838 = vrot.slane %v2872, 1
        %v3839 = vrot.slane %v2873, 1
        %v3840 = vsel %vm2946, %v3838, %v3839
        %v3841 = vrot.slane %v2874, 1
        %v3842 = vsel %vm2946, %v3839, %v3841
        %v3845 = vpack.c.bf16 %v3842, %v3840
        %s3846 = scalar_lea.vmem %s3, 64
        %v3847 = vld [vmem:[%s3846] sm:$0xf]
        %v3848 = vld [vmem:[%s3846 + $0x4] sm:$0xf]
        %v3849 = vld [vmem:[%s3846 + $0x8] sm:$0xf]
        %v3850 = vld [vmem:[%s3846 + $0xc] sm:$0xf]
        %v3855 = vunpack.c.l.b16 %v3847
        %v3856 = vunpack.c.l.b16 %v3848
        %v3857 = vunpack.c.l.b16 %v3849
        %v3858 = vunpack.c.l.b16 %v3850
        %v3859 = vpack.c.b16 %v3856, %v3855
        %v3860 = vpack.c.b16 %v3858, %v3857
        %v3864 = vsel %vm2745, %v3845, 0
        %3866 = vmatpush.bf16.msra.mxu0 0
        %3867 = vmatpush.bf16.msra.mxu0 0
        %3868 = vmatpush.bf16.msra.mxu0 0
        %3869 = vmatpush.bf16.msra.mxu0 0
        %3870 = vmatpush.bf16.msra.mxu0 0
        %3871 = vmatpush.bf16.msra.mxu0 0
        %3872 = vmatpush.bf16.msra.mxu0 %v3860
        %3873 = vmatpush.bf16.msra.mxu0 %v3859
        %3874 = vmatmul.bf16.gmra.mxu0 %v3096
        %v3875 = vpop.f32.mrf.mxu0
        %v3876 = vadd.f32 0.0, %v3875
        %v3877 = vpop.f32.mrf.mxu0
        %v3878 = vadd.f32 0.0, %v3877
        %3879 = vmatmul.bf16.gmra.mxu0 %v3099
        %v3880 = vpop.f32.mrf.mxu0
        %v3881 = vadd.f32 0.0, %v3880
        %v3882 = vpop.f32.mrf.mxu0
        %v3883 = vadd.f32 0.0, %v3882
        %3884 = vmatmul.bf16.gmra.mxu0 %v3102
        %v3885 = vpop.f32.mrf.mxu0
        %v3886 = vadd.f32 0.0, %v3885
        %v3887 = vpop.f32.mrf.mxu0
        %v3888 = vadd.f32 0.0, %v3887
        %3889 = vmatmul.bf16.gmra.mxu0 %v3105
        %v3890 = vpop.f32.mrf.mxu0
        %v3891 = vadd.f32 0.0, %v3890
        %v3892 = vpop.f32.mrf.mxu0
        %v3893 = vadd.f32 0.0, %v3892
        %3894 = vmatmul.bf16.gmra.mxu0 %v3108
        %v3895 = vpop.f32.mrf.mxu0
        %v3896 = vadd.f32 0.0, %v3895
        %v3897 = vpop.f32.mrf.mxu0
        %v3898 = vadd.f32 0.0, %v3897
        %3899 = vmatmul.bf16.gmra.mxu0 %v3111
        %v3900 = vpop.f32.mrf.mxu0
        %v3901 = vadd.f32 0.0, %v3900
        %v3902 = vpop.f32.mrf.mxu0
        %v3903 = vadd.f32 0.0, %v3902
        %3904 = vmatmul.bf16.gmra.mxu0 %v3114
        %v3905 = vpop.f32.mrf.mxu0
        %v3906 = vadd.f32 0.0, %v3905
        %v3907 = vpop.f32.mrf.mxu0
        %v3908 = vadd.f32 0.0, %v3907
        %3909 = vmatmul.bf16.gmra.mxu0 %v3117
        %v3910 = vpop.f32.mrf.mxu0
        %v3911 = vadd.f32 0.0, %v3910
        %v3912 = vpop.f32.mrf.mxu0
        %v3913 = vadd.f32 0.0, %v3912
        %3914 = vmatmul.bf16.gmra.mxu0 %v3120
        %v3915 = vpop.f32.mrf.mxu0
        %v3916 = vadd.f32 0.0, %v3915
        %v3917 = vpop.f32.mrf.mxu0
        %v3918 = vadd.f32 0.0, %v3917
        %3919 = vmatmul.bf16.gmra.mxu0 %v3123
        %v3920 = vpop.f32.mrf.mxu0
        %v3921 = vadd.f32 0.0, %v3920
        %v3922 = vpop.f32.mrf.mxu0
        %v3923 = vadd.f32 0.0, %v3922
        %3924 = vmatmul.bf16.gmra.mxu0 %v3126
        %v3925 = vpop.f32.mrf.mxu0
        %v3926 = vadd.f32 0.0, %v3925
        %v3927 = vpop.f32.mrf.mxu0
        %v3928 = vadd.f32 0.0, %v3927
        %3929 = vmatmul.bf16.gmra.mxu0 %v3129
        %v3930 = vpop.f32.mrf.mxu0
        %v3931 = vadd.f32 0.0, %v3930
        %v3932 = vpop.f32.mrf.mxu0
        %v3933 = vadd.f32 0.0, %v3932
        %3934 = vmatmul.bf16.gmra.mxu0 %v3132
        %v3935 = vpop.f32.mrf.mxu0
        %v3936 = vadd.f32 0.0, %v3935
        %v3937 = vpop.f32.mrf.mxu0
        %v3938 = vadd.f32 0.0, %v3937
        %3939 = vmatmul.bf16.gmra.mxu0 %v3135
        %v3940 = vpop.f32.mrf.mxu0
        %v3941 = vadd.f32 0.0, %v3940
        %v3942 = vpop.f32.mrf.mxu0
        %v3943 = vadd.f32 0.0, %v3942
        %3944 = vmatmul.bf16.gmra.mxu0 %v3138
        %v3945 = vpop.f32.mrf.mxu0
        %v3946 = vadd.f32 0.0, %v3945
        %v3947 = vpop.f32.mrf.mxu0
        %v3948 = vadd.f32 0.0, %v3947
        %3949 = vmatmul.bf16.gmra.mxu0 %v3864
        %v3950 = vpop.f32.mrf.mxu0
        %v3951 = vadd.f32 0.0, %v3950
        %v3952 = vpop.f32.mrf.mxu0
        %v3953 = vadd.f32 0.0, %v3952
        %3954 = vdwg.mxu0
        %v3955 = vadd.f32 %v3803, %v3876
        %v3956 = vadd.f32 %v3804, %v3878
        %v3957 = vadd.f32 %v3805, %v3881
        %v3958 = vadd.f32 %v3806, %v3883
        %v3959 = vadd.f32 %v3807, %v3886
        %v3960 = vadd.f32 %v3808, %v3888
        %v3961 = vadd.f32 %v3809, %v3891
        %v3962 = vadd.f32 %v3810, %v3893
        %v3963 = vadd.f32 %v3811, %v3896
        %v3964 = vadd.f32 %v3812, %v3898
        %v3965 = vadd.f32 %v3813, %v3901
        %v3966 = vadd.f32 %v3814, %v3903
        %v3967 = vadd.f32 %v3815, %v3906
        %v3968 = vadd.f32 %v3816, %v3908
        %v3969 = vadd.f32 %v3817, %v3911
        %v3970 = vadd.f32 %v3818, %v3913
        %v3971 = vadd.f32 %v3819, %v3916
        %v3972 = vadd.f32 %v3820, %v3918
        %v3973 = vadd.f32 %v3821, %v3921
        %v3974 = vadd.f32 %v3822, %v3923
        %v3975 = vadd.f32 %v3823, %v3926
        %v3976 = vadd.f32 %v3824, %v3928
        %v3977 = vadd.f32 %v3825, %v3931
        %v3978 = vadd.f32 %v3826, %v3933
        %v3979 = vadd.f32 %v3827, %v3936
        %v3980 = vadd.f32 %v3828, %v3938
        %v3981 = vadd.f32 %v3829, %v3941
        %v3982 = vadd.f32 %v3830, %v3943
        %v3983 = vadd.f32 %v3831, %v3946
        %v3984 = vadd.f32 %v3832, %v3948
        %v3985 = vadd.f32 %v3833, %v3951
        %v3986 = vadd.f32 %v3834, %v3953
        %v3987 = vrot.slane %v2872, 2
        %v3988 = vrot.slane %v2873, 2
        %v3989 = vsel %vm3378, %v3987, %v3988
        %v3990 = vrot.slane %v2874, 2
        %v3991 = vsel %vm3378, %v3988, %v3990
        %v3994 = vpack.c.bf16 %v3991, %v3989
        %s3995 = scalar_lea.vmem %s3, 80
        %v3996 = vld [vmem:[%s3995] sm:$0xf]
        %v3997 = vld [vmem:[%s3995 + $0x4] sm:$0xf]
        %v3998 = vld [vmem:[%s3995 + $0x8] sm:$0xf]
        %v3999 = vld [vmem:[%s3995 + $0xc] sm:$0xf]
        %v4004 = vunpack.c.l.b16 %v3996
        %v4005 = vunpack.c.l.b16 %v3997
        %v4006 = vunpack.c.l.b16 %v3998
        %v4007 = vunpack.c.l.b16 %v3999
        %v4008 = vpack.c.b16 %v4005, %v4004
        %v4009 = vpack.c.b16 %v4007, %v4006
        %v4013 = vsel %vm2745, %v3994, 0
        %4015 = vmatpush.bf16.msra.mxu0 0
        %4016 = vmatpush.bf16.msra.mxu0 0
        %4017 = vmatpush.bf16.msra.mxu0 0
        %4018 = vmatpush.bf16.msra.mxu0 0
        %4019 = vmatpush.bf16.msra.mxu0 0
        %4020 = vmatpush.bf16.msra.mxu0 0
        %4021 = vmatpush.bf16.msra.mxu0 %v4009
        %4022 = vmatpush.bf16.msra.mxu0 %v4008
        %4023 = vmatmul.bf16.gmra.mxu0 %v3528
        %v4024 = vpop.f32.mrf.mxu0
        %v4025 = vadd.f32 0.0, %v4024
        %v4026 = vpop.f32.mrf.mxu0
        %v4027 = vadd.f32 0.0, %v4026
        %4028 = vmatmul.bf16.gmra.mxu0 %v3531
        %v4029 = vpop.f32.mrf.mxu0
        %v4030 = vadd.f32 0.0, %v4029
        %v4031 = vpop.f32.mrf.mxu0
        %v4032 = vadd.f32 0.0, %v4031
        %4033 = vmatmul.bf16.gmra.mxu0 %v3534
        %v4034 = vpop.f32.mrf.mxu0
        %v4035 = vadd.f32 0.0, %v4034
        %v4036 = vpop.f32.mrf.mxu0
        %v4037 = vadd.f32 0.0, %v4036
        %4038 = vmatmul.bf16.gmra.mxu0 %v3537
        %v4039 = vpop.f32.mrf.mxu0
        %v4040 = vadd.f32 0.0, %v4039
        %v4041 = vpop.f32.mrf.mxu0
        %v4042 = vadd.f32 0.0, %v4041
        %4043 = vmatmul.bf16.gmra.mxu0 %v3540
        %v4044 = vpop.f32.mrf.mxu0
        %v4045 = vadd.f32 0.0, %v4044
        %v4046 = vpop.f32.mrf.mxu0
        %v4047 = vadd.f32 0.0, %v4046
        %4048 = vmatmul.bf16.gmra.mxu0 %v3543
        %v4049 = vpop.f32.mrf.mxu0
        %v4050 = vadd.f32 0.0, %v4049
        %v4051 = vpop.f32.mrf.mxu0
        %v4052 = vadd.f32 0.0, %v4051
        %4053 = vmatmul.bf16.gmra.mxu0 %v3546
        %v4054 = vpop.f32.mrf.mxu0
        %v4055 = vadd.f32 0.0, %v4054
        %v4056 = vpop.f32.mrf.mxu0
        %v4057 = vadd.f32 0.0, %v4056
        %4058 = vmatmul.bf16.gmra.mxu0 %v3549
        %v4059 = vpop.f32.mrf.mxu0
        %v4060 = vadd.f32 0.0, %v4059
        %v4061 = vpop.f32.mrf.mxu0
        %v4062 = vadd.f32 0.0, %v4061
        %4063 = vmatmul.bf16.gmra.mxu0 %v3552
        %v4064 = vpop.f32.mrf.mxu0
        %v4065 = vadd.f32 0.0, %v4064
        %v4066 = vpop.f32.mrf.mxu0
        %v4067 = vadd.f32 0.0, %v4066
        %4068 = vmatmul.bf16.gmra.mxu0 %v3555
        %v4069 = vpop.f32.mrf.mxu0
        %v4070 = vadd.f32 0.0, %v4069
        %v4071 = vpop.f32.mrf.mxu0
        %v4072 = vadd.f32 0.0, %v4071
        %4073 = vmatmul.bf16.gmra.mxu0 %v3558
        %v4074 = vpop.f32.mrf.mxu0
        %v4075 = vadd.f32 0.0, %v4074
        %v4076 = vpop.f32.mrf.mxu0
        %v4077 = vadd.f32 0.0, %v4076
        %4078 = vmatmul.bf16.gmra.mxu0 %v3561
        %v4079 = vpop.f32.mrf.mxu0
        %v4080 = vadd.f32 0.0, %v4079
        %v4081 = vpop.f32.mrf.mxu0
        %v4082 = vadd.f32 0.0, %v4081
        %4083 = vmatmul.bf16.gmra.mxu0 %v3564
        %v4084 = vpop.f32.mrf.mxu0
        %v4085 = vadd.f32 0.0, %v4084
        %v4086 = vpop.f32.mrf.mxu0
        %v4087 = vadd.f32 0.0, %v4086
        %4088 = vmatmul.bf16.gmra.mxu0 %v3567
        %v4089 = vpop.f32.mrf.mxu0
        %v4090 = vadd.f32 0.0, %v4089
        %v4091 = vpop.f32.mrf.mxu0
        %v4092 = vadd.f32 0.0, %v4091
        %4093 = vmatmul.bf16.gmra.mxu0 %v3570
        %v4094 = vpop.f32.mrf.mxu0
        %v4095 = vadd.f32 0.0, %v4094
        %v4096 = vpop.f32.mrf.mxu0
        %v4097 = vadd.f32 0.0, %v4096
        %4098 = vmatmul.bf16.gmra.mxu0 %v4013
        %v4099 = vpop.f32.mrf.mxu0
        %v4100 = vadd.f32 0.0, %v4099
        %v4101 = vpop.f32.mrf.mxu0
        %v4102 = vadd.f32 0.0, %v4101
        %4103 = vdwg.mxu0
        %v4104 = vadd.f32 %v3955, %v4025
        %v4105 = vadd.f32 %v3956, %v4027
        %v4106 = vadd.f32 %v3957, %v4030
        %v4107 = vadd.f32 %v3958, %v4032
        %v4108 = vadd.f32 %v3959, %v4035
        %v4109 = vadd.f32 %v3960, %v4037
        %v4110 = vadd.f32 %v3961, %v4040
        %v4111 = vadd.f32 %v3962, %v4042
        %v4112 = vadd.f32 %v3963, %v4045
        %v4113 = vadd.f32 %v3964, %v4047
        %v4114 = vadd.f32 %v3965, %v4050
        %v4115 = vadd.f32 %v3966, %v4052
        %v4116 = vadd.f32 %v3967, %v4055
        %v4117 = vadd.f32 %v3968, %v4057
        %v4118 = vadd.f32 %v3969, %v4060
        %v4119 = vadd.f32 %v3970, %v4062
        %v4120 = vadd.f32 %v3971, %v4065
        %v4121 = vadd.f32 %v3972, %v4067
        %v4122 = vadd.f32 %v3973, %v4070
        %v4123 = vadd.f32 %v3974, %v4072
        %v4124 = vadd.f32 %v3975, %v4075
        %v4125 = vadd.f32 %v3976, %v4077
        %v4126 = vadd.f32 %v3977, %v4080
        %v4127 = vadd.f32 %v3978, %v4082
        %v4128 = vadd.f32 %v3979, %v4085
        %v4129 = vadd.f32 %v3980, %v4087
        %v4130 = vadd.f32 %v3981, %v4090
        %v4131 = vadd.f32 %v3982, %v4092
        %v4132 = vadd.f32 %v3983, %v4095
        %v4133 = vadd.f32 %v3984, %v4097
        %v4134 = vadd.f32 %v3985, %v4100
        %v4135 = vadd.f32 %v3986, %v4102
        %v4136 = vpack.c.bf16 %v2876, %v2875
        %s4137 = scalar_lea.vmem %s3, 96
        %v4138 = vld [vmem:[%s4137] sm:$0xf]
        %v4139 = vld [vmem:[%s4137 + $0x4] sm:$0xf]
        %v4140 = vld [vmem:[%s4137 + $0x8] sm:$0xf]
        %v4141 = vld [vmem:[%s4137 + $0xc] sm:$0xf]
        %v4146 = vunpack.c.l.b16 %v4138
        %v4147 = vunpack.c.l.b16 %v4139
        %v4148 = vunpack.c.l.b16 %v4140
        %v4149 = vunpack.c.l.b16 %v4141
        %v4150 = vpack.c.b16 %v4147, %v4146
        %v4151 = vpack.c.b16 %v4149, %v4148
        %v4155 = vsel %vm2745, %v4136, 0
        %4157 = vmatpush.bf16.msra.mxu0 0
        %4158 = vmatpush.bf16.msra.mxu0 0
        %4159 = vmatpush.bf16.msra.mxu0 0
        %4160 = vmatpush.bf16.msra.mxu0 0
        %4161 = vmatpush.bf16.msra.mxu0 0
        %4162 = vmatpush.bf16.msra.mxu0 0
        %4163 = vmatpush.bf16.msra.mxu0 %v4151
        %4164 = vmatpush.bf16.msra.mxu0 %v4150
        %4165 = vmatmul.bf16.gmra.mxu0 %v3248
        %v4166 = vpop.f32.mrf.mxu0
        %v4167 = vadd.f32 0.0, %v4166
        %v4168 = vpop.f32.mrf.mxu0
        %v4169 = vadd.f32 0.0, %v4168
        %4170 = vmatmul.bf16.gmra.mxu0 %v3251
        %v4171 = vpop.f32.mrf.mxu0
        %v4172 = vadd.f32 0.0, %v4171
        %v4173 = vpop.f32.mrf.mxu0
        %v4174 = vadd.f32 0.0, %v4173
        %4175 = vmatmul.bf16.gmra.mxu0 %v3254
        %v4176 = vpop.f32.mrf.mxu0
        %v4177 = vadd.f32 0.0, %v4176
        %v4178 = vpop.f32.mrf.mxu0
        %v4179 = vadd.f32 0.0, %v4178
        %4180 = vmatmul.bf16.gmra.mxu0 %v3257
        %v4181 = vpop.f32.mrf.mxu0
        %v4182 = vadd.f32 0.0, %v4181
        %v4183 = vpop.f32.mrf.mxu0
        %v4184 = vadd.f32 0.0, %v4183
        %4185 = vmatmul.bf16.gmra.mxu0 %v3260
        %v4186 = vpop.f32.mrf.mxu0
        %v4187 = vadd.f32 0.0, %v4186
        %v4188 = vpop.f32.mrf.mxu0
        %v4189 = vadd.f32 0.0, %v4188
        %4190 = vmatmul.bf16.gmra.mxu0 %v3263
        %v4191 = vpop.f32.mrf.mxu0
        %v4192 = vadd.f32 0.0, %v4191
        %v4193 = vpop.f32.mrf.mxu0
        %v4194 = vadd.f32 0.0, %v4193
        %4195 = vmatmul.bf16.gmra.mxu0 %v3266
        %v4196 = vpop.f32.mrf.mxu0
        %v4197 = vadd.f32 0.0, %v4196
        %v4198 = vpop.f32.mrf.mxu0
        %v4199 = vadd.f32 0.0, %v4198
        %4200 = vmatmul.bf16.gmra.mxu0 %v3269
        %v4201 = vpop.f32.mrf.mxu0
        %v4202 = vadd.f32 0.0, %v4201
        %v4203 = vpop.f32.mrf.mxu0
        %v4204 = vadd.f32 0.0, %v4203
        %4205 = vmatmul.bf16.gmra.mxu0 %v3272
        %v4206 = vpop.f32.mrf.mxu0
        %v4207 = vadd.f32 0.0, %v4206
        %v4208 = vpop.f32.mrf.mxu0
        %v4209 = vadd.f32 0.0, %v4208
        %4210 = vmatmul.bf16.gmra.mxu0 %v3275
        %v4211 = vpop.f32.mrf.mxu0
        %v4212 = vadd.f32 0.0, %v4211
        %v4213 = vpop.f32.mrf.mxu0
        %v4214 = vadd.f32 0.0, %v4213
        %4215 = vmatmul.bf16.gmra.mxu0 %v3278
        %v4216 = vpop.f32.mrf.mxu0
        %v4217 = vadd.f32 0.0, %v4216
        %v4218 = vpop.f32.mrf.mxu0
        %v4219 = vadd.f32 0.0, %v4218
        %4220 = vmatmul.bf16.gmra.mxu0 %v3281
        %v4221 = vpop.f32.mrf.mxu0
        %v4222 = vadd.f32 0.0, %v4221
        %v4223 = vpop.f32.mrf.mxu0
        %v4224 = vadd.f32 0.0, %v4223
        %4225 = vmatmul.bf16.gmra.mxu0 %v3284
        %v4226 = vpop.f32.mrf.mxu0
        %v4227 = vadd.f32 0.0, %v4226
        %v4228 = vpop.f32.mrf.mxu0
        %v4229 = vadd.f32 0.0, %v4228
        %4230 = vmatmul.bf16.gmra.mxu0 %v3287
        %v4231 = vpop.f32.mrf.mxu0
        %v4232 = vadd.f32 0.0, %v4231
        %v4233 = vpop.f32.mrf.mxu0
        %v4234 = vadd.f32 0.0, %v4233
        %4235 = vmatmul.bf16.gmra.mxu0 %v3712
        %v4236 = vpop.f32.mrf.mxu0
        %v4237 = vadd.f32 0.0, %v4236
        %v4238 = vpop.f32.mrf.mxu0
        %v4239 = vadd.f32 0.0, %v4238
        %4240 = vmatmul.bf16.gmra.mxu0 %v4155
        %v4241 = vpop.f32.mrf.mxu0
        %v4242 = vadd.f32 0.0, %v4241
        %v4243 = vpop.f32.mrf.mxu0
        %v4244 = vadd.f32 0.0, %v4243
        %4245 = vdwg.mxu0
        %v4246 = vadd.f32 %v4104, %v4167
        %v4247 = vadd.f32 %v4105, %v4169
        %v4248 = vadd.f32 %v4106, %v4172
        %v4249 = vadd.f32 %v4107, %v4174
        %v4250 = vadd.f32 %v4108, %v4177
        %v4251 = vadd.f32 %v4109, %v4179
        %v4252 = vadd.f32 %v4110, %v4182
        %v4253 = vadd.f32 %v4111, %v4184
        %v4254 = vadd.f32 %v4112, %v4187
        %v4255 = vadd.f32 %v4113, %v4189
        %v4256 = vadd.f32 %v4114, %v4192
        %v4257 = vadd.f32 %v4115, %v4194
        %v4258 = vadd.f32 %v4116, %v4197
        %v4259 = vadd.f32 %v4117, %v4199
        %v4260 = vadd.f32 %v4118, %v4202
        %v4261 = vadd.f32 %v4119, %v4204
        %v4262 = vadd.f32 %v4120, %v4207
        %v4263 = vadd.f32 %v4121, %v4209
        %v4264 = vadd.f32 %v4122, %v4212
        %v4265 = vadd.f32 %v4123, %v4214
        %v4266 = vadd.f32 %v4124, %v4217
        %v4267 = vadd.f32 %v4125, %v4219
        %v4268 = vadd.f32 %v4126, %v4222
        %v4269 = vadd.f32 %v4127, %v4224
        %v4270 = vadd.f32 %v4128, %v4227
        %v4271 = vadd.f32 %v4129, %v4229
        %v4272 = vadd.f32 %v4130, %v4232
        %v4273 = vadd.f32 %v4131, %v4234
        %v4274 = vadd.f32 %v4132, %v4237
        %v4275 = vadd.f32 %v4133, %v4239
        %v4276 = vadd.f32 %v4134, %v4242
        %v4277 = vadd.f32 %v4135, %v4244
        %v4281 = vrot.slane %v2875, 1
        %v4282 = vrot.slane %v2876, 1
        %v4283 = vsel %vm2946, %v4281, %v4282
        %v4284 = vrot.slane %v2877, 1
        %v4285 = vsel %vm2946, %v4282, %v4284
        %v4288 = vpack.c.bf16 %v4285, %v4283
        %s4289 = scalar_lea.vmem %s3, 112
        %v4290 = vld [vmem:[%s4289] sm:$0xf]
        %v4291 = vld [vmem:[%s4289 + $0x4] sm:$0xf]
        %v4292 = vld [vmem:[%s4289 + $0x8] sm:$0xf]
        %v4293 = vld [vmem:[%s4289 + $0xc] sm:$0xf]
        %v4298 = vunpack.c.l.b16 %v4290
        %v4299 = vunpack.c.l.b16 %v4291
        %v4300 = vunpack.c.l.b16 %v4292
        %v4301 = vunpack.c.l.b16 %v4293
        %v4302 = vpack.c.b16 %v4299, %v4298
        %v4303 = vpack.c.b16 %v4301, %v4300
        %v4307 = vsel %vm2745, %v4288, 0
        %4309 = vmatpush.bf16.msra.mxu0 0
        %4310 = vmatpush.bf16.msra.mxu0 0
        %4311 = vmatpush.bf16.msra.mxu0 0
        %4312 = vmatpush.bf16.msra.mxu0 0
        %4313 = vmatpush.bf16.msra.mxu0 0
        %4314 = vmatpush.bf16.msra.mxu0 0
        %4315 = vmatpush.bf16.msra.mxu0 %v4303
        %4316 = vmatpush.bf16.msra.mxu0 %v4302
        %4317 = vmatmul.bf16.gmra.mxu0 %v3099
        %v4318 = vpop.f32.mrf.mxu0
        %v4319 = vadd.f32 0.0, %v4318
        %v4320 = vpop.f32.mrf.mxu0
        %v4321 = vadd.f32 0.0, %v4320
        %4322 = vmatmul.bf16.gmra.mxu0 %v3102
        %v4323 = vpop.f32.mrf.mxu0
        %v4324 = vadd.f32 0.0, %v4323
        %v4325 = vpop.f32.mrf.mxu0
        %v4326 = vadd.f32 0.0, %v4325
        %4327 = vmatmul.bf16.gmra.mxu0 %v3105
        %v4328 = vpop.f32.mrf.mxu0
        %v4329 = vadd.f32 0.0, %v4328
        %v4330 = vpop.f32.mrf.mxu0
        %v4331 = vadd.f32 0.0, %v4330
        %4332 = vmatmul.bf16.gmra.mxu0 %v3108
        %v4333 = vpop.f32.mrf.mxu0
        %v4334 = vadd.f32 0.0, %v4333
        %v4335 = vpop.f32.mrf.mxu0
        %v4336 = vadd.f32 0.0, %v4335
        %4337 = vmatmul.bf16.gmra.mxu0 %v3111
        %v4338 = vpop.f32.mrf.mxu0
        %v4339 = vadd.f32 0.0, %v4338
        %v4340 = vpop.f32.mrf.mxu0
        %v4341 = vadd.f32 0.0, %v4340
        %4342 = vmatmul.bf16.gmra.mxu0 %v3114
        %v4343 = vpop.f32.mrf.mxu0
        %v4344 = vadd.f32 0.0, %v4343
        %v4345 = vpop.f32.mrf.mxu0
        %v4346 = vadd.f32 0.0, %v4345
        %4347 = vmatmul.bf16.gmra.mxu0 %v3117
        %v4348 = vpop.f32.mrf.mxu0
        %v4349 = vadd.f32 0.0, %v4348
        %v4350 = vpop.f32.mrf.mxu0
        %v4351 = vadd.f32 0.0, %v4350
        %4352 = vmatmul.bf16.gmra.mxu0 %v3120
        %v4353 = vpop.f32.mrf.mxu0
        %v4354 = vadd.f32 0.0, %v4353
        %v4355 = vpop.f32.mrf.mxu0
        %v4356 = vadd.f32 0.0, %v4355
        %4357 = vmatmul.bf16.gmra.mxu0 %v3123
        %v4358 = vpop.f32.mrf.mxu0
        %v4359 = vadd.f32 0.0, %v4358
        %v4360 = vpop.f32.mrf.mxu0
        %v4361 = vadd.f32 0.0, %v4360
        %4362 = vmatmul.bf16.gmra.mxu0 %v3126
        %v4363 = vpop.f32.mrf.mxu0
        %v4364 = vadd.f32 0.0, %v4363
        %v4365 = vpop.f32.mrf.mxu0
        %v4366 = vadd.f32 0.0, %v4365
        %4367 = vmatmul.bf16.gmra.mxu0 %v3129
        %v4368 = vpop.f32.mrf.mxu0
        %v4369 = vadd.f32 0.0, %v4368
        %v4370 = vpop.f32.mrf.mxu0
        %v4371 = vadd.f32 0.0, %v4370
        %4372 = vmatmul.bf16.gmra.mxu0 %v3132
        %v4373 = vpop.f32.mrf.mxu0
        %v4374 = vadd.f32 0.0, %v4373
        %v4375 = vpop.f32.mrf.mxu0
        %v4376 = vadd.f32 0.0, %v4375
        %4377 = vmatmul.bf16.gmra.mxu0 %v3135
        %v4378 = vpop.f32.mrf.mxu0
        %v4379 = vadd.f32 0.0, %v4378
        %v4380 = vpop.f32.mrf.mxu0
        %v4381 = vadd.f32 0.0, %v4380
        %4382 = vmatmul.bf16.gmra.mxu0 %v3138
        %v4383 = vpop.f32.mrf.mxu0
        %v4384 = vadd.f32 0.0, %v4383
        %v4385 = vpop.f32.mrf.mxu0
        %v4386 = vadd.f32 0.0, %v4385
        %4387 = vmatmul.bf16.gmra.mxu0 %v3864
        %v4388 = vpop.f32.mrf.mxu0
        %v4389 = vadd.f32 0.0, %v4388
        %v4390 = vpop.f32.mrf.mxu0
        %v4391 = vadd.f32 0.0, %v4390
        %4392 = vmatmul.bf16.gmra.mxu0 %v4307
        %v4393 = vpop.f32.mrf.mxu0
        %v4394 = vadd.f32 0.0, %v4393
        %v4395 = vpop.f32.mrf.mxu0
        %v4396 = vadd.f32 0.0, %v4395
        %4397 = vdwg.mxu0
        %v4398 = vadd.f32 %v4246, %v4319
        %v4399 = vadd.f32 %v4247, %v4321
        %v4400 = vadd.f32 %v4248, %v4324
        %v4401 = vadd.f32 %v4249, %v4326
        %v4402 = vadd.f32 %v4250, %v4329
        %v4403 = vadd.f32 %v4251, %v4331
        %v4404 = vadd.f32 %v4252, %v4334
        %v4405 = vadd.f32 %v4253, %v4336
        %v4406 = vadd.f32 %v4254, %v4339
        %v4407 = vadd.f32 %v4255, %v4341
        %v4408 = vadd.f32 %v4256, %v4344
        %v4409 = vadd.f32 %v4257, %v4346
        %v4410 = vadd.f32 %v4258, %v4349
        %v4411 = vadd.f32 %v4259, %v4351
        %v4412 = vadd.f32 %v4260, %v4354
        %v4413 = vadd.f32 %v4261, %v4356
        %v4414 = vadd.f32 %v4262, %v4359
        %v4415 = vadd.f32 %v4263, %v4361
        %v4416 = vadd.f32 %v4264, %v4364
        %v4417 = vadd.f32 %v4265, %v4366
        %v4418 = vadd.f32 %v4266, %v4369
        %v4419 = vadd.f32 %v4267, %v4371
        %v4420 = vadd.f32 %v4268, %v4374
        %v4421 = vadd.f32 %v4269, %v4376
        %v4422 = vadd.f32 %v4270, %v4379
        %v4423 = vadd.f32 %v4271, %v4381
        %v4424 = vadd.f32 %v4272, %v4384
        %v4425 = vadd.f32 %v4273, %v4386
        %v4426 = vadd.f32 %v4274, %v4389
        %v4427 = vadd.f32 %v4275, %v4391
        %v4428 = vadd.f32 %v4276, %v4394
        %v4429 = vadd.f32 %v4277, %v4396
        %v4430 = vrot.slane %v2875, 2
        %v4431 = vrot.slane %v2876, 2
        %v4432 = vsel %vm3378, %v4430, %v4431
        %v4433 = vrot.slane %v2877, 2
        %v4434 = vsel %vm3378, %v4431, %v4433
        %v4437 = vpack.c.bf16 %v4434, %v4432
        %s4438 = scalar_lea.vmem %s3, 128
        %v4439 = vld [vmem:[%s4438] sm:$0xf]
        %v4440 = vld [vmem:[%s4438 + $0x4] sm:$0xf]
        %v4441 = vld [vmem:[%s4438 + $0x8] sm:$0xf]
        %v4442 = vld [vmem:[%s4438 + $0xc] sm:$0xf]
        %v4447 = vunpack.c.l.b16 %v4439
        %v4448 = vunpack.c.l.b16 %v4440
        %v4449 = vunpack.c.l.b16 %v4441
        %v4450 = vunpack.c.l.b16 %v4442
        %v4451 = vpack.c.b16 %v4448, %v4447
        %v4452 = vpack.c.b16 %v4450, %v4449
        %v4456 = vsel %vm2745, %v4437, 0
        %4458 = vmatpush.bf16.msra.mxu0 0
        %4459 = vmatpush.bf16.msra.mxu0 0
        %4460 = vmatpush.bf16.msra.mxu0 0
        %4461 = vmatpush.bf16.msra.mxu0 0
        %4462 = vmatpush.bf16.msra.mxu0 0
        %4463 = vmatpush.bf16.msra.mxu0 0
        %4464 = vmatpush.bf16.msra.mxu0 %v4452
        %4465 = vmatpush.bf16.msra.mxu0 %v4451
        %4466 = vmatmul.bf16.gmra.mxu0 %v3531
        %v4467 = vpop.f32.mrf.mxu0
        %v4468 = vadd.f32 0.0, %v4467
        %v4469 = vpop.f32.mrf.mxu0
        %v4470 = vadd.f32 0.0, %v4469
        %4471 = vmatmul.bf16.gmra.mxu0 %v3534
        %v4472 = vpop.f32.mrf.mxu0
        %v4473 = vadd.f32 0.0, %v4472
        %v4474 = vpop.f32.mrf.mxu0
        %v4475 = vadd.f32 0.0, %v4474
        %4476 = vmatmul.bf16.gmra.mxu0 %v3537
        %v4477 = vpop.f32.mrf.mxu0
        %v4478 = vadd.f32 0.0, %v4477
        %v4479 = vpop.f32.mrf.mxu0
        %v4480 = vadd.f32 0.0, %v4479
        %4481 = vmatmul.bf16.gmra.mxu0 %v3540
        %v4482 = vpop.f32.mrf.mxu0
        %v4483 = vadd.f32 0.0, %v4482
        %v4484 = vpop.f32.mrf.mxu0
        %v4485 = vadd.f32 0.0, %v4484
        %4486 = vmatmul.bf16.gmra.mxu0 %v3543
        %v4487 = vpop.f32.mrf.mxu0
        %v4488 = vadd.f32 0.0, %v4487
        %v4489 = vpop.f32.mrf.mxu0
        %v4490 = vadd.f32 0.0, %v4489
        %4491 = vmatmul.bf16.gmra.mxu0 %v3546
        %v4492 = vpop.f32.mrf.mxu0
        %v4493 = vadd.f32 0.0, %v4492
        %v4494 = vpop.f32.mrf.mxu0
        %v4495 = vadd.f32 0.0, %v4494
        %4496 = vmatmul.bf16.gmra.mxu0 %v3549
        %v4497 = vpop.f32.mrf.mxu0
        %v4498 = vadd.f32 0.0, %v4497
        %v4499 = vpop.f32.mrf.mxu0
        %v4500 = vadd.f32 0.0, %v4499
        %4501 = vmatmul.bf16.gmra.mxu0 %v3552
        %v4502 = vpop.f32.mrf.mxu0
        %v4503 = vadd.f32 0.0, %v4502
        %v4504 = vpop.f32.mrf.mxu0
        %v4505 = vadd.f32 0.0, %v4504
        %4506 = vmatmul.bf16.gmra.mxu0 %v3555
        %v4507 = vpop.f32.mrf.mxu0
        %v4508 = vadd.f32 0.0, %v4507
        %v4509 = vpop.f32.mrf.mxu0
        %v4510 = vadd.f32 0.0, %v4509
        %4511 = vmatmul.bf16.gmra.mxu0 %v3558
        %v4512 = vpop.f32.mrf.mxu0
        %v4513 = vadd.f32 0.0, %v4512
        %v4514 = vpop.f32.mrf.mxu0
        %v4515 = vadd.f32 0.0, %v4514
        %4516 = vmatmul.bf16.gmra.mxu0 %v3561
        %v4517 = vpop.f32.mrf.mxu0
        %v4518 = vadd.f32 0.0, %v4517
        %v4519 = vpop.f32.mrf.mxu0
        %v4520 = vadd.f32 0.0, %v4519
        %4521 = vmatmul.bf16.gmra.mxu0 %v3564
        %v4522 = vpop.f32.mrf.mxu0
        %v4523 = vadd.f32 0.0, %v4522
        %v4524 = vpop.f32.mrf.mxu0
        %v4525 = vadd.f32 0.0, %v4524
        %4526 = vmatmul.bf16.gmra.mxu0 %v3567
        %v4527 = vpop.f32.mrf.mxu0
        %v4528 = vadd.f32 0.0, %v4527
        %v4529 = vpop.f32.mrf.mxu0
        %v4530 = vadd.f32 0.0, %v4529
        %4531 = vmatmul.bf16.gmra.mxu0 %v3570
        %v4532 = vpop.f32.mrf.mxu0
        %v4533 = vadd.f32 0.0, %v4532
        %v4534 = vpop.f32.mrf.mxu0
        %v4535 = vadd.f32 0.0, %v4534
        %4536 = vmatmul.bf16.gmra.mxu0 %v4013
        %v4537 = vpop.f32.mrf.mxu0
        %v4538 = vadd.f32 0.0, %v4537
        %v4539 = vpop.f32.mrf.mxu0
        %v4540 = vadd.f32 0.0, %v4539
        %4541 = vmatmul.bf16.gmra.mxu0 %v4456
        %v4542 = vpop.f32.mrf.mxu0
        %v4543 = vadd.f32 0.0, %v4542
        %v4544 = vpop.f32.mrf.mxu0
        %v4545 = vadd.f32 0.0, %v4544
        %4546 = vdwg.mxu0
        %v4547 = vadd.f32 %v4398, %v4468
        %v4548 = vadd.f32 %v4399, %v4470
        %v4549 = vadd.f32 %v4400, %v4473
        %v4550 = vadd.f32 %v4401, %v4475
        %v4551 = vadd.f32 %v4402, %v4478
        %v4552 = vadd.f32 %v4403, %v4480
        %v4553 = vadd.f32 %v4404, %v4483
        %v4554 = vadd.f32 %v4405, %v4485
        %v4555 = vadd.f32 %v4406, %v4488
        %v4556 = vadd.f32 %v4407, %v4490
        %v4557 = vadd.f32 %v4408, %v4493
        %v4558 = vadd.f32 %v4409, %v4495
        %v4559 = vadd.f32 %v4410, %v4498
        %v4560 = vadd.f32 %v4411, %v4500
        %v4561 = vadd.f32 %v4412, %v4503
        %v4562 = vadd.f32 %v4413, %v4505
        %v4563 = vadd.f32 %v4414, %v4508
        %v4564 = vadd.f32 %v4415, %v4510
        %v4565 = vadd.f32 %v4416, %v4513
        %v4566 = vadd.f32 %v4417, %v4515
        %v4567 = vadd.f32 %v4418, %v4518
        %v4568 = vadd.f32 %v4419, %v4520
        %v4569 = vadd.f32 %v4420, %v4523
        %v4570 = vadd.f32 %v4421, %v4525
        %v4571 = vadd.f32 %v4422, %v4528
        %v4572 = vadd.f32 %v4423, %v4530
        %v4573 = vadd.f32 %v4424, %v4533
        %v4574 = vadd.f32 %v4425, %v4535
        %v4575 = vadd.f32 %v4426, %v4538
        %v4576 = vadd.f32 %v4427, %v4540
        %v4577 = vadd.f32 %v4428, %v4543
        %v4578 = vadd.f32 %v4429, %v4545
        %v4579 = vld [vmem:[%s4] sm:$0x1]
        %v4580 = vperm.slane %v4579, 0
        %v4581 = vadd.f32 %v4547, %v4580
        %v4582 = vadd.f32 %v4548, %v4580
        %v4583 = vadd.f32 %v4549, %v4580
        %v4584 = vadd.f32 %v4550, %v4580
        %v4585 = vadd.f32 %v4551, %v4580
        %v4586 = vadd.f32 %v4552, %v4580
        %v4587 = vadd.f32 %v4553, %v4580
        %v4588 = vadd.f32 %v4554, %v4580
        %v4589 = vadd.f32 %v4555, %v4580
        %v4590 = vadd.f32 %v4556, %v4580
        %v4591 = vadd.f32 %v4557, %v4580
        %v4592 = vadd.f32 %v4558, %v4580
        %v4593 = vadd.f32 %v4559, %v4580
        %v4594 = vadd.f32 %v4560, %v4580
        %v4595 = vadd.f32 %v4561, %v4580
        %v4596 = vadd.f32 %v4562, %v4580
        %v4597 = vadd.f32 %v4563, %v4580
        %v4598 = vadd.f32 %v4564, %v4580
        %v4599 = vadd.f32 %v4565, %v4580
        %v4600 = vadd.f32 %v4566, %v4580
        %v4601 = vadd.f32 %v4567, %v4580
        %v4602 = vadd.f32 %v4568, %v4580
        %v4603 = vadd.f32 %v4569, %v4580
        %v4604 = vadd.f32 %v4570, %v4580
        %v4605 = vadd.f32 %v4571, %v4580
        %v4606 = vadd.f32 %v4572, %v4580
        %v4607 = vadd.f32 %v4573, %v4580
        %v4608 = vadd.f32 %v4574, %v4580
        %v4609 = vadd.f32 %v4575, %v4580
        %v4610 = vadd.f32 %v4576, %v4580
        %v4611 = vadd.f32 %v4577, %v4580
        %v4612 = vadd.f32 %v4578, %v4580
        %vm4613 = vcmp.ge.f32.partialorder %v4581, 0.0
        %vm4614 = vcmp.ge.f32.partialorder %v4582, 0.0
        %vm4615 = vcmp.ge.f32.partialorder %v4583, 0.0
        %vm4616 = vcmp.ge.f32.partialorder %v4584, 0.0
        %vm4617 = vcmp.ge.f32.partialorder %v4585, 0.0
        %vm4618 = vcmp.ge.f32.partialorder %v4586, 0.0
        %vm4619 = vcmp.ge.f32.partialorder %v4587, 0.0
        %vm4620 = vcmp.ge.f32.partialorder %v4588, 0.0
        %vm4621 = vcmp.ge.f32.partialorder %v4589, 0.0
        %vm4622 = vcmp.ge.f32.partialorder %v4590, 0.0
        %vm4623 = vcmp.ge.f32.partialorder %v4591, 0.0
        %vm4624 = vcmp.ge.f32.partialorder %v4592, 0.0
        %vm4625 = vcmp.ge.f32.partialorder %v4593, 0.0
        %vm4626 = vcmp.ge.f32.partialorder %v4594, 0.0
        %vm4627 = vcmp.ge.f32.partialorder %v4595, 0.0
        %vm4628 = vcmp.ge.f32.partialorder %v4596, 0.0
        %vm4629 = vcmp.ge.f32.partialorder %v4597, 0.0
        %vm4630 = vcmp.ge.f32.partialorder %v4598, 0.0
        %vm4631 = vcmp.ge.f32.partialorder %v4599, 0.0
        %vm4632 = vcmp.ge.f32.partialorder %v4600, 0.0
        %vm4633 = vcmp.ge.f32.partialorder %v4601, 0.0
        %vm4634 = vcmp.ge.f32.partialorder %v4602, 0.0
        %vm4635 = vcmp.ge.f32.partialorder %v4603, 0.0
        %vm4636 = vcmp.ge.f32.partialorder %v4604, 0.0
        %vm4637 = vcmp.ge.f32.partialorder %v4605, 0.0
        %vm4638 = vcmp.ge.f32.partialorder %v4606, 0.0
        %vm4639 = vcmp.ge.f32.partialorder %v4607, 0.0
        %vm4640 = vcmp.ge.f32.partialorder %v4608, 0.0
        %vm4641 = vcmp.ge.f32.partialorder %v4609, 0.0
        %vm4642 = vcmp.ge.f32.partialorder %v4610, 0.0
        %vm4643 = vcmp.ge.f32.partialorder %v4611, 0.0
        %vm4644 = vcmp.ge.f32.partialorder %v4612, 0.0
        %v4645 = vmul.f32 %v4581, 0.2
        %v4646 = vmul.f32 %v4582, 0.2
        %v4647 = vmul.f32 %v4583, 0.2
        %v4648 = vmul.f32 %v4584, 0.2
        %v4649 = vmul.f32 %v4585, 0.2
        %v4650 = vmul.f32 %v4586, 0.2
        %v4651 = vmul.f32 %v4587, 0.2
        %v4652 = vmul.f32 %v4588, 0.2
        %v4653 = vmul.f32 %v4589, 0.2
        %v4654 = vmul.f32 %v4590, 0.2
        %v4655 = vmul.f32 %v4591, 0.2
        %v4656 = vmul.f32 %v4592, 0.2
        %v4657 = vmul.f32 %v4593, 0.2
        %v4658 = vmul.f32 %v4594, 0.2
        %v4659 = vmul.f32 %v4595, 0.2
        %v4660 = vmul.f32 %v4596, 0.2
        %v4661 = vmul.f32 %v4597, 0.2
        %v4662 = vmul.f32 %v4598, 0.2
        %v4663 = vmul.f32 %v4599, 0.2
        %v4664 = vmul.f32 %v4600, 0.2
        %v4665 = vmul.f32 %v4601, 0.2
        %v4666 = vmul.f32 %v4602, 0.2
        %v4667 = vmul.f32 %v4603, 0.2
        %v4668 = vmul.f32 %v4604, 0.2
        %v4669 = vmul.f32 %v4605, 0.2
        %v4670 = vmul.f32 %v4606, 0.2
        %v4671 = vmul.f32 %v4607, 0.2
        %v4672 = vmul.f32 %v4608, 0.2
        %v4673 = vmul.f32 %v4609, 0.2
        %v4674 = vmul.f32 %v4610, 0.2
        %v4675 = vmul.f32 %v4611, 0.2
        %v4676 = vmul.f32 %v4612, 0.2
        %v4677 = vsel %vm4613, %v4581, %v4645
        %v4678 = vsel %vm4614, %v4582, %v4646
        %v4679 = vsel %vm4615, %v4583, %v4647
        %v4680 = vsel %vm4616, %v4584, %v4648
        %v4681 = vsel %vm4617, %v4585, %v4649
        %v4682 = vsel %vm4618, %v4586, %v4650
        %v4683 = vsel %vm4619, %v4587, %v4651
        %v4684 = vsel %vm4620, %v4588, %v4652
        %v4685 = vsel %vm4621, %v4589, %v4653
        %v4686 = vsel %vm4622, %v4590, %v4654
        %v4687 = vsel %vm4623, %v4591, %v4655
        %v4688 = vsel %vm4624, %v4592, %v4656
        %v4689 = vsel %vm4625, %v4593, %v4657
        %v4690 = vsel %vm4626, %v4594, %v4658
        %v4691 = vsel %vm4627, %v4595, %v4659
        %v4692 = vsel %vm4628, %v4596, %v4660
        %v4693 = vsel %vm4629, %v4597, %v4661
        %v4694 = vsel %vm4630, %v4598, %v4662
        %v4695 = vsel %vm4631, %v4599, %v4663
        %v4696 = vsel %vm4632, %v4600, %v4664
        %v4697 = vsel %vm4633, %v4601, %v4665
        %v4698 = vsel %vm4634, %v4602, %v4666
        %v4699 = vsel %vm4635, %v4603, %v4667
        %v4700 = vsel %vm4636, %v4604, %v4668
        %v4701 = vsel %vm4637, %v4605, %v4669
        %v4702 = vsel %vm4638, %v4606, %v4670
        %v4703 = vsel %vm4639, %v4607, %v4671
        %v4704 = vsel %vm4640, %v4608, %v4672
        %v4705 = vsel %vm4641, %v4609, %v4673
        %v4706 = vsel %vm4642, %v4610, %v4674
        %v4707 = vsel %vm4643, %v4611, %v4675
        %v4708 = vsel %vm4644, %v4612, %v4676
        %v4709 = vld [vmem:[%s4 + $0x1] sm:$0x1]
        %v4710 = vperm.slane %v4709, 0
        %v4711 = vmul.f32 %v4677, %v4710
        %v4712 = vmul.f32 %v4678, %v4710
        %v4713 = vmul.f32 %v4679, %v4710
        %v4714 = vmul.f32 %v4680, %v4710
        %v4715 = vmul.f32 %v4681, %v4710
        %v4716 = vmul.f32 %v4682, %v4710
        %v4717 = vmul.f32 %v4683, %v4710
        %v4718 = vmul.f32 %v4684, %v4710
        %v4719 = vmul.f32 %v4685, %v4710
        %v4720 = vmul.f32 %v4686, %v4710
        %v4721 = vmul.f32 %v4687, %v4710
        %v4722 = vmul.f32 %v4688, %v4710
        %v4723 = vmul.f32 %v4689, %v4710
        %v4724 = vmul.f32 %v4690, %v4710
        %v4725 = vmul.f32 %v4691, %v4710
        %v4726 = vmul.f32 %v4692, %v4710
        %v4727 = vmul.f32 %v4693, %v4710
        %v4728 = vmul.f32 %v4694, %v4710
        %v4729 = vmul.f32 %v4695, %v4710
        %v4730 = vmul.f32 %v4696, %v4710
        %v4731 = vmul.f32 %v4697, %v4710
        %v4732 = vmul.f32 %v4698, %v4710
        %v4733 = vmul.f32 %v4699, %v4710
        %v4734 = vmul.f32 %v4700, %v4710
        %v4735 = vmul.f32 %v4701, %v4710
        %v4736 = vmul.f32 %v4702, %v4710
        %v4737 = vmul.f32 %v4703, %v4710
        %v4738 = vmul.f32 %v4704, %v4710
        %v4739 = vmul.f32 %v4705, %v4710
        %v4740 = vmul.f32 %v4706, %v4710
        %v4741 = vmul.f32 %v4707, %v4710
        %v4742 = vmul.f32 %v4708, %v4710
        %v4743 = vld [vmem:[%s4 + $0x2] sm:$0x1]
        %v4744 = vperm.slane %v4743, 0
        %v4745 = vadd.f32 %v4711, %v4744
        %v4746 = vadd.f32 %v4712, %v4744
        %v4747 = vadd.f32 %v4713, %v4744
        %v4748 = vadd.f32 %v4714, %v4744
        %v4749 = vadd.f32 %v4715, %v4744
        %v4750 = vadd.f32 %v4716, %v4744
        %v4751 = vadd.f32 %v4717, %v4744
        %v4752 = vadd.f32 %v4718, %v4744
        %v4753 = vadd.f32 %v4719, %v4744
        %v4754 = vadd.f32 %v4720, %v4744
        %v4755 = vadd.f32 %v4721, %v4744
        %v4756 = vadd.f32 %v4722, %v4744
        %v4757 = vadd.f32 %v4723, %v4744
        %v4758 = vadd.f32 %v4724, %v4744
        %v4759 = vadd.f32 %v4725, %v4744
        %v4760 = vadd.f32 %v4726, %v4744
        %v4761 = vadd.f32 %v4727, %v4744
        %v4762 = vadd.f32 %v4728, %v4744
        %v4763 = vadd.f32 %v4729, %v4744
        %v4764 = vadd.f32 %v4730, %v4744
        %v4765 = vadd.f32 %v4731, %v4744
        %v4766 = vadd.f32 %v4732, %v4744
        %v4767 = vadd.f32 %v4733, %v4744
        %v4768 = vadd.f32 %v4734, %v4744
        %v4769 = vadd.f32 %v4735, %v4744
        %v4770 = vadd.f32 %v4736, %v4744
        %v4771 = vadd.f32 %v4737, %v4744
        %v4772 = vadd.f32 %v4738, %v4744
        %v4773 = vadd.f32 %v4739, %v4744
        %v4774 = vadd.f32 %v4740, %v4744
        %v4775 = vadd.f32 %v4741, %v4744
        %v4776 = vadd.f32 %v4742, %v4744
        %4777 = vst [vmem:[%s217] sm:$0xff] %v4745
        %4778 = vst [vmem:[%s217 + $0x8] sm:$0xff] %v4746
        %4779 = vst [vmem:[%s217 + $0x10] sm:$0xff] %v4747
        %4780 = vst [vmem:[%s217 + $0x18] sm:$0xff] %v4748
        %4781 = vst [vmem:[%s217 + $0x20] sm:$0xff] %v4749
        %4782 = vst [vmem:[%s217 + $0x28] sm:$0xff] %v4750
        %4783 = vst [vmem:[%s217 + $0x30] sm:$0xff] %v4751
        %4784 = vst [vmem:[%s217 + $0x38] sm:$0xff] %v4752
        %4785 = vst [vmem:[%s217 + $0x40] sm:$0xff] %v4753
        %4786 = vst [vmem:[%s217 + $0x48] sm:$0xff] %v4754
        %4787 = vst [vmem:[%s217 + $0x50] sm:$0xff] %v4755
        %4788 = vst [vmem:[%s217 + $0x58] sm:$0xff] %v4756
        %4789 = vst [vmem:[%s217 + $0x60] sm:$0xff] %v4757
        %4790 = vst [vmem:[%s217 + $0x68] sm:$0xff] %v4758
        %4791 = vst [vmem:[%s217 + $0x70] sm:$0xff] %v4759
        %4792 = vst [vmem:[%s217 + $0x78] sm:$0xff] %v4760
        %4793 = vst [vmem:[%s217 + $0x80] sm:$0xff] %v4761
        %4794 = vst [vmem:[%s217 + $0x88] sm:$0xff] %v4762
        %4795 = vst [vmem:[%s217 + $0x90] sm:$0xff] %v4763
        %4796 = vst [vmem:[%s217 + $0x98] sm:$0xff] %v4764
        %4797 = vst [vmem:[%s217 + $0xa0] sm:$0xff] %v4765
        %4798 = vst [vmem:[%s217 + $0xa8] sm:$0xff] %v4766
        %4799 = vst [vmem:[%s217 + $0xb0] sm:$0xff] %v4767
        %4800 = vst [vmem:[%s217 + $0xb8] sm:$0xff] %v4768
        %4801 = vst [vmem:[%s217 + $0xc0] sm:$0xff] %v4769
        %4802 = vst [vmem:[%s217 + $0xc8] sm:$0xff] %v4770
        %4803 = vst [vmem:[%s217 + $0xd0] sm:$0xff] %v4771
        %4804 = vst [vmem:[%s217 + $0xd8] sm:$0xff] %v4772
        %4805 = vst [vmem:[%s217 + $0xe0] sm:$0xff] %v4773
        %4806 = vst [vmem:[%s217 + $0xe8] sm:$0xff] %v4774
        %4807 = vst [vmem:[%s217 + $0xf0] sm:$0xff] %v4775
        %4808 = vst [vmem:[%s217 + $0xf8] sm:$0xff] %v4776
        %s4809 = sand.u32 %s137, 1
        %s4810 = scalar_lea.sflag [#allocation4], %s4809
        %s4811 = sand.u32 %s137, 1
        %s4812 = smul.addr %s4811, 256
        %s4813 = scalar_lea.vmem [#allocation3], %s4812
        // Predicated region
        $region41: #{encoder_block_forward.1} parent=39 // pred_check
          %p4814 = pneg %p147
        $region42: #{encoder_block_forward.1} parent=39 // pred_check_branch
          %4816 = sbr.rel (%p4814) target = $region44
        $region43: #{encoder_block_forward.1} parent=39 // pred_region
          %4818 = vsyncadd %s4810, 0
          %s4819 = smul.addr %s19, 32
          %s4820 = smul.addr %s4819, 8
          %s4821 = scalar_lea.hbm %s5, %s4820
          %s4822 = sshll.u32 %s4813, 4
          %s4823 = int_to_ptr.vmem [resolvable:$true] %s4822
          %s4824 = sshll.u32 %s4821, 4
          %s4825 = int_to_ptr.hbm [resolvable:$true] %s4824
          %4830 = dma.vmem_to_hbm [thread:$0]  %s4823, 4096, %s4825, %s4810, 128, 128, 8
        $region44: #{encoder_block_forward.1} parent=39 // pred_fallthru
          _
      $region40: #{encoder_block_forward.1} parent=5 // pred_fallthru
        _
      %p4831 = scmp.le.s32.totalorder 2, %s14
      // Predicated region
      $region45: #{encoder_block_forward.1} parent=5 // pred_check
        %p4832 = pneg %p4831
      $region46: #{encoder_block_forward.1} parent=5 // pred_check_branch
        %4834 = sbr.rel (%p4832) target = $region48
      $region47: #{encoder_block_forward.1} parent=5 // pred_region
        %s4835 = ssub.s32 %s14, 2
        // Predicated region
        $region49: #{encoder_block_forward.1} parent=47 // pred_check
          %p4836 = pneg %p153
        $region50: #{encoder_block_forward.1} parent=47 // pred_check_branch
          %4838 = sbr.rel (%p4836) target = $region52
        $region51: #{encoder_block_forward.1} parent=47 // pred_region
          %s4839 = sand.u32 %s138, 1
          %s4840 = scalar_lea.sflag [#allocation4], %s4839
          %s4841 = sand.u32 %s138, 1
          %s4842 = smul.addr %s4841, 256
          %s4843 = scalar_lea.vmem [#allocation3], %s4842
          %4845 = dma.done %s4840, 4096
        $region52: #{encoder_block_forward.1} parent=47 // pred_fallthru
          _
      $region48: #{encoder_block_forward.1} parent=5 // pred_fallthru
        _
    $region6: #{encoder_block_forward.1} parent=1 // loop_footer
      %s18 = sadd.s32 1, %s14
    $region7: #{encoder_block_forward.1} parent=1 // loop_footer_branch
      %13 = sbr.rel target = $region3
    $region8: #{encoder_block_forward.1} parent=1 // loop_exit
      _
    %4846 = vsyncpa [#allocation4], 1
    %s4847 = scalar_lea.sflag [#allocation4], 1
    %4848 = vsyncpa %s4847, 1

</llo_original>
